<compile_context>
chip_gen: v6e
topology: v6e:2x2x1
jax: 0.10.0
libtpu: 0.0.40
codegen_flags: <defaults>
</compile_context>

<pallas_src>
import jax
import jax.numpy as jnp
import numpy as np
from jax import lax
from jax.experimental import pallas as pl
from jax.experimental.pallas import tpu as pltpu


def _round_up(x, m):
    return (x + m - 1) // m * m


# ---------------------------------------------------------------------------
# Conv3d(k=3, stride=2, pad=1) kernel: per-(n, od) output plane, taps gathered
# in-kernel from three resident input d-planes, resident weights/bias.
# ---------------------------------------------------------------------------
def _make_conv_tap_kernel(Ho, Wo, C):
    HW = Ho * Wo

    def kernel(x0_ref, x1_ref, x2_ref, w_ref, b_ref, o_ref):
        # x*_ref : (1, 1, Hpair, 2, Wpair, 2C) bf16   -- d-planes 2*od + {0,1,2}
        # w_ref  : (18, 2C, CoutP) f32 (resident)     -- g = (kd*3+kh)*2 + wp0
        # b_ref  : (1, CoutP) f32 (resident)
        # o_ref  : (1, 1, Ho*Wo, CoutP) f32           -- lane-dense store
        coutp = o_ref.shape[-1]
        acc = jnp.zeros((HW, coutp), jnp.float32)
        planes = (x0_ref, x1_ref, x2_ref)
        for kd in range(3):
            xr = planes[kd]
            for kh in range(3):
                hp0, hpar = kh // 2, kh % 2
                for wp0 in range(2):
                    # (Ho, Wo, 2C) window; both w-parities live contiguously in
                    # the last dim, so the w taps are folded into the K dim of
                    # the matmul (no lane slicing needed).
                    win = xr[0, 0, hp0:hp0 + Ho, hpar, wp0:wp0 + Wo, :]
                    # NOTE: reshape is layout-trivial when Wo % 8 == 0 (f32).
                    win = win.astype(jnp.float32).reshape(HW, 2 * C)
                    g = (kd * 3 + kh) * 2 + wp0
                    acc = acc + jnp.dot(win, w_ref[g],
                                        preferred_element_type=jnp.float32)
        o_ref[0, 0] = (acc + b_ref[...]).astype(o_ref.dtype)

    return kernel


def downsample_conv3d(x_ncdhw, weight, bias):
    """Conv3d(channels, out_channels, kernel=3, stride=2, padding=1), NCDHW in/out."""
    N, C, D, H, W = x_ncdhw.shape
    Cout, Cin, KD, KH, KW = weight.shape
    assert Cin == C and (KD, KH, KW) == (3, 3, 3)

    Do = (D - 1) // 2 + 1
    Ho = (H - 1) // 2 + 1
    Wo = (W - 1) // 2 + 1

    # NCDHW -> NDHWC bf16 (one XLA pass; bf16 halves the kernel's input DMA).
    x = jnp.transpose(x_ncdhw, (0, 2, 3, 4, 1)).astype(jnp.bfloat16)
    # Conv zero-padding of 1 on each side, plus one extra trailing pad on H/W
    # when odd so the stride-2 parity reshape is exact (extra rows never read).
    xpad = jnp.pad(x, ((0, 0), (1, 1), (1, 1 + H % 2), (1, 1 + W % 2), (0, 0)))
    Dp = D + 2
    Hpair = (H + 2 + H % 2) // 2
    Wpair = (W + 2 + W % 2) // 2
    # Pure reshape (no data movement): (N, Dp, Hpair, h-parity, Wpair, 2*C).
    xr = xpad.reshape(N, Dp, Hpair, 2, Wpair, 2 * C)

    CoutP = _round_up(Cout, 128)   # lane-dense output stores
    HW = Ho * Wo

    # Weights: (Cout, Cin, kd, kh, kw) -> groups g=(kd,kh,wp0) of (2C, CoutP):
    #   row block [0:C]  = tap kw = 2*wp0,  row block [C:2C] = tap kw = 2*wp0+1
    # (kw=3 group half is zero -> contributes nothing).
    w_t = jnp.transpose(weight, (2, 3, 4, 1, 0)).astype(jnp.float32)   # (3,3,3,C,Cout)
    w_t = jnp.concatenate(
        [w_t, jnp.zeros((3, 3, 1, C, Cout), jnp.float32)], axis=2)     # (3,3,4,C,Cout)
    w_g = w_t.reshape(3, 3, 2, 2 * C, Cout).reshape(18, 2 * C, Cout)
    w_g = jnp.pad(w_g, ((0, 0), (0, 0), (0, CoutP - Cout)))
    b_g = jnp.pad(bias.astype(jnp.float32).reshape(1, Cout),
                  ((0, 0), (0, CoutP - Cout)))

    in_specs = [
        pl.BlockSpec((1, 1, Hpair, 2, Wpair, 2 * C),
                     (lambda n, od, kd=kd: (n, 2 * od + kd, 0, 0, 0, 0)))
        for kd in range(3)
    ]
    in_specs += [
        pl.BlockSpec((18, 2 * C, CoutP), lambda n, od: (0, 0, 0)),  # resident weights
        pl.BlockSpec((1, CoutP), lambda n, od: (0, 0)),             # resident bias
    ]

    # NOTE: when Cout <= 128 the 256-wide MXU on v6e/v7x runs at half width;
    # the conv is typically memory-bound at that point anyway.
    out = pl.pallas_call(
        _make_conv_tap_kernel(Ho, Wo, C),
        out_shape=jax.ShapeDtypeStruct((N, Do, HW, CoutP), jnp.float32),
        grid=(N, Do),
        in_specs=in_specs,
        out_specs=pl.BlockSpec((1, 1, HW, CoutP), lambda n, od: (n, od, 0, 0)),
        compiler_params=pltpu.CompilerParams(
            dimension_semantics=("parallel", "parallel"),
            vmem_limit_bytes=48 * 1024 * 1024),   # above v5e/v6e/v7x scoped defaults
    )(xr, xr, xr, w_g, b_g)

    out = out[:, :, :, :Cout].reshape(N, Do, Ho, Wo, Cout)
    return jnp.transpose(out, (0, 4, 1, 2, 3))        # back to NCDHW


# ---------------------------------------------------------------------------
# AvgPool3d(2, 2) kernel: pools d/h parities on the native NCDHW layout
# (no transposes); the w-pair sum is finished by XLA on the 4x-reduced tensor.
# ---------------------------------------------------------------------------
def _avgpool_kernel(x_ref, o_ref):
    # x_ref: (TB, 2, Ho, 2*Wc) ; o_ref: (TB, Ho, Wc)   with Wc = 2*Wo.
    wc = o_ref.shape[-1]
    s = x_ref[:, 0].astype(jnp.float32) + x_ref[:, 1].astype(jnp.float32)
    o_ref[...] = (s[..., :wc] + s[..., wc:]) * jnp.float32(0.125)


def downsample_avgpool3d(x_ncdhw, *, target_block_bytes=8 << 20):
    """AvgPool3d(kernel_size=(2,2,2), stride=(2,2,2)), NCDHW in/out."""
    N, C, D, H, W = x_ncdhw.shape
    Do, Ho, Wo = D // 2, H // 2, W // 2
    Wc = 2 * Wo

    x = x_ncdhw
    if (D, H, W) != (2 * Do, 2 * Ho, 2 * Wo):
        x = x[:, :, :2 * Do, :2 * Ho, :2 * Wo]        # PyTorch floor semantics
    # Pure reshape on the native NCDHW layout:
    #   rows = N*C*Do ; dims = (d-parity, Ho, [h-parity | Wo | w-parity]).
    R = N * C * Do
    xr = x.reshape(R, 2, Ho, 2 * Wc)

    # Size the row tile from the *padded* ((8,128)-tiled) VMEM footprint.
    esize = 4
    in_row = 2 * _round_up(Ho, 8) * _round_up(2 * Wc, 128) * esize
    out_row = _round_up(Ho, 8) * _round_up(Wc, 128) * esize
    tb_cap = max(1, target_block_bytes // max(1, in_row))
    TB = max(1, min(tb_cap, pl.cdiv(R, 8)))           # keep a few grid steps
    R_pad = _round_up(R, TB)
    if R_pad != R:
        xr = jnp.pad(xr, ((0, R_pad - R), (0, 0), (0, 0), (0, 0)))
    # TODO(synk): if a single row (huge Ho*W*C) exceeds VMEM, tiling within Ho
    #             would be needed; not handled here.

    vmem_limit = int(min(50 * 1024 * 1024,
                         max(32 * 1024 * 1024, 3 * TB * (in_row + out_row))))

    y = pl.pallas_call(
        _avgpool_kernel,
        out_shape=jax.ShapeDtypeStruct((R_pad, Ho, Wc), jnp.float32),
        grid=(R_pad // TB,),
        in_specs=[pl.BlockSpec((TB, 2, Ho, 2 * Wc), lambda i: (i, 0, 0, 0))],
        out_specs=pl.BlockSpec((TB, Ho, Wc), lambda i: (i, 0, 0)),
        compiler_params=pltpu.CompilerParams(
            dimension_semantics=("parallel",),
            vmem_limit_bytes=vmem_limit),
    )(xr)

    # Tiny epilogue on the 4x-reduced tensor: sum the w-parity pairs
    # (the 1/8 scale was already applied in-kernel).  Result is already NCDHW.
    return y[:R].reshape(N, C, Do, Ho, Wo, 2).sum(axis=-1)


def downsample_forward(x_ncdhw, use_conv, weight=None, bias=None):
    """Forward pass of Downsample(channels, use_conv, dims=3)."""
    if use_conv:
        return downsample_conv3d(x_ncdhw, weight, bias)
    return downsample_avgpool3d(x_ncdhw)


# ---------------------------------------------------------------------------
if __name__ == "__main__":
    key = jax.random.PRNGKey(0)
    k_x, k_w, k_b = jax.random.split(key, 3)

    # small shapes consistent with the module: batch=2, channels=4, spatial=16^3
    N, C, D, H, W = 2, 4, 16, 16, 16
    Cout = 4  # out_channels defaults to channels

    x = jax.random.normal(k_x, (N, C, D, H, W), jnp.float32)
    weight = jax.random.normal(k_w, (Cout, C, 3, 3, 3), jnp.float32) * 0.1
    bias = jax.random.normal(k_b, (Cout,), jnp.float32) * 0.1

    # --- use_conv=True path ---
    out_conv = downsample_forward(x, use_conv=True, weight=weight, bias=bias)
    jax.block_until_ready(out_conv)
    assert out_conv.shape == (N, Cout, D // 2, H // 2, W // 2)

    # Reference: same bf16-rounded activations, f32 weights, f32 accumulation.
    xb = x.astype(jnp.bfloat16).astype(jnp.float32)
    ref_conv = lax.conv_general_dilated(
        xb, weight, window_strides=(2, 2, 2), padding=[(1, 1)] * 3,
        dimension_numbers=("NCDHW", "OIDHW", "NCDHW"),
        precision=lax.Precision.HIGHEST,
    ) + bias[None, :, None, None, None]
    np.testing.assert_allclose(np.asarray(out_conv), np.asarray(ref_conv),
                               rtol=1e-2, atol=1e-2)

    # --- use_conv=False path (avg pool) ---
    out_pool = downsample_forward(x, use_conv=False)
    jax.block_until_ready(out_pool)
    assert out_pool.shape == (N, C, D // 2, H // 2, W // 2)

    ref_pool = x.reshape(N, C, D // 2, 2, H // 2, 2, W // 2, 2).mean(axis=(3, 5, 7))
    np.testing.assert_allclose(np.asarray(out_pool), np.asarray(ref_pool),
                               rtol=1e-5, atol=1e-5)

    print("KERNEL_OK")
</pallas_src>

<mosaic_0001>
module attributes {stable_mosaic.version = 11 : i64} {
  func.func @kernel(%arg0: i32, %arg1: i32, %arg2: memref<1x1x9x2x9x8xbf16, #tpu.memory_space<vmem>>, %arg3: memref<1x1x9x2x9x8xbf16, #tpu.memory_space<vmem>>, %arg4: memref<1x1x9x2x9x8xbf16, #tpu.memory_space<vmem>>, %arg5: memref<18x8x128xf32, #tpu.memory_space<vmem>>, %arg6: memref<1x128xf32, #tpu.memory_space<vmem>>, %arg7: memref<1x1x64x128xf32, #tpu.memory_space<vmem>>) attributes {dimension_semantics = [#tpu.dimension_semantics<parallel>, #tpu.dimension_semantics<parallel>], iteration_bounds = array<i64: 2, 8>, scalar_prefetch = 0 : i64, scratch_operands = 0 : i64, tpu.core_type = #tpu.core_type<tc>, window_params = [{transform_indices = @transform_0, window_bounds = array<i64: 1, 1, 9, 2, 9, 8>}, {transform_indices = @transform_1, window_bounds = array<i64: 1, 1, 9, 2, 9, 8>}, {transform_indices = @transform_2, window_bounds = array<i64: 1, 1, 9, 2, 9, 8>}, {pipeline_mode = #tpu.pipeline_mode<synchronous>, transform_indices = @transform_3, window_bounds = array<i64: 18, 8, 128>}, {pipeline_mode = #tpu.pipeline_mode<synchronous>, transform_indices = @transform_4, window_bounds = array<i64: 1, 128>}, {transform_indices = @transform_5, window_bounds = array<i64: 1, 1, 64, 128>}]} {
    %cst = arith.constant 0.000000e+00 : f32
    %0 = vector.broadcast %cst : f32 to vector<64x128xf32>
    %c0 = arith.constant 0 : index
    %c0_0 = arith.constant 0 : index
    %c0_1 = arith.constant 0 : index
    %c0_2 = arith.constant 0 : index
    %c0_3 = arith.constant 0 : index
    %c0_4 = arith.constant 0 : index
    %1 = vector.load %arg2[%c0, %c0_0, %c0_1, %c0_2, %c0_3, %c0_4] : memref<1x1x9x2x9x8xbf16, #tpu.memory_space<vmem>>, vector<1x1x8x1x8x8xbf16>
    %2 = vector.shape_cast %1 : vector<1x1x8x1x8x8xbf16> to vector<8x8x8xbf16>
    %3 = arith.extf %2 : vector<8x8x8xbf16> to vector<8x8x8xf32>
    %4 = vector.shape_cast %3 : vector<8x8x8xf32> to vector<64x8xf32>
    %c0_5 = arith.constant 0 : index
    %c0_6 = arith.constant 0 : index
    %c0_7 = arith.constant 0 : index
    %5 = vector.load %arg5[%c0_5, %c0_6, %c0_7] : memref<18x8x128xf32, #tpu.memory_space<vmem>>, vector<1x8x128xf32>
    %6 = vector.shape_cast %5 : vector<1x8x128xf32> to vector<8x128xf32>
    %cst_8 = arith.constant dense<0.000000e+00> : vector<64x128xf32>
    %7 = tpu.matmul %4, %6, %cst_8 {dimension_numbers = #tpu.dot_dimension_numbers<[1], [0], [0], [1], [0, 0, 1, 1], [], []>} : vector<64x8xf32>, vector<8x128xf32>, vector<64x128xf32> -> vector<64x128xf32>
    %8 = arith.addf %0, %7 : vector<64x128xf32>
    %c0_9 = arith.constant 0 : index
    %c0_10 = arith.constant 0 : index
    %c0_11 = arith.constant 0 : index
    %c0_12 = arith.constant 0 : index
    %c1 = arith.constant 1 : index
    %c0_13 = arith.constant 0 : index
    %9 = vector.load %arg2[%c0_9, %c0_10, %c0_11, %c0_12, %c1, %c0_13] : memref<1x1x9x2x9x8xbf16, #tpu.memory_space<vmem>>, vector<1x1x8x1x8x8xbf16>
    %10 = vector.shape_cast %9 : vector<1x1x8x1x8x8xbf16> to vector<8x8x8xbf16>
    %11 = arith.extf %10 : vector<8x8x8xbf16> to vector<8x8x8xf32>
    %12 = vector.shape_cast %11 : vector<8x8x8xf32> to vector<64x8xf32>
    %c1_14 = arith.constant 1 : index
    %c0_15 = arith.constant 0 : index
    %c0_16 = arith.constant 0 : index
    %13 = vector.load %arg5[%c1_14, %c0_15, %c0_16] : memref<18x8x128xf32, #tpu.memory_space<vmem>>, vector<1x8x128xf32>
    %14 = vector.shape_cast %13 : vector<1x8x128xf32> to vector<8x128xf32>
    %cst_17 = arith.constant dense<0.000000e+00> : vector<64x128xf32>
    %15 = tpu.matmul %12, %14, %cst_17 {dimension_numbers = #tpu.dot_dimension_numbers<[1], [0], [0], [1], [0, 0, 1, 1], [], []>} : vector<64x8xf32>, vector<8x128xf32>, vector<64x128xf32> -> vector<64x128xf32>
    %16 = arith.addf %8, %15 : vector<64x128xf32>
    %c0_18 = arith.constant 0 : index
    %c0_19 = arith.constant 0 : index
    %c0_20 = arith.constant 0 : index
    %c1_21 = arith.constant 1 : index
    %c0_22 = arith.constant 0 : index
    %c0_23 = arith.constant 0 : index
    %17 = vector.load %arg2[%c0_18, %c0_19, %c0_20, %c1_21, %c0_22, %c0_23] : memref<1x1x9x2x9x8xbf16, #tpu.memory_space<vmem>>, vector<1x1x8x1x8x8xbf16>
    %18 = vector.shape_cast %17 : vector<1x1x8x1x8x8xbf16> to vector<8x8x8xbf16>
    %19 = arith.extf %18 : vector<8x8x8xbf16> to vector<8x8x8xf32>
    %20 = vector.shape_cast %19 : vector<8x8x8xf32> to vector<64x8xf32>
    %c2 = arith.constant 2 : index
    %c0_24 = arith.constant 0 : index
    %c0_25 = arith.constant 0 : index
    %21 = vector.load %arg5[%c2, %c0_24, %c0_25] : memref<18x8x128xf32, #tpu.memory_space<vmem>>, vector<1x8x128xf32>
    %22 = vector.shape_cast %21 : vector<1x8x128xf32> to vector<8x128xf32>
    %cst_26 = arith.constant dense<0.000000e+00> : vector<64x128xf32>
    %23 = tpu.matmul %20, %22, %cst_26 {dimension_numbers = #tpu.dot_dimension_numbers<[1], [0], [0], [1], [0, 0, 1, 1], [], []>} : vector<64x8xf32>, vector<8x128xf32>, vector<64x128xf32> -> vector<64x128xf32>
    %24 = arith.addf %16, %23 : vector<64x128xf32>
    %c0_27 = arith.constant 0 : index
    %c0_28 = arith.constant 0 : index
    %c0_29 = arith.constant 0 : index
    %c1_30 = arith.constant 1 : index
    %c1_31 = arith.constant 1 : index
    %c0_32 = arith.constant 0 : index
    %25 = vector.load %arg2[%c0_27, %c0_28, %c0_29, %c1_30, %c1_31, %c0_32] : memref<1x1x9x2x9x8xbf16, #tpu.memory_space<vmem>>, vector<1x1x8x1x8x8xbf16>
    %26 = vector.shape_cast %25 : vector<1x1x8x1x8x8xbf16> to vector<8x8x8xbf16>
    %27 = arith.extf %26 : vector<8x8x8xbf16> to vector<8x8x8xf32>
    %28 = vector.shape_cast %27 : vector<8x8x8xf32> to vector<64x8xf32>
    %c3 = arith.constant 3 : index
    %c0_33 = arith.constant 0 : index
    %c0_34 = arith.constant 0 : index
    %29 = vector.load %arg5[%c3, %c0_33, %c0_34] : memref<18x8x128xf32, #tpu.memory_space<vmem>>, vector<1x8x128xf32>
    %30 = vector.shape_cast %29 : vector<1x8x128xf32> to vector<8x128xf32>
    %cst_35 = arith.constant dense<0.000000e+00> : vector<64x128xf32>
    %31 = tpu.matmul %28, %30, %cst_35 {dimension_numbers = #tpu.dot_dimension_numbers<[1], [0], [0], [1], [0, 0, 1, 1], [], []>} : vector<64x8xf32>, vector<8x128xf32>, vector<64x128xf32> -> vector<64x128xf32>
    %32 = arith.addf %24, %31 : vector<64x128xf32>
    %c0_36 = arith.constant 0 : index
    %c0_37 = arith.constant 0 : index
    %c1_38 = arith.constant 1 : index
    %c0_39 = arith.constant 0 : index
    %c0_40 = arith.constant 0 : index
    %c0_41 = arith.constant 0 : index
    %33 = vector.load %arg2[%c0_36, %c0_37, %c1_38, %c0_39, %c0_40, %c0_41] : memref<1x1x9x2x9x8xbf16, #tpu.memory_space<vmem>>, vector<1x1x8x1x8x8xbf16>
    %34 = vector.shape_cast %33 : vector<1x1x8x1x8x8xbf16> to vector<8x8x8xbf16>
    %35 = arith.extf %34 : vector<8x8x8xbf16> to vector<8x8x8xf32>
    %36 = vector.shape_cast %35 : vector<8x8x8xf32> to vector<64x8xf32>
    %c4 = arith.constant 4 : index
    %c0_42 = arith.constant 0 : index
    %c0_43 = arith.constant 0 : index
    %37 = vector.load %arg5[%c4, %c0_42, %c0_43] : memref<18x8x128xf32, #tpu.memory_space<vmem>>, vector<1x8x128xf32>
    %38 = vector.shape_cast %37 : vector<1x8x128xf32> to vector<8x128xf32>
    %cst_44 = arith.constant dense<0.000000e+00> : vector<64x128xf32>
    %39 = tpu.matmul %36, %38, %cst_44 {dimension_numbers = #tpu.dot_dimension_numbers<[1], [0], [0], [1], [0, 0, 1, 1], [], []>} : vector<64x8xf32>, vector<8x128xf32>, vector<64x128xf32> -> vector<64x128xf32>
    %40 = arith.addf %32, %39 : vector<64x128xf32>
    %c0_45 = arith.constant 0 : index
    %c0_46 = arith.constant 0 : index
    %c1_47 = arith.constant 1 : index
    %c0_48 = arith.constant 0 : index
    %c1_49 = arith.constant 1 : index
    %c0_50 = arith.constant 0 : index
    %41 = vector.load %arg2[%c0_45, %c0_46, %c1_47, %c0_48, %c1_49, %c0_50] : memref<1x1x9x2x9x8xbf16, #tpu.memory_space<vmem>>, vector<1x1x8x1x8x8xbf16>
    %42 = vector.shape_cast %41 : vector<1x1x8x1x8x8xbf16> to vector<8x8x8xbf16>
    %43 = arith.extf %42 : vector<8x8x8xbf16> to vector<8x8x8xf32>
    %44 = vector.shape_cast %43 : vector<8x8x8xf32> to vector<64x8xf32>
    %c5 = arith.constant 5 : index
    %c0_51 = arith.constant 0 : index
    %c0_52 = arith.constant 0 : index
    %45 = vector.load %arg5[%c5, %c0_51, %c0_52] : memref<18x8x128xf32, #tpu.memory_space<vmem>>, vector<1x8x128xf32>
    %46 = vector.shape_cast %45 : vector<1x8x128xf32> to vector<8x128xf32>
    %cst_53 = arith.constant dense<0.000000e+00> : vector<64x128xf32>
    %47 = tpu.matmul %44, %46, %cst_53 {dimension_numbers = #tpu.dot_dimension_numbers<[1], [0], [0], [1], [0, 0, 1, 1], [], []>} : vector<64x8xf32>, vector<8x128xf32>, vector<64x128xf32> -> vector<64x128xf32>
    %48 = arith.addf %40, %47 : vector<64x128xf32>
    %c0_54 = arith.constant 0 : index
    %c0_55 = arith.constant 0 : index
    %c0_56 = arith.constant 0 : index
    %c0_57 = arith.constant 0 : index
    %c0_58 = arith.constant 0 : index
    %c0_59 = arith.constant 0 : index
    %49 = vector.load %arg3[%c0_54, %c0_55, %c0_56, %c0_57, %c0_58, %c0_59] : memref<1x1x9x2x9x8xbf16, #tpu.memory_space<vmem>>, vector<1x1x8x1x8x8xbf16>
    %50 = vector.shape_cast %49 : vector<1x1x8x1x8x8xbf16> to vector<8x8x8xbf16>
    %51 = arith.extf %50 : vector<8x8x8xbf16> to vector<8x8x8xf32>
    %52 = vector.shape_cast %51 : vector<8x8x8xf32> to vector<64x8xf32>
    %c6 = arith.constant 6 : index
    %c0_60 = arith.constant 0 : index
    %c0_61 = arith.constant 0 : index
    %53 = vector.load %arg5[%c6, %c0_60, %c0_61] : memref<18x8x128xf32, #tpu.memory_space<vmem>>, vector<1x8x128xf32>
    %54 = vector.shape_cast %53 : vector<1x8x128xf32> to vector<8x128xf32>
    %cst_62 = arith.constant dense<0.000000e+00> : vector<64x128xf32>
    %55 = tpu.matmul %52, %54, %cst_62 {dimension_numbers = #tpu.dot_dimension_numbers<[1], [0], [0], [1], [0, 0, 1, 1], [], []>} : vector<64x8xf32>, vector<8x128xf32>, vector<64x128xf32> -> vector<64x128xf32>
    %56 = arith.addf %48, %55 : vector<64x128xf32>
    %c0_63 = arith.constant 0 : index
    %c0_64 = arith.constant 0 : index
    %c0_65 = arith.constant 0 : index
    %c0_66 = arith.constant 0 : index
    %c1_67 = arith.constant 1 : index
    %c0_68 = arith.constant 0 : index
    %57 = vector.load %arg3[%c0_63, %c0_64, %c0_65, %c0_66, %c1_67, %c0_68] : memref<1x1x9x2x9x8xbf16, #tpu.memory_space<vmem>>, vector<1x1x8x1x8x8xbf16>
    %58 = vector.shape_cast %57 : vector<1x1x8x1x8x8xbf16> to vector<8x8x8xbf16>
    %59 = arith.extf %58 : vector<8x8x8xbf16> to vector<8x8x8xf32>
    %60 = vector.shape_cast %59 : vector<8x8x8xf32> to vector<64x8xf32>
    %c7 = arith.constant 7 : index
    %c0_69 = arith.constant 0 : index
    %c0_70 = arith.constant 0 : index
    %61 = vector.load %arg5[%c7, %c0_69, %c0_70] : memref<18x8x128xf32, #tpu.memory_space<vmem>>, vector<1x8x128xf32>
    %62 = vector.shape_cast %61 : vector<1x8x128xf32> to vector<8x128xf32>
    %cst_71 = arith.constant dense<0.000000e+00> : vector<64x128xf32>
    %63 = tpu.matmul %60, %62, %cst_71 {dimension_numbers = #tpu.dot_dimension_numbers<[1], [0], [0], [1], [0, 0, 1, 1], [], []>} : vector<64x8xf32>, vector<8x128xf32>, vector<64x128xf32> -> vector<64x128xf32>
    %64 = arith.addf %56, %63 : vector<64x128xf32>
    %c0_72 = arith.constant 0 : index
    %c0_73 = arith.constant 0 : index
    %c0_74 = arith.constant 0 : index
    %c1_75 = arith.constant 1 : index
    %c0_76 = arith.constant 0 : index
    %c0_77 = arith.constant 0 : index
    %65 = vector.load %arg3[%c0_72, %c0_73, %c0_74, %c1_75, %c0_76, %c0_77] : memref<1x1x9x2x9x8xbf16, #tpu.memory_space<vmem>>, vector<1x1x8x1x8x8xbf16>
    %66 = vector.shape_cast %65 : vector<1x1x8x1x8x8xbf16> to vector<8x8x8xbf16>
    %67 = arith.extf %66 : vector<8x8x8xbf16> to vector<8x8x8xf32>
    %68 = vector.shape_cast %67 : vector<8x8x8xf32> to vector<64x8xf32>
    %c8 = arith.constant 8 : index
    %c0_78 = arith.constant 0 : index
    %c0_79 = arith.constant 0 : index
    %69 = vector.load %arg5[%c8, %c0_78, %c0_79] : memref<18x8x128xf32, #tpu.memory_space<vmem>>, vector<1x8x128xf32>
    %70 = vector.shape_cast %69 : vector<1x8x128xf32> to vector<8x128xf32>
    %cst_80 = arith.constant dense<0.000000e+00> : vector<64x128xf32>
    %71 = tpu.matmul %68, %70, %cst_80 {dimension_numbers = #tpu.dot_dimension_numbers<[1], [0], [0], [1], [0, 0, 1, 1], [], []>} : vector<64x8xf32>, vector<8x128xf32>, vector<64x128xf32> -> vector<64x128xf32>
    %72 = arith.addf %64, %71 : vector<64x128xf32>
    %c0_81 = arith.constant 0 : index
    %c0_82 = arith.constant 0 : index
    %c0_83 = arith.constant 0 : index
    %c1_84 = arith.constant 1 : index
    %c1_85 = arith.constant 1 : index
    %c0_86 = arith.constant 0 : index
    %73 = vector.load %arg3[%c0_81, %c0_82, %c0_83, %c1_84, %c1_85, %c0_86] : memref<1x1x9x2x9x8xbf16, #tpu.memory_space<vmem>>, vector<1x1x8x1x8x8xbf16>
    %74 = vector.shape_cast %73 : vector<1x1x8x1x8x8xbf16> to vector<8x8x8xbf16>
    %75 = arith.extf %74 : vector<8x8x8xbf16> to vector<8x8x8xf32>
    %76 = vector.shape_cast %75 : vector<8x8x8xf32> to vector<64x8xf32>
    %c9 = arith.constant 9 : index
    %c0_87 = arith.constant 0 : index
    %c0_88 = arith.constant 0 : index
    %77 = vector.load %arg5[%c9, %c0_87, %c0_88] : memref<18x8x128xf32, #tpu.memory_space<vmem>>, vector<1x8x128xf32>
    %78 = vector.shape_cast %77 : vector<1x8x128xf32> to vector<8x128xf32>
    %cst_89 = arith.constant dense<0.000000e+00> : vector<64x128xf32>
    %79 = tpu.matmul %76, %78, %cst_89 {dimension_numbers = #tpu.dot_dimension_numbers<[1], [0], [0], [1], [0, 0, 1, 1], [], []>} : vector<64x8xf32>, vector<8x128xf32>, vector<64x128xf32> -> vector<64x128xf32>
    %80 = arith.addf %72, %79 : vector<64x128xf32>
    %c0_90 = arith.constant 0 : index
    %c0_91 = arith.constant 0 : index
    %c1_92 = arith.constant 1 : index
    %c0_93 = arith.constant 0 : index
    %c0_94 = arith.constant 0 : index
    %c0_95 = arith.constant 0 : index
    %81 = vector.load %arg3[%c0_90, %c0_91, %c1_92, %c0_93, %c0_94, %c0_95] : memref<1x1x9x2x9x8xbf16, #tpu.memory_space<vmem>>, vector<1x1x8x1x8x8xbf16>
    %82 = vector.shape_cast %81 : vector<1x1x8x1x8x8xbf16> to vector<8x8x8xbf16>
    %83 = arith.extf %82 : vector<8x8x8xbf16> to vector<8x8x8xf32>
    %84 = vector.shape_cast %83 : vector<8x8x8xf32> to vector<64x8xf32>
    %c10 = arith.constant 10 : index
    %c0_96 = arith.constant 0 : index
    %c0_97 = arith.constant 0 : index
    %85 = vector.load %arg5[%c10, %c0_96, %c0_97] : memref<18x8x128xf32, #tpu.memory_space<vmem>>, vector<1x8x128xf32>
    %86 = vector.shape_cast %85 : vector<1x8x128xf32> to vector<8x128xf32>
    %cst_98 = arith.constant dense<0.000000e+00> : vector<64x128xf32>
    %87 = tpu.matmul %84, %86, %cst_98 {dimension_numbers = #tpu.dot_dimension_numbers<[1], [0], [0], [1], [0, 0, 1, 1], [], []>} : vector<64x8xf32>, vector<8x128xf32>, vector<64x128xf32> -> vector<64x128xf32>
    %88 = arith.addf %80, %87 : vector<64x128xf32>
    %c0_99 = arith.constant 0 : index
    %c0_100 = arith.constant 0 : index
    %c1_101 = arith.constant 1 : index
    %c0_102 = arith.constant 0 : index
    %c1_103 = arith.constant 1 : index
    %c0_104 = arith.constant 0 : index
    %89 = vector.load %arg3[%c0_99, %c0_100, %c1_101, %c0_102, %c1_103, %c0_104] : memref<1x1x9x2x9x8xbf16, #tpu.memory_space<vmem>>, vector<1x1x8x1x8x8xbf16>
    %90 = vector.shape_cast %89 : vector<1x1x8x1x8x8xbf16> to vector<8x8x8xbf16>
    %91 = arith.extf %90 : vector<8x8x8xbf16> to vector<8x8x8xf32>
    %92 = vector.shape_cast %91 : vector<8x8x8xf32> to vector<64x8xf32>
    %c11 = arith.constant 11 : index
    %c0_105 = arith.constant 0 : index
    %c0_106 = arith.constant 0 : index
    %93 = vector.load %arg5[%c11, %c0_105, %c0_106] : memref<18x8x128xf32, #tpu.memory_space<vmem>>, vector<1x8x128xf32>
    %94 = vector.shape_cast %93 : vector<1x8x128xf32> to vector<8x128xf32>
    %cst_107 = arith.constant dense<0.000000e+00> : vector<64x128xf32>
    %95 = tpu.matmul %92, %94, %cst_107 {dimension_numbers = #tpu.dot_dimension_numbers<[1], [0], [0], [1], [0, 0, 1, 1], [], []>} : vector<64x8xf32>, vector<8x128xf32>, vector<64x128xf32> -> vector<64x128xf32>
    %96 = arith.addf %88, %95 : vector<64x128xf32>
    %c0_108 = arith.constant 0 : index
    %c0_109 = arith.constant 0 : index
    %c0_110 = arith.constant 0 : index
    %c0_111 = arith.constant 0 : index
    %c0_112 = arith.constant 0 : index
    %c0_113 = arith.constant 0 : index
    %97 = vector.load %arg4[%c0_108, %c0_109, %c0_110, %c0_111, %c0_112, %c0_113] : memref<1x1x9x2x9x8xbf16, #tpu.memory_space<vmem>>, vector<1x1x8x1x8x8xbf16>
    %98 = vector.shape_cast %97 : vector<1x1x8x1x8x8xbf16> to vector<8x8x8xbf16>
    %99 = arith.extf %98 : vector<8x8x8xbf16> to vector<8x8x8xf32>
    %100 = vector.shape_cast %99 : vector<8x8x8xf32> to vector<64x8xf32>
    %c12 = arith.constant 12 : index
    %c0_114 = arith.constant 0 : index
    %c0_115 = arith.constant 0 : index
    %101 = vector.load %arg5[%c12, %c0_114, %c0_115] : memref<18x8x128xf32, #tpu.memory_space<vmem>>, vector<1x8x128xf32>
    %102 = vector.shape_cast %101 : vector<1x8x128xf32> to vector<8x128xf32>
    %cst_116 = arith.constant dense<0.000000e+00> : vector<64x128xf32>
    %103 = tpu.matmul %100, %102, %cst_116 {dimension_numbers = #tpu.dot_dimension_numbers<[1], [0], [0], [1], [0, 0, 1, 1], [], []>} : vector<64x8xf32>, vector<8x128xf32>, vector<64x128xf32> -> vector<64x128xf32>
    %104 = arith.addf %96, %103 : vector<64x128xf32>
    %c0_117 = arith.constant 0 : index
    %c0_118 = arith.constant 0 : index
    %c0_119 = arith.constant 0 : index
    %c0_120 = arith.constant 0 : index
    %c1_121 = arith.constant 1 : index
    %c0_122 = arith.constant 0 : index
    %105 = vector.load %arg4[%c0_117, %c0_118, %c0_119, %c0_120, %c1_121, %c0_122] : memref<1x1x9x2x9x8xbf16, #tpu.memory_space<vmem>>, vector<1x1x8x1x8x8xbf16>
    %106 = vector.shape_cast %105 : vector<1x1x8x1x8x8xbf16> to vector<8x8x8xbf16>
    %107 = arith.extf %106 : vector<8x8x8xbf16> to vector<8x8x8xf32>
    %108 = vector.shape_cast %107 : vector<8x8x8xf32> to vector<64x8xf32>
    %c13 = arith.constant 13 : index
    %c0_123 = arith.constant 0 : index
    %c0_124 = arith.constant 0 : index
    %109 = vector.load %arg5[%c13, %c0_123, %c0_124] : memref<18x8x128xf32, #tpu.memory_space<vmem>>, vector<1x8x128xf32>
    %110 = vector.shape_cast %109 : vector<1x8x128xf32> to vector<8x128xf32>
    %cst_125 = arith.constant dense<0.000000e+00> : vector<64x128xf32>
    %111 = tpu.matmul %108, %110, %cst_125 {dimension_numbers = #tpu.dot_dimension_numbers<[1], [0], [0], [1], [0, 0, 1, 1], [], []>} : vector<64x8xf32>, vector<8x128xf32>, vector<64x128xf32> -> vector<64x128xf32>
    %112 = arith.addf %104, %111 : vector<64x128xf32>
    %c0_126 = arith.constant 0 : index
    %c0_127 = arith.constant 0 : index
    %c0_128 = arith.constant 0 : index
    %c1_129 = arith.constant 1 : index
    %c0_130 = arith.constant 0 : index
    %c0_131 = arith.constant 0 : index
    %113 = vector.load %arg4[%c0_126, %c0_127, %c0_128, %c1_129, %c0_130, %c0_131] : memref<1x1x9x2x9x8xbf16, #tpu.memory_space<vmem>>, vector<1x1x8x1x8x8xbf16>
    %114 = vector.shape_cast %113 : vector<1x1x8x1x8x8xbf16> to vector<8x8x8xbf16>
    %115 = arith.extf %114 : vector<8x8x8xbf16> to vector<8x8x8xf32>
    %116 = vector.shape_cast %115 : vector<8x8x8xf32> to vector<64x8xf32>
    %c14 = arith.constant 14 : index
    %c0_132 = arith.constant 0 : index
    %c0_133 = arith.constant 0 : index
    %117 = vector.load %arg5[%c14, %c0_132, %c0_133] : memref<18x8x128xf32, #tpu.memory_space<vmem>>, vector<1x8x128xf32>
    %118 = vector.shape_cast %117 : vector<1x8x128xf32> to vector<8x128xf32>
    %cst_134 = arith.constant dense<0.000000e+00> : vector<64x128xf32>
    %119 = tpu.matmul %116, %118, %cst_134 {dimension_numbers = #tpu.dot_dimension_numbers<[1], [0], [0], [1], [0, 0, 1, 1], [], []>} : vector<64x8xf32>, vector<8x128xf32>, vector<64x128xf32> -> vector<64x128xf32>
    %120 = arith.addf %112, %119 : vector<64x128xf32>
    %c0_135 = arith.constant 0 : index
    %c0_136 = arith.constant 0 : index
    %c0_137 = arith.constant 0 : index
    %c1_138 = arith.constant 1 : index
    %c1_139 = arith.constant 1 : index
    %c0_140 = arith.constant 0 : index
    %121 = vector.load %arg4[%c0_135, %c0_136, %c0_137, %c1_138, %c1_139, %c0_140] : memref<1x1x9x2x9x8xbf16, #tpu.memory_space<vmem>>, vector<1x1x8x1x8x8xbf16>
    %122 = vector.shape_cast %121 : vector<1x1x8x1x8x8xbf16> to vector<8x8x8xbf16>
    %123 = arith.extf %122 : vector<8x8x8xbf16> to vector<8x8x8xf32>
    %124 = vector.shape_cast %123 : vector<8x8x8xf32> to vector<64x8xf32>
    %c15 = arith.constant 15 : index
    %c0_141 = arith.constant 0 : index
    %c0_142 = arith.constant 0 : index
    %125 = vector.load %arg5[%c15, %c0_141, %c0_142] : memref<18x8x128xf32, #tpu.memory_space<vmem>>, vector<1x8x128xf32>
    %126 = vector.shape_cast %125 : vector<1x8x128xf32> to vector<8x128xf32>
    %cst_143 = arith.constant dense<0.000000e+00> : vector<64x128xf32>
    %127 = tpu.matmul %124, %126, %cst_143 {dimension_numbers = #tpu.dot_dimension_numbers<[1], [0], [0], [1], [0, 0, 1, 1], [], []>} : vector<64x8xf32>, vector<8x128xf32>, vector<64x128xf32> -> vector<64x128xf32>
    %128 = arith.addf %120, %127 : vector<64x128xf32>
    %c0_144 = arith.constant 0 : index
    %c0_145 = arith.constant 0 : index
    %c1_146 = arith.constant 1 : index
    %c0_147 = arith.constant 0 : index
    %c0_148 = arith.constant 0 : index
    %c0_149 = arith.constant 0 : index
    %129 = vector.load %arg4[%c0_144, %c0_145, %c1_146, %c0_147, %c0_148, %c0_149] : memref<1x1x9x2x9x8xbf16, #tpu.memory_space<vmem>>, vector<1x1x8x1x8x8xbf16>
    %130 = vector.shape_cast %129 : vector<1x1x8x1x8x8xbf16> to vector<8x8x8xbf16>
    %131 = arith.extf %130 : vector<8x8x8xbf16> to vector<8x8x8xf32>
    %132 = vector.shape_cast %131 : vector<8x8x8xf32> to vector<64x8xf32>
    %c16 = arith.constant 16 : index
    %c0_150 = arith.constant 0 : index
    %c0_151 = arith.constant 0 : index
    %133 = vector.load %arg5[%c16, %c0_150, %c0_151] : memref<18x8x128xf32, #tpu.memory_space<vmem>>, vector<1x8x128xf32>
    %134 = vector.shape_cast %133 : vector<1x8x128xf32> to vector<8x128xf32>
    %cst_152 = arith.constant dense<0.000000e+00> : vector<64x128xf32>
    %135 = tpu.matmul %132, %134, %cst_152 {dimension_numbers = #tpu.dot_dimension_numbers<[1], [0], [0], [1], [0, 0, 1, 1], [], []>} : vector<64x8xf32>, vector<8x128xf32>, vector<64x128xf32> -> vector<64x128xf32>
    %136 = arith.addf %128, %135 : vector<64x128xf32>
    %c0_153 = arith.constant 0 : index
    %c0_154 = arith.constant 0 : index
    %c1_155 = arith.constant 1 : index
    %c0_156 = arith.constant 0 : index
    %c1_157 = arith.constant 1 : index
    %c0_158 = arith.constant 0 : index
    %137 = vector.load %arg4[%c0_153, %c0_154, %c1_155, %c0_156, %c1_157, %c0_158] : memref<1x1x9x2x9x8xbf16, #tpu.memory_space<vmem>>, vector<1x1x8x1x8x8xbf16>
    %138 = vector.shape_cast %137 : vector<1x1x8x1x8x8xbf16> to vector<8x8x8xbf16>
    %139 = arith.extf %138 : vector<8x8x8xbf16> to vector<8x8x8xf32>
    %140 = vector.shape_cast %139 : vector<8x8x8xf32> to vector<64x8xf32>
    %c17 = arith.constant 17 : index
    %c0_159 = arith.constant 0 : index
    %c0_160 = arith.constant 0 : index
    %141 = vector.load %arg5[%c17, %c0_159, %c0_160] : memref<18x8x128xf32, #tpu.memory_space<vmem>>, vector<1x8x128xf32>
    %142 = vector.shape_cast %141 : vector<1x8x128xf32> to vector<8x128xf32>
    %cst_161 = arith.constant dense<0.000000e+00> : vector<64x128xf32>
    %143 = tpu.matmul %140, %142, %cst_161 {dimension_numbers = #tpu.dot_dimension_numbers<[1], [0], [0], [1], [0, 0, 1, 1], [], []>} : vector<64x8xf32>, vector<8x128xf32>, vector<64x128xf32> -> vector<64x128xf32>
    %144 = arith.addf %136, %143 : vector<64x128xf32>
    %c0_162 = arith.constant 0 : index
    %c0_163 = arith.constant 0 : index
    %145 = vector.load %arg6[%c0_162, %c0_163] : memref<1x128xf32, #tpu.memory_space<vmem>>, vector<1x128xf32>
    %146 = vector.broadcast %145 : vector<1x128xf32> to vector<64x128xf32>
    %147 = arith.addf %144, %146 : vector<64x128xf32>
    %c0_164 = arith.constant 0 : index
    %c0_165 = arith.constant 0 : index
    %c0_166 = arith.constant 0 : index
    %c0_167 = arith.constant 0 : index
    %148 = vector.load %arg7[%c0_164, %c0_165, %c0_166, %c0_167] : memref<1x1x64x128xf32, #tpu.memory_space<vmem>>, vector<1x1x64x128xf32>
    %149 = vector.shape_cast %148 : vector<1x1x64x128xf32> to vector<64x128xf32>
    %150 = vector.shape_cast %147 : vector<64x128xf32> to vector<1x1x64x128xf32>
    tpu.vector_store %arg7[%c0_164, %c0_165, %c0_166, %c0_167], %150 {strides = array<i32>} : memref<1x1x64x128xf32, #tpu.memory_space<vmem>>, vector<1x1x64x128xf32>,
    return
  }
  func.func @transform_0(%arg0: i32, %arg1: i32) -> (i32, i32, i32, i32, i32, i32) {
    %c2_i32 = arith.constant 2 : i32
    %0 = arith.muli %c2_i32, %arg1 : i32
    %c0_i32 = arith.constant 0 : i32
    %1 = arith.addi %0, %c0_i32 : i32
    %c0_i32_0 = arith.constant 0 : i32
    %c0_i32_1 = arith.constant 0 : i32
    %c0_i32_2 = arith.constant 0 : i32
    %c0_i32_3 = arith.constant 0 : i32
    %c0_i32_4 = arith.constant 0 : i32
    return %arg0, %1, %c0_i32_0, %c0_i32_1, %c0_i32_2, %c0_i32_3 : i32, i32, i32, i32, i32, i32
  }
  func.func @transform_1(%arg0: i32, %arg1: i32) -> (i32, i32, i32, i32, i32, i32) {
    %c2_i32 = arith.constant 2 : i32
    %0 = arith.muli %c2_i32, %arg1 : i32
    %c1_i32 = arith.constant 1 : i32
    %1 = arith.addi %0, %c1_i32 : i32
    %c0_i32 = arith.constant 0 : i32
    %c0_i32_0 = arith.constant 0 : i32
    %c0_i32_1 = arith.constant 0 : i32
    %c0_i32_2 = arith.constant 0 : i32
    %c0_i32_3 = arith.constant 0 : i32
    return %arg0, %1, %c0_i32, %c0_i32_0, %c0_i32_1, %c0_i32_2 : i32, i32, i32, i32, i32, i32
  }
  func.func @transform_2(%arg0: i32, %arg1: i32) -> (i32, i32, i32, i32, i32, i32) {
    %c2_i32 = arith.constant 2 : i32
    %0 = arith.muli %c2_i32, %arg1 : i32
    %c2_i32_0 = arith.constant 2 : i32
    %1 = arith.addi %0, %c2_i32_0 : i32
    %c0_i32 = arith.constant 0 : i32
    %c0_i32_1 = arith.constant 0 : i32
    %c0_i32_2 = arith.constant 0 : i32
    %c0_i32_3 = arith.constant 0 : i32
    %c0_i32_4 = arith.constant 0 : i32
    return %arg0, %1, %c0_i32, %c0_i32_1, %c0_i32_2, %c0_i32_3 : i32, i32, i32, i32, i32, i32
  }
  func.func @transform_3(%arg0: i32, %arg1: i32) -> (i32, i32, i32) {
    %c0_i32 = arith.constant 0 : i32
    %c0_i32_0 = arith.constant 0 : i32
    %c0_i32_1 = arith.constant 0 : i32
    %c0_i32_2 = arith.constant 0 : i32
    return %c0_i32, %c0_i32_0, %c0_i32_1 : i32, i32, i32
  }
  func.func @transform_4(%arg0: i32, %arg1: i32) -> (i32, i32) {
    %c0_i32 = arith.constant 0 : i32
    %c0_i32_0 = arith.constant 0 : i32
    %c0_i32_1 = arith.constant 0 : i32
    return %c0_i32, %c0_i32_0 : i32, i32
  }
  func.func @transform_5(%arg0: i32, %arg1: i32) -> (i32, i32, i32, i32) {
    %c0_i32 = arith.constant 0 : i32
    %c0_i32_0 = arith.constant 0 : i32
    %c0_i32_1 = arith.constant 0 : i32
    return %arg0, %arg1, %c0_i32, %c0_i32_0 : i32, i32, i32, i32
  }
}

</mosaic_0001>

<llo_original>
// kernel: tpu_custom_call.1
$region0: #{tpu_custom_call.1}
  #allocation0 [shape = 'u32[]', space=smem, size = 0x4, offset = 0x4, fixed_abs, tag = 'smem constant byte address 0x4 - core index']
  #allocation1 [shape = 'u32[144,128]{1,0:T(1,128)}', space=vmem, size = 0x12000, scoped, tag = 'internal scratch']
  %s0 = inlined_call_operand.vmem [shape: bf16[2,18,9,2,9,8], index: 0, kind: input, shape index: {}]
  %s1 = inlined_call_operand.vmem [shape: bf16[2,18,9,2,9,8], index: 1, kind: input, shape index: {}]
  %s2 = inlined_call_operand.vmem [shape: bf16[2,18,9,2,9,8], index: 2, kind: input, shape index: {}]
  %s3 = inlined_call_operand.vmem [shape: f32[18,8,128], index: 3, kind: input, shape index: {}]
  %s4 = inlined_call_operand.vmem [shape: f32[1,128], index: 4, kind: input, shape index: {}]
  %s5 = inlined_call_operand.hbm [shape: f32[2,8,64,128], index: 5, kind: output, shape index: {}]
  %s6 = sld [smem:[#allocation0]]
  $region53: #{tpu_custom_call.1} parent=0
    _
  %s8 = ssub.s32 1, %s6
  %s9 = scalar_select 0, %s8, %s6
  $region1: #{tpu_custom_call.1} parent=0
    #allocation2 [shape = 'u8[65536]{0}', space=vmem, size = 0x10000, scoped, tag = 'output window, operand 0']
    #allocation3 [shape = 's32[2]{0}', space=sflag, size = 0x8, scoped, tag = 'scoped memory for tpu_custom_call.1']
    %10 = vsyncpa [#allocation3], 0
    %s11 = scalar_lea.sflag [#allocation3], 1
    %12 = vsyncpa %s11, 0
    loop: start=0, step=1, limit=18
    $region2: #{tpu_custom_call.1} parent=1 // loop_pre_header
      _
    $region3: #{tpu_custom_call.1} parent=1 // loop_header
      %s14 = sphi 0, %s18
      %p15 = scmp.ge.s32.totalorder %s14, 18
      %s21 = sphi 0, %s33
      %s22 = sphi 0, %s29
      %s23 = sphi 0, %s21
      %s24 = sphi 0, %s22
      %s25 = sphi 0, %s23
      %s26 = sphi 0, %s24
      %s40 = sphi 0, %s42
      %s43 = sphi 0, %s40
      %s44 = sphi 0, %s43
      %s60 = sphi 0, %s44
      %s72 = sphi 0, %s74
      %s75 = sphi 0, %s72
      %s76 = sphi 0, %s75
      %s92 = sphi 0, %s76
      %s104 = sphi 0, %s106
      %s107 = sphi 0, %s104
      %s108 = sphi 0, %s107
      %s124 = sphi 0, %s108
      %s128 = sphi 0, %s128
      %s130 = sphi 0, %s128
      %s131 = sphi 0, %s130
      %s145 = sphi 0, %s131
      %s149 = sphi 0, %s149
      %s151 = sphi 0, %s149
      %s152 = sphi 0, %s151
      %s166 = sphi 0, %s152
      %s174 = sphi 0, %s176
      %s177 = sphi 0, %s174
      %s178 = sphi 0, %s177
      %s194 = sphi 0, %s178
    $region4: #{tpu_custom_call.1} parent=1 // loop_header_branch
      %17 = sbr.rel (%p15) target = $region8
    $region5: #{tpu_custom_call.1} parent=1 // loop_body
      %s19 = ssub.s32 %s14, 1
      %s20 = ssub.s32 %s14, 2
      %s27 = sadd.s32 1, %s22
      %p28 = scmp.ge.s32.totalorder %s27, 8
      %s29 = scalar_select %p28, 0, %s27
      %s30 = sadd.s32 1, %s21
      %s31 = scalar_select %p28, %s30, %s21
      %p32 = scmp.ge.s32.totalorder %s31, 2
      %s33 = scalar_select %p32, 0, %s31
      %s34 = smul.u32 %s22, 2
      %s35 = smul.u32 %s29, 2
      %s36 = ssub.s32 %s21, %s33
      %s37 = ssub.s32 %s34, %s35
      %s38 = sor.u32 %s36, %s37
      %p39 = scmp.eq.s32.totalorder %s38, 0
      %s41 = sadd.s32 %s40, 1
      %s42 = scalar_select %p39, %s40, %s41
      %p45 = pneg %p39
      %p46 = scmp.eq.s32.totalorder %s14, 15
      %p47 = por %p45, %p46
      %p48 = scmp.ne.s32.totalorder %s40, %s43
      %p49 = scmp.eq.s32.totalorder %s14, 0
      %p50 = por %p48, %p49
      %p51 = scmp.ne.s32.totalorder %s40, %s43
      %p52 = scmp.eq.s32.totalorder %s19, 15
      %p53 = por %p51, %p52
      %p54 = scmp.ne.s32.totalorder %s43, %s44
      %p55 = scmp.eq.s32.totalorder %s19, 0
      %p56 = por %p54, %p55
      %p57 = scmp.ne.s32.totalorder %s43, %s44
      %p58 = scmp.eq.s32.totalorder %s20, 15
      %p59 = por %p57, %p58
      %p61 = scmp.ne.s32.totalorder %s44, %s60
      %p62 = scmp.eq.s32.totalorder %s20, 0
      %p63 = por %p61, %p62
      %s64 = smul.u32 %s22, 2
      %s65 = sadd.s32 %s64, 1
      %s66 = smul.u32 %s29, 2
      %s67 = sadd.s32 %s66, 1
      %s68 = ssub.s32 %s21, %s33
      %s69 = ssub.s32 %s65, %s67
      %s70 = sor.u32 %s68, %s69
      %p71 = scmp.eq.s32.totalorder %s70, 0
      %s73 = sadd.s32 %s72, 1
      %s74 = scalar_select %p71, %s72, %s73
      %p77 = pneg %p71
      %p78 = scmp.eq.s32.totalorder %s14, 15
      %p79 = por %p77, %p78
      %p80 = scmp.ne.s32.totalorder %s72, %s75
      %p81 = scmp.eq.s32.totalorder %s14, 0
      %p82 = por %p80, %p81
      %p83 = scmp.ne.s32.totalorder %s72, %s75
      %p84 = scmp.eq.s32.totalorder %s19, 15
      %p85 = por %p83, %p84
      %p86 = scmp.ne.s32.totalorder %s75, %s76
      %p87 = scmp.eq.s32.totalorder %s19, 0
      %p88 = por %p86, %p87
      %p89 = scmp.ne.s32.totalorder %s75, %s76
      %p90 = scmp.eq.s32.totalorder %s20, 15
      %p91 = por %p89, %p90
      %p93 = scmp.ne.s32.totalorder %s76, %s92
      %p94 = scmp.eq.s32.totalorder %s20, 0
      %p95 = por %p93, %p94
      %s96 = smul.u32 %s22, 2
      %s97 = sadd.s32 %s96, 2
      %s98 = smul.u32 %s29, 2
      %s99 = sadd.s32 %s98, 2
      %s100 = ssub.s32 %s21, %s33
      %s101 = ssub.s32 %s97, %s99
      %s102 = sor.u32 %s100, %s101
      %p103 = scmp.eq.s32.totalorder %s102, 0
      %s105 = sadd.s32 %s104, 1
      %s106 = scalar_select %p103, %s104, %s105
      %p109 = pneg %p103
      %p110 = scmp.eq.s32.totalorder %s14, 15
      %p111 = por %p109, %p110
      %p112 = scmp.ne.s32.totalorder %s104, %s107
      %p113 = scmp.eq.s32.totalorder %s14, 0
      %p114 = por %p112, %p113
      %p115 = scmp.ne.s32.totalorder %s104, %s107
      %p116 = scmp.eq.s32.totalorder %s19, 15
      %p117 = por %p115, %p116
      %p118 = scmp.ne.s32.totalorder %s107, %s108
      %p119 = scmp.eq.s32.totalorder %s19, 0
      %p120 = por %p118, %p119
      %p121 = scmp.ne.s32.totalorder %s107, %s108
      %p122 = scmp.eq.s32.totalorder %s20, 15
      %p123 = por %p121, %p122
      %p125 = scmp.ne.s32.totalorder %s108, %s124
      %p126 = scmp.eq.s32.totalorder %s20, 0
      %p127 = por %p125, %p126
      %s129 = sadd.s32 %s128, 1
      %p132 = scmp.eq.s32.totalorder %s14, 15
      %p133 = scmp.ne.s32.totalorder %s128, %s130
      %p134 = scmp.eq.s32.totalorder %s14, 0
      %p135 = por %p133, %p134
      %p136 = scmp.ne.s32.totalorder %s128, %s130
      %p137 = scmp.eq.s32.totalorder %s19, 15
      %p138 = por %p136, %p137
      %p139 = scmp.ne.s32.totalorder %s130, %s131
      %p140 = scmp.eq.s32.totalorder %s19, 0
      %p141 = por %p139, %p140
      %p142 = scmp.ne.s32.totalorder %s130, %s131
      %p143 = scmp.eq.s32.totalorder %s20, 15
      %p144 = por %p142, %p143
      %p146 = scmp.ne.s32.totalorder %s131, %s145
      %p147 = scmp.eq.s32.totalorder %s20, 0
      %p148 = por %p146, %p147
      %s150 = sadd.s32 %s149, 1
      %p153 = scmp.eq.s32.totalorder %s14, 15
      %p154 = scmp.ne.s32.totalorder %s149, %s151
      %p155 = scmp.eq.s32.totalorder %s14, 0
      %p156 = por %p154, %p155
      %p157 = scmp.ne.s32.totalorder %s149, %s151
      %p158 = scmp.eq.s32.totalorder %s19, 15
      %p159 = por %p157, %p158
      %p160 = scmp.ne.s32.totalorder %s151, %s152
      %p161 = scmp.eq.s32.totalorder %s19, 0
      %p162 = por %p160, %p161
      %p163 = scmp.ne.s32.totalorder %s151, %s152
      %p164 = scmp.eq.s32.totalorder %s20, 15
      %p165 = por %p163, %p164
      %p167 = scmp.ne.s32.totalorder %s152, %s166
      %p168 = scmp.eq.s32.totalorder %s20, 0
      %p169 = por %p167, %p168
      %s170 = ssub.s32 %s21, %s33
      %s171 = ssub.s32 %s22, %s29
      %s172 = sor.u32 %s170, %s171
      %p173 = scmp.eq.s32.totalorder %s172, 0
      %s175 = sadd.s32 %s174, 1
      %s176 = scalar_select %p173, %s174, %s175
      %p179 = pneg %p173
      %p180 = scmp.eq.s32.totalorder %s14, 15
      %p181 = por %p179, %p180
      %p182 = scmp.ne.s32.totalorder %s174, %s177
      %p183 = scmp.eq.s32.totalorder %s14, 0
      %p184 = por %p182, %p183
      %p185 = scmp.ne.s32.totalorder %s174, %s177
      %p186 = scmp.eq.s32.totalorder %s19, 15
      %p187 = por %p185, %p186
      %p188 = scmp.ne.s32.totalorder %s177, %s178
      %p189 = scmp.eq.s32.totalorder %s19, 0
      %p190 = por %p188, %p189
      %p191 = scmp.ne.s32.totalorder %s177, %s178
      %p192 = scmp.eq.s32.totalorder %s20, 15
      %p193 = por %p191, %p192
      %p195 = scmp.ne.s32.totalorder %s178, %s194
      %p196 = scmp.eq.s32.totalorder %s20, 0
      %p197 = por %p195, %p196
      %p198 = scmp.le.s32.totalorder 1, %s14
      %p199 = scmp.lt.s32.totalorder %s14, 17
      %p200 = pnand %p198, %p199
      %p201 = pneg %p200
      // Predicated region
      $region9: #{tpu_custom_call.1} parent=5 // pred_check
        _
      $region10: #{tpu_custom_call.1} parent=5 // pred_check_branch
        %203 = sbr.rel (%p200) target = $region12
      $region11: #{tpu_custom_call.1} parent=5 // pred_region
        %s204 = ssub.s32 %s14, 1
        // Predicated region
        $region13: #{tpu_custom_call.1} parent=11 // pred_check
          %p205 = pneg %p141
        $region14: #{tpu_custom_call.1} parent=11 // pred_check_branch
          %207 = sbr.rel (%p205) target = $region16
        $region15: #{tpu_custom_call.1} parent=11 // pred_region
          _
        $region16: #{tpu_custom_call.1} parent=11 // pred_fallthru
          _
        // Predicated region
        $region17: #{tpu_custom_call.1} parent=11 // pred_check
          %p208 = pneg %p162
        $region18: #{tpu_custom_call.1} parent=11 // pred_check_branch
          %210 = sbr.rel (%p208) target = $region20
        $region19: #{tpu_custom_call.1} parent=11 // pred_region
          _
        $region20: #{tpu_custom_call.1} parent=11 // pred_fallthru
          _
      $region12: #{tpu_custom_call.1} parent=5 // pred_fallthru
        _
      %p211 = scmp.lt.s32.totalorder %s14, 16
      // Predicated region
      $region21: #{tpu_custom_call.1} parent=5 // pred_check
        %p212 = pneg %p211
      $region22: #{tpu_custom_call.1} parent=5 // pred_check_branch
        %214 = sbr.rel (%p212) target = $region24
      $region23: #{tpu_custom_call.1} parent=5 // pred_region
        // Predicated region
        $region25: #{tpu_custom_call.1} parent=23 // pred_check
          %p215 = pneg %p50
        $region26: #{tpu_custom_call.1} parent=23 // pred_check_branch
          %217 = sbr.rel (%p215) target = $region28
        $region27: #{tpu_custom_call.1} parent=23 // pred_region
          %s218 = smul.u32 %s22, 2
          %p219 = scmp.lt.s32.totalorder %s21, 1
          %s220 = scalar_select %p219, %s21, 1
          %p221 = scmp.lt.s32.totalorder %s218, 17
          %s222 = scalar_select %p221, %s218, 17
          %s223 = smul.addr %s222, 36
          %s224 = smul.addr %s220, 648
          %s225 = sadd.s32 %s223, %s224
          %s226 = smul.addr %s225, 4
          %s227 = scalar_lea.vmem %s0, %s226
          %s228 = smul.u32 %s22, 2
        $region28: #{tpu_custom_call.1} parent=23 // pred_fallthru
          _
        // Predicated region
        $region29: #{tpu_custom_call.1} parent=23 // pred_check
          %p229 = pneg %p82
        $region30: #{tpu_custom_call.1} parent=23 // pred_check_branch
          %231 = sbr.rel (%p229) target = $region32
        $region31: #{tpu_custom_call.1} parent=23 // pred_region
          %s232 = smul.u32 %s22, 2
          %s233 = sadd.s32 %s232, 1
          %p234 = scmp.lt.s32.totalorder %s21, 1
          %s235 = scalar_select %p234, %s21, 1
          %p236 = scmp.lt.s32.totalorder %s233, 17
          %s237 = scalar_select %p236, %s233, 17
          %s238 = smul.addr %s237, 36
          %s239 = smul.addr %s235, 648
          %s240 = sadd.s32 %s238, %s239
          %s241 = smul.addr %s240, 4
          %s242 = scalar_lea.vmem %s1, %s241
          %s243 = smul.u32 %s22, 2
          %s244 = sadd.s32 %s243, 1
        $region32: #{tpu_custom_call.1} parent=23 // pred_fallthru
          _
        // Predicated region
        $region33: #{tpu_custom_call.1} parent=23 // pred_check
          %p245 = pneg %p114
        $region34: #{tpu_custom_call.1} parent=23 // pred_check_branch
          %247 = sbr.rel (%p245) target = $region36
        $region35: #{tpu_custom_call.1} parent=23 // pred_region
          %s248 = smul.u32 %s22, 2
          %s249 = sadd.s32 %s248, 2
          %p250 = scmp.lt.s32.totalorder %s21, 1
          %s251 = scalar_select %p250, %s21, 1
          %p252 = scmp.lt.s32.totalorder %s249, 17
          %s253 = scalar_select %p252, %s249, 17
          %s254 = smul.addr %s253, 36
          %s255 = smul.addr %s251, 648
          %s256 = sadd.s32 %s254, %s255
          %s257 = smul.addr %s256, 4
          %s258 = scalar_lea.vmem %s2, %s257
          %s259 = smul.u32 %s22, 2
          %s260 = sadd.s32 %s259, 2
        $region36: #{tpu_custom_call.1} parent=23 // pred_fallthru
          _
      $region24: #{tpu_custom_call.1} parent=5 // pred_fallthru
        _
      %p261 = scmp.le.s32.totalorder 1, %s14
      %p262 = scmp.lt.s32.totalorder %s14, 17
      %p263 = pnand %p261, %p262
      %p264 = pneg %p263
      // Predicated region
      $region37: #{tpu_custom_call.1} parent=5 // pred_check
        _
      $region38: #{tpu_custom_call.1} parent=5 // pred_check_branch
        %266 = sbr.rel (%p263) target = $region40
      $region39: #{tpu_custom_call.1} parent=5 // pred_region
        %s267 = ssub.s32 %s14, 1
        %s268 = smul.u32 %s24, 2
        %p269 = scmp.lt.s32.totalorder %s23, 1
        %s270 = scalar_select %p269, %s23, 1
        %p271 = scmp.lt.s32.totalorder %s268, 17
        %s272 = scalar_select %p271, %s268, 17
        %s273 = smul.addr %s272, 36
        %s274 = smul.addr %s270, 648
        %s275 = sadd.s32 %s273, %s274
        %s276 = smul.addr %s275, 4
        %s277 = scalar_lea.vmem %s0, %s276
        %p278 = pneg %p56
        %p279 = pneg %p53
        %s280 = smul.u32 %s24, 2
        %s281 = sadd.s32 %s280, 1
        %p282 = scmp.lt.s32.totalorder %s23, 1
        %s283 = scalar_select %p282, %s23, 1
        %p284 = scmp.lt.s32.totalorder %s281, 17
        %s285 = scalar_select %p284, %s281, 17
        %s286 = smul.addr %s285, 36
        %s287 = smul.addr %s283, 648
        %s288 = sadd.s32 %s286, %s287
        %s289 = smul.addr %s288, 4
        %s290 = scalar_lea.vmem %s1, %s289
        %p291 = pneg %p88
        %p292 = pneg %p85
        %s293 = smul.u32 %s24, 2
        %s294 = sadd.s32 %s293, 2
        %p295 = scmp.lt.s32.totalorder %s23, 1
        %s296 = scalar_select %p295, %s23, 1
        %p297 = scmp.lt.s32.totalorder %s294, 17
        %s298 = scalar_select %p297, %s294, 17
        %s299 = smul.addr %s298, 36
        %s300 = smul.addr %s296, 648
        %s301 = sadd.s32 %s299, %s300
        %s302 = smul.addr %s301, 4
        %s303 = scalar_lea.vmem %s2, %s302
        %p304 = pneg %p120
        %p305 = pneg %p117
        %p306 = pneg %p141
        %p307 = pneg %p138
        %p308 = pneg %p162
        %p309 = pneg %p159
        %p310 = pneg %p190
        %p311 = pneg %p187
        %s312 = sand.u32 %s177, 1
        %s313 = scalar_lea.sflag [#allocation3], %s312
        %s314 = sand.u32 %s177, 1
        %s315 = smul.addr %s314, 64
        %s316 = scalar_lea.vmem [#allocation2], %s315
        %s317 = smul.u32 %s24, 2
        %p318 = scmp.lt.s32.totalorder %s23, 1
        %s319 = scalar_select %p318, %s23, 1
        %p320 = scmp.lt.s32.totalorder %s317, 17
        %s321 = scalar_select %p320, %s317, 17
        %s322 = smul.addr %s321, 36
        %s323 = smul.addr %s319, 648
        %s324 = sadd.s32 %s322, %s323
        %s325 = smul.addr %s324, 4
        %s326 = scalar_lea.vmem %s0, %s325
        %s327 = smul.u32 %s24, 2
        %s328 = smul.u32 %s24, 2
        %s329 = sadd.s32 %s328, 1
        %p330 = scmp.lt.s32.totalorder %s23, 1
        %s331 = scalar_select %p330, %s23, 1
        %p332 = scmp.lt.s32.totalorder %s329, 17
        %s333 = scalar_select %p332, %s329, 17
        %s334 = smul.addr %s333, 36
        %s335 = smul.addr %s331, 648
        %s336 = sadd.s32 %s334, %s335
        %s337 = smul.addr %s336, 4
        %s338 = scalar_lea.vmem %s1, %s337
        %s339 = smul.u32 %s24, 2
        %s340 = sadd.s32 %s339, 1
        %s341 = smul.u32 %s24, 2
        %s342 = sadd.s32 %s341, 2
        %p343 = scmp.lt.s32.totalorder %s23, 1
        %s344 = scalar_select %p343, %s23, 1
        %p345 = scmp.lt.s32.totalorder %s342, 17
        %s346 = scalar_select %p345, %s342, 17
        %s347 = smul.addr %s346, 36
        %s348 = smul.addr %s344, 648
        %s349 = sadd.s32 %s347, %s348
        %s350 = smul.addr %s349, 4
        %s351 = scalar_lea.vmem %s2, %s350
        %s352 = smul.u32 %s24, 2
        %s353 = sadd.s32 %s352, 2
        %v354 = vld [vmem:[%s326] sm:$0xf]
        %v355 = vld [vmem:[%s326 + $0x10] sm:$0xf]
        %v356 = vld [vmem:[%s326 + $0x20] sm:$0xf]
        %v357 = vld [vmem:[%s326 + $0x30] sm:$0xf]
        %v358 = vld [vmem:[%s326 + $0x40] sm:$0xf]
        %v359 = vld [vmem:[%s326 + $0x50] sm:$0xf]
        %v360 = vld [vmem:[%s326 + $0x60] sm:$0xf]
        %v361 = vld [vmem:[%s326 + $0x70] sm:$0xf]
        %v362 = vunpack.c.l.bf16 %v354
        %v363 = vunpack.c.l.bf16 %v355
        %v364 = vunpack.c.l.bf16 %v356
        %v365 = vunpack.c.l.bf16 %v357
        %v366 = vunpack.c.l.bf16 %v358
        %v367 = vunpack.c.l.bf16 %v359
        %v368 = vunpack.c.l.bf16 %v360
        %v369 = vunpack.c.l.bf16 %v361
        %v370 = vld [vmem:[%s3] sm:$0xff]
        %v371 = vld [vmem:[%s326 + $0x4] sm:$0x1]
        %v372 = vld [vmem:[%s326 + $0x14] sm:$0x1]
        %v373 = vld [vmem:[%s326 + $0x24] sm:$0x1]
        %v374 = vld [vmem:[%s326 + $0x34] sm:$0x1]
        %v375 = vld [vmem:[%s326 + $0x44] sm:$0x1]
        %v376 = vld [vmem:[%s326 + $0x54] sm:$0x1]
        %v377 = vld [vmem:[%s326 + $0x64] sm:$0x1]
        %v378 = vld [vmem:[%s326 + $0x74] sm:$0x1]
        %v379 = vunpack.c.l.bf16 %v371
        %v380 = vunpack.c.l.bf16 %v372
        %v381 = vunpack.c.l.bf16 %v373
        %v382 = vunpack.c.l.bf16 %v374
        %v383 = vunpack.c.l.bf16 %v375
        %v384 = vunpack.c.l.bf16 %v376
        %v385 = vunpack.c.l.bf16 %v377
        %v386 = vunpack.c.l.bf16 %v378
        %vm403 = vcmask 1046528
        %v404 = vrot.slane %v362, 1
        %v405 = vrot.slane %v379, 1
        %v406 = vsel %vm403, %v404, %v405
        %v407 = vrot.slane %v363, 1
        %v408 = vrot.slane %v380, 1
        %v409 = vsel %vm403, %v407, %v408
        %v410 = vrot.slane %v364, 1
        %v411 = vrot.slane %v381, 1
        %v412 = vsel %vm403, %v410, %v411
        %v413 = vrot.slane %v365, 1
        %v414 = vrot.slane %v382, 1
        %v415 = vsel %vm403, %v413, %v414
        %v416 = vrot.slane %v366, 1
        %v417 = vrot.slane %v383, 1
        %v418 = vsel %vm403, %v416, %v417
        %v419 = vrot.slane %v367, 1
        %v420 = vrot.slane %v384, 1
        %v421 = vsel %vm403, %v419, %v420
        %v422 = vrot.slane %v368, 1
        %v423 = vrot.slane %v385, 1
        %v424 = vsel %vm403, %v422, %v423
        %v425 = vrot.slane %v369, 1
        %v426 = vrot.slane %v386, 1
        %v427 = vsel %vm403, %v425, %v426
        %s428 = scalar_lea.vmem %s3, 8
        %v429 = vld [vmem:[%s428] sm:$0xff]
        %vm430 = vcmask 64512
        %v431 = vsel %vm430, %v406, 0
        %v433 = vsel %vm430, %v409, 0
        %v435 = vsel %vm430, %v412, 0
        %v437 = vsel %vm430, %v415, 0
        %v439 = vsel %vm430, %v418, 0
        %v441 = vsel %vm430, %v421, 0
        %v443 = vsel %vm430, %v424, 0
        %v445 = vsel %vm430, %v427, 0
        %447 = vmatprep.subr.mxu0 0.0
        %448 = vmatpush1.msra.mxu0 0.0
        %449 = vmatprep.subr.mxu0 0.0
        %450 = vmatpush1.msra.mxu0 0.0
        %451 = vmatprep.subr.mxu0 0.0
        %452 = vmatpush1.msra.mxu0 0.0
        %453 = vmatprep.subr.mxu0 0.0
        %454 = vmatpush1.msra.mxu0 0.0
        %455 = vmatprep.subr.mxu0 0.0
        %456 = vmatpush1.msra.mxu0 0.0
        %457 = vmatprep.subr.mxu0 0.0
        %458 = vmatpush1.msra.mxu0 0.0
        %459 = vmatprep.subr.mxu0 0.0
        %460 = vmatpush1.msra.mxu0 0.0
        %461 = vmatprep.subr.mxu0 0.0
        %462 = vmatpush1.msra.mxu0 0.0
        %463 = vmatprep.subr.mxu0 0.0
        %464 = vmatpush1.msra.mxu0 0.0
        %465 = vmatprep.subr.mxu0 0.0
        %466 = vmatpush1.msra.mxu0 0.0
        %467 = vmatprep.subr.mxu0 0.0
        %468 = vmatpush1.msra.mxu0 0.0
        %469 = vmatprep.subr.mxu0 0.0
        %470 = vmatpush1.msra.mxu0 0.0
        %471 = vmatprep.subr.mxu0 0.0
        %472 = vmatpush1.msra.mxu0 0.0
        %473 = vmatprep.subr.mxu0 0.0
        %474 = vmatpush1.msra.mxu0 0.0
        %475 = vmatprep.subr.mxu0 0.0
        %476 = vmatpush1.msra.mxu0 0.0
        %477 = vmatprep.subr.mxu0 0.0
        %478 = vmatpush1.msra.mxu0 %v429
        %479 = vmatprep.subr.mxu0 0.0
        %480 = vmatpush2.msra.mxu0 0.0
        %481 = vmatprep.subr.mxu0 0.0
        %482 = vmatpush2.msra.mxu0 0.0
        %483 = vmatprep.subr.mxu0 0.0
        %484 = vmatpush2.msra.mxu0 0.0
        %485 = vmatprep.subr.mxu0 0.0
        %486 = vmatpush2.msra.mxu0 0.0
        %487 = vmatprep.subr.mxu0 0.0
        %488 = vmatpush2.msra.mxu0 0.0
        %489 = vmatprep.subr.mxu0 0.0
        %490 = vmatpush2.msra.mxu0 0.0
        %491 = vmatprep.subr.mxu0 0.0
        %492 = vmatpush2.msra.mxu0 0.0
        %493 = vmatprep.subr.mxu0 0.0
        %494 = vmatpush2.msra.mxu0 0.0
        %495 = vmatprep.subr.mxu0 0.0
        %496 = vmatpush2.msra.mxu0 0.0
        %497 = vmatprep.subr.mxu0 0.0
        %498 = vmatpush2.msra.mxu0 0.0
        %499 = vmatprep.subr.mxu0 0.0
        %500 = vmatpush2.msra.mxu0 0.0
        %501 = vmatprep.subr.mxu0 0.0
        %502 = vmatpush2.msra.mxu0 0.0
        %503 = vmatprep.subr.mxu0 0.0
        %504 = vmatpush2.msra.mxu0 0.0
        %505 = vmatprep.subr.mxu0 0.0
        %506 = vmatpush2.msra.mxu0 0.0
        %507 = vmatprep.subr.mxu0 0.0
        %508 = vmatpush2.msra.mxu0 0.0
        %509 = vmatprep.subr.mxu0 0.0
        %510 = vmatpush2.msra.mxu0 0.0
        %511 = vmatprep.mubr.f32.mxu0 0.0
        %512 = vmatmul.mubr.f32.gmra.mxu0 %v431
        %v513 = vpop.f32.mrf.mxu0
        %v514 = vadd.f32 0.0, %v513
        %v515 = vpop.f32.mrf.mxu0
        %516 = vmatprep.mubr.f32.mxu0 0.0
        %517 = vmatmul.mubr.f32.gmra.mxu0 %v433
        %v518 = vpop.f32.mrf.mxu0
        %v519 = vadd.f32 0.0, %v518
        %v520 = vpop.f32.mrf.mxu0
        %521 = vmatprep.mubr.f32.mxu0 0.0
        %522 = vmatmul.mubr.f32.gmra.mxu0 %v435
        %v523 = vpop.f32.mrf.mxu0
        %v524 = vadd.f32 0.0, %v523
        %v525 = vpop.f32.mrf.mxu0
        %526 = vmatprep.mubr.f32.mxu0 0.0
        %527 = vmatmul.mubr.f32.gmra.mxu0 %v437
        %v528 = vpop.f32.mrf.mxu0
        %v529 = vadd.f32 0.0, %v528
        %v530 = vpop.f32.mrf.mxu0
        %531 = vmatprep.mubr.f32.mxu0 0.0
        %532 = vmatmul.mubr.f32.gmra.mxu0 %v439
        %v533 = vpop.f32.mrf.mxu0
        %v534 = vadd.f32 0.0, %v533
        %v535 = vpop.f32.mrf.mxu0
        %536 = vmatprep.mubr.f32.mxu0 0.0
        %537 = vmatmul.mubr.f32.gmra.mxu0 %v441
        %v538 = vpop.f32.mrf.mxu0
        %v539 = vadd.f32 0.0, %v538
        %v540 = vpop.f32.mrf.mxu0
        %541 = vmatprep.mubr.f32.mxu0 0.0
        %542 = vmatmul.mubr.f32.gmra.mxu0 %v443
        %v543 = vpop.f32.mrf.mxu0
        %v544 = vadd.f32 0.0, %v543
        %v545 = vpop.f32.mrf.mxu0
        %546 = vmatprep.mubr.f32.mxu0 0.0
        %547 = vmatmul.mubr.f32.gmra.mxu0 %v445
        %v548 = vpop.f32.mrf.mxu0
        %v549 = vadd.f32 0.0, %v548
        %v550 = vpop.f32.mrf.mxu0
        %551 = vdwg.mxu0
        %v552 = vsel %vm430, %v362, 0
        %v554 = vsel %vm430, %v363, 0
        %v556 = vsel %vm430, %v364, 0
        %v558 = vsel %vm430, %v365, 0
        %v560 = vsel %vm430, %v366, 0
        %v562 = vsel %vm430, %v367, 0
        %v564 = vsel %vm430, %v368, 0
        %v566 = vsel %vm430, %v369, 0
        %568 = vmatprep.subr.mxu0 0.0
        %569 = vmatpush1.msra.mxu0 0.0
        %570 = vmatprep.subr.mxu0 0.0
        %571 = vmatpush1.msra.mxu0 0.0
        %572 = vmatprep.subr.mxu0 0.0
        %573 = vmatpush1.msra.mxu0 0.0
        %574 = vmatprep.subr.mxu0 0.0
        %575 = vmatpush1.msra.mxu0 0.0
        %576 = vmatprep.subr.mxu0 0.0
        %577 = vmatpush1.msra.mxu0 0.0
        %578 = vmatprep.subr.mxu0 0.0
        %579 = vmatpush1.msra.mxu0 0.0
        %580 = vmatprep.subr.mxu0 0.0
        %581 = vmatpush1.msra.mxu0 0.0
        %582 = vmatprep.subr.mxu0 0.0
        %583 = vmatpush1.msra.mxu0 0.0
        %584 = vmatprep.subr.mxu0 0.0
        %585 = vmatpush1.msra.mxu0 0.0
        %586 = vmatprep.subr.mxu0 0.0
        %587 = vmatpush1.msra.mxu0 0.0
        %588 = vmatprep.subr.mxu0 0.0
        %589 = vmatpush1.msra.mxu0 0.0
        %590 = vmatprep.subr.mxu0 0.0
        %591 = vmatpush1.msra.mxu0 0.0
        %592 = vmatprep.subr.mxu0 0.0
        %593 = vmatpush1.msra.mxu0 0.0
        %594 = vmatprep.subr.mxu0 0.0
        %595 = vmatpush1.msra.mxu0 0.0
        %596 = vmatprep.subr.mxu0 0.0
        %597 = vmatpush1.msra.mxu0 0.0
        %598 = vmatprep.subr.mxu0 0.0
        %599 = vmatpush1.msra.mxu0 %v370
        %600 = vmatprep.subr.mxu0 0.0
        %601 = vmatpush2.msra.mxu0 0.0
        %602 = vmatprep.subr.mxu0 0.0
        %603 = vmatpush2.msra.mxu0 0.0
        %604 = vmatprep.subr.mxu0 0.0
        %605 = vmatpush2.msra.mxu0 0.0
        %606 = vmatprep.subr.mxu0 0.0
        %607 = vmatpush2.msra.mxu0 0.0
        %608 = vmatprep.subr.mxu0 0.0
        %609 = vmatpush2.msra.mxu0 0.0
        %610 = vmatprep.subr.mxu0 0.0
        %611 = vmatpush2.msra.mxu0 0.0
        %612 = vmatprep.subr.mxu0 0.0
        %613 = vmatpush2.msra.mxu0 0.0
        %614 = vmatprep.subr.mxu0 0.0
        %615 = vmatpush2.msra.mxu0 0.0
        %616 = vmatprep.subr.mxu0 0.0
        %617 = vmatpush2.msra.mxu0 0.0
        %618 = vmatprep.subr.mxu0 0.0
        %619 = vmatpush2.msra.mxu0 0.0
        %620 = vmatprep.subr.mxu0 0.0
        %621 = vmatpush2.msra.mxu0 0.0
        %622 = vmatprep.subr.mxu0 0.0
        %623 = vmatpush2.msra.mxu0 0.0
        %624 = vmatprep.subr.mxu0 0.0
        %625 = vmatpush2.msra.mxu0 0.0
        %626 = vmatprep.subr.mxu0 0.0
        %627 = vmatpush2.msra.mxu0 0.0
        %628 = vmatprep.subr.mxu0 0.0
        %629 = vmatpush2.msra.mxu0 0.0
        %630 = vmatprep.subr.mxu0 0.0
        %631 = vmatpush2.msra.mxu0 0.0
        %632 = vmatprep.mubr.f32.mxu0 0.0
        %633 = vmatmul.mubr.f32.gmra.mxu0 %v552
        %v634 = vpop.f32.mrf.mxu0
        %v635 = vadd.f32 %v514, %v634
        %v636 = vpop.f32.mrf.mxu0
        %637 = vmatprep.mubr.f32.mxu0 0.0
        %638 = vmatmul.mubr.f32.gmra.mxu0 %v554
        %v639 = vpop.f32.mrf.mxu0
        %v640 = vadd.f32 %v519, %v639
        %v641 = vpop.f32.mrf.mxu0
        %642 = vmatprep.mubr.f32.mxu0 0.0
        %643 = vmatmul.mubr.f32.gmra.mxu0 %v556
        %v644 = vpop.f32.mrf.mxu0
        %v645 = vadd.f32 %v524, %v644
        %v646 = vpop.f32.mrf.mxu0
        %647 = vmatprep.mubr.f32.mxu0 0.0
        %648 = vmatmul.mubr.f32.gmra.mxu0 %v558
        %v649 = vpop.f32.mrf.mxu0
        %v650 = vadd.f32 %v529, %v649
        %v651 = vpop.f32.mrf.mxu0
        %652 = vmatprep.mubr.f32.mxu0 0.0
        %653 = vmatmul.mubr.f32.gmra.mxu0 %v560
        %v654 = vpop.f32.mrf.mxu0
        %v655 = vadd.f32 %v534, %v654
        %v656 = vpop.f32.mrf.mxu0
        %657 = vmatprep.mubr.f32.mxu0 0.0
        %658 = vmatmul.mubr.f32.gmra.mxu0 %v562
        %v659 = vpop.f32.mrf.mxu0
        %v660 = vadd.f32 %v539, %v659
        %v661 = vpop.f32.mrf.mxu0
        %662 = vmatprep.mubr.f32.mxu0 0.0
        %663 = vmatmul.mubr.f32.gmra.mxu0 %v564
        %v664 = vpop.f32.mrf.mxu0
        %v665 = vadd.f32 %v544, %v664
        %v666 = vpop.f32.mrf.mxu0
        %667 = vmatprep.mubr.f32.mxu0 0.0
        %668 = vmatmul.mubr.f32.gmra.mxu0 %v566
        %v669 = vpop.f32.mrf.mxu0
        %v670 = vadd.f32 %v549, %v669
        %v671 = vpop.f32.mrf.mxu0
        %672 = vdwg.mxu0
        %s673 = scalar_lea.vmem %s326, 8
        %v674 = vld [vmem:[%s673] sm:$0xf]
        %v675 = vld [vmem:[%s673 + $0x10] sm:$0xf]
        %v676 = vld [vmem:[%s673 + $0x20] sm:$0xf]
        %v677 = vld [vmem:[%s673 + $0x30] sm:$0xf]
        %v678 = vld [vmem:[%s673 + $0x40] sm:$0xf]
        %v679 = vld [vmem:[%s673 + $0x50] sm:$0xf]
        %v680 = vld [vmem:[%s673 + $0x60] sm:$0xf]
        %v681 = vld [vmem:[%s673 + $0x70] sm:$0xf]
        %v682 = vunpack.c.l.bf16 %v674
        %v683 = vunpack.c.l.bf16 %v675
        %v684 = vunpack.c.l.bf16 %v676
        %v685 = vunpack.c.l.bf16 %v677
        %v686 = vunpack.c.l.bf16 %v678
        %v687 = vunpack.c.l.bf16 %v679
        %v688 = vunpack.c.l.bf16 %v680
        %v689 = vunpack.c.l.bf16 %v681
        %s690 = scalar_lea.vmem %s3, 16
        %v691 = vld [vmem:[%s690] sm:$0xff]
        %v693 = vsel %vm430, %v682, 0
        %v696 = vsel %vm430, %v683, 0
        %v699 = vsel %vm430, %v684, 0
        %v702 = vsel %vm430, %v685, 0
        %v705 = vsel %vm430, %v686, 0
        %v708 = vsel %vm430, %v687, 0
        %v711 = vsel %vm430, %v688, 0
        %v714 = vsel %vm430, %v689, 0
        %716 = vmatprep.subr.mxu0 0.0
        %717 = vmatpush1.msra.mxu0 0.0
        %718 = vmatprep.subr.mxu0 0.0
        %719 = vmatpush1.msra.mxu0 0.0
        %720 = vmatprep.subr.mxu0 0.0
        %721 = vmatpush1.msra.mxu0 0.0
        %722 = vmatprep.subr.mxu0 0.0
        %723 = vmatpush1.msra.mxu0 0.0
        %724 = vmatprep.subr.mxu0 0.0
        %725 = vmatpush1.msra.mxu0 0.0
        %726 = vmatprep.subr.mxu0 0.0
        %727 = vmatpush1.msra.mxu0 0.0
        %728 = vmatprep.subr.mxu0 0.0
        %729 = vmatpush1.msra.mxu0 0.0
        %730 = vmatprep.subr.mxu0 0.0
        %731 = vmatpush1.msra.mxu0 0.0
        %732 = vmatprep.subr.mxu0 0.0
        %733 = vmatpush1.msra.mxu0 0.0
        %734 = vmatprep.subr.mxu0 0.0
        %735 = vmatpush1.msra.mxu0 0.0
        %736 = vmatprep.subr.mxu0 0.0
        %737 = vmatpush1.msra.mxu0 0.0
        %738 = vmatprep.subr.mxu0 0.0
        %739 = vmatpush1.msra.mxu0 0.0
        %740 = vmatprep.subr.mxu0 0.0
        %741 = vmatpush1.msra.mxu0 0.0
        %742 = vmatprep.subr.mxu0 0.0
        %743 = vmatpush1.msra.mxu0 0.0
        %744 = vmatprep.subr.mxu0 0.0
        %745 = vmatpush1.msra.mxu0 0.0
        %746 = vmatprep.subr.mxu0 0.0
        %747 = vmatpush1.msra.mxu0 %v691
        %748 = vmatprep.subr.mxu0 0.0
        %749 = vmatpush2.msra.mxu0 0.0
        %750 = vmatprep.subr.mxu0 0.0
        %751 = vmatpush2.msra.mxu0 0.0
        %752 = vmatprep.subr.mxu0 0.0
        %753 = vmatpush2.msra.mxu0 0.0
        %754 = vmatprep.subr.mxu0 0.0
        %755 = vmatpush2.msra.mxu0 0.0
        %756 = vmatprep.subr.mxu0 0.0
        %757 = vmatpush2.msra.mxu0 0.0
        %758 = vmatprep.subr.mxu0 0.0
        %759 = vmatpush2.msra.mxu0 0.0
        %760 = vmatprep.subr.mxu0 0.0
        %761 = vmatpush2.msra.mxu0 0.0
        %762 = vmatprep.subr.mxu0 0.0
        %763 = vmatpush2.msra.mxu0 0.0
        %764 = vmatprep.subr.mxu0 0.0
        %765 = vmatpush2.msra.mxu0 0.0
        %766 = vmatprep.subr.mxu0 0.0
        %767 = vmatpush2.msra.mxu0 0.0
        %768 = vmatprep.subr.mxu0 0.0
        %769 = vmatpush2.msra.mxu0 0.0
        %770 = vmatprep.subr.mxu0 0.0
        %771 = vmatpush2.msra.mxu0 0.0
        %772 = vmatprep.subr.mxu0 0.0
        %773 = vmatpush2.msra.mxu0 0.0
        %774 = vmatprep.subr.mxu0 0.0
        %775 = vmatpush2.msra.mxu0 0.0
        %776 = vmatprep.subr.mxu0 0.0
        %777 = vmatpush2.msra.mxu0 0.0
        %778 = vmatprep.subr.mxu0 0.0
        %779 = vmatpush2.msra.mxu0 0.0
        %780 = vmatprep.mubr.f32.mxu0 0.0
        %781 = vmatmul.mubr.f32.gmra.mxu0 %v693
        %v782 = vpop.f32.mrf.mxu0
        %v783 = vadd.f32 0.0, %v782
        %v784 = vpop.f32.mrf.mxu0
        %785 = vmatprep.mubr.f32.mxu0 0.0
        %786 = vmatmul.mubr.f32.gmra.mxu0 %v696
        %v787 = vpop.f32.mrf.mxu0
        %v788 = vadd.f32 0.0, %v787
        %v789 = vpop.f32.mrf.mxu0
        %790 = vmatprep.mubr.f32.mxu0 0.0
        %791 = vmatmul.mubr.f32.gmra.mxu0 %v699
        %v792 = vpop.f32.mrf.mxu0
        %v793 = vadd.f32 0.0, %v792
        %v794 = vpop.f32.mrf.mxu0
        %795 = vmatprep.mubr.f32.mxu0 0.0
        %796 = vmatmul.mubr.f32.gmra.mxu0 %v702
        %v797 = vpop.f32.mrf.mxu0
        %v798 = vadd.f32 0.0, %v797
        %v799 = vpop.f32.mrf.mxu0
        %800 = vmatprep.mubr.f32.mxu0 0.0
        %801 = vmatmul.mubr.f32.gmra.mxu0 %v705
        %v802 = vpop.f32.mrf.mxu0
        %v803 = vadd.f32 0.0, %v802
        %v804 = vpop.f32.mrf.mxu0
        %805 = vmatprep.mubr.f32.mxu0 0.0
        %806 = vmatmul.mubr.f32.gmra.mxu0 %v708
        %v807 = vpop.f32.mrf.mxu0
        %v808 = vadd.f32 0.0, %v807
        %v809 = vpop.f32.mrf.mxu0
        %810 = vmatprep.mubr.f32.mxu0 0.0
        %811 = vmatmul.mubr.f32.gmra.mxu0 %v711
        %v812 = vpop.f32.mrf.mxu0
        %v813 = vadd.f32 0.0, %v812
        %v814 = vpop.f32.mrf.mxu0
        %815 = vmatprep.mubr.f32.mxu0 0.0
        %816 = vmatmul.mubr.f32.gmra.mxu0 %v714
        %v817 = vpop.f32.mrf.mxu0
        %v818 = vadd.f32 0.0, %v817
        %v819 = vpop.f32.mrf.mxu0
        %820 = vdwg.mxu0
        %v821 = vadd.f32 %v635, %v783
        %v822 = vadd.f32 %v640, %v788
        %v823 = vadd.f32 %v645, %v793
        %v824 = vadd.f32 %v650, %v798
        %v825 = vadd.f32 %v655, %v803
        %v826 = vadd.f32 %v660, %v808
        %v827 = vadd.f32 %v665, %v813
        %v828 = vadd.f32 %v670, %v818
        %v829 = vld [vmem:[%s673] sm:$0xf]
        %v830 = vld [vmem:[%s673 + $0x4] sm:$0x1]
        %v831 = vld [vmem:[%s673 + $0x10] sm:$0xf]
        %v832 = vld [vmem:[%s673 + $0x14] sm:$0x1]
        %v833 = vld [vmem:[%s673 + $0x20] sm:$0xf]
        %v834 = vld [vmem:[%s673 + $0x24] sm:$0x1]
        %v835 = vld [vmem:[%s673 + $0x30] sm:$0xf]
        %v836 = vld [vmem:[%s673 + $0x34] sm:$0x1]
        %v837 = vld [vmem:[%s673 + $0x40] sm:$0xf]
        %v838 = vld [vmem:[%s673 + $0x44] sm:$0x1]
        %v839 = vld [vmem:[%s673 + $0x50] sm:$0xf]
        %v840 = vld [vmem:[%s673 + $0x54] sm:$0x1]
        %v841 = vld [vmem:[%s673 + $0x60] sm:$0xf]
        %v842 = vld [vmem:[%s673 + $0x64] sm:$0x1]
        %v843 = vld [vmem:[%s673 + $0x70] sm:$0xf]
        %v844 = vld [vmem:[%s673 + $0x74] sm:$0x1]
        %v845 = vunpack.c.l.bf16 %v829
        %v846 = vunpack.c.l.bf16 %v830
        %v847 = vunpack.c.l.bf16 %v831
        %v848 = vunpack.c.l.bf16 %v832
        %v849 = vunpack.c.l.bf16 %v833
        %v850 = vunpack.c.l.bf16 %v834
        %v851 = vunpack.c.l.bf16 %v835
        %v852 = vunpack.c.l.bf16 %v836
        %v853 = vunpack.c.l.bf16 %v837
        %v854 = vunpack.c.l.bf16 %v838
        %v855 = vunpack.c.l.bf16 %v839
        %v856 = vunpack.c.l.bf16 %v840
        %v857 = vunpack.c.l.bf16 %v841
        %v858 = vunpack.c.l.bf16 %v842
        %v859 = vunpack.c.l.bf16 %v843
        %v860 = vunpack.c.l.bf16 %v844
        %v877 = vrot.slane %v845, 1
        %v878 = vrot.slane %v846, 1
        %v879 = vsel %vm403, %v877, %v878
        %v880 = vrot.slane %v847, 1
        %v881 = vrot.slane %v848, 1
        %v882 = vsel %vm403, %v880, %v881
        %v883 = vrot.slane %v849, 1
        %v884 = vrot.slane %v850, 1
        %v885 = vsel %vm403, %v883, %v884
        %v886 = vrot.slane %v851, 1
        %v887 = vrot.slane %v852, 1
        %v888 = vsel %vm403, %v886, %v887
        %v889 = vrot.slane %v853, 1
        %v890 = vrot.slane %v854, 1
        %v891 = vsel %vm403, %v889, %v890
        %v892 = vrot.slane %v855, 1
        %v893 = vrot.slane %v856, 1
        %v894 = vsel %vm403, %v892, %v893
        %v895 = vrot.slane %v857, 1
        %v896 = vrot.slane %v858, 1
        %v897 = vsel %vm403, %v895, %v896
        %v898 = vrot.slane %v859, 1
        %v899 = vrot.slane %v860, 1
        %v900 = vsel %vm403, %v898, %v899
        %s901 = scalar_lea.vmem %s3, 24
        %v902 = vld [vmem:[%s901] sm:$0xff]
        %v903 = vsel %vm430, %v879, 0
        %v905 = vsel %vm430, %v882, 0
        %v907 = vsel %vm430, %v885, 0
        %v909 = vsel %vm430, %v888, 0
        %v911 = vsel %vm430, %v891, 0
        %v913 = vsel %vm430, %v894, 0
        %v915 = vsel %vm430, %v897, 0
        %v917 = vsel %vm430, %v900, 0
        %919 = vmatprep.subr.mxu0 0.0
        %920 = vmatpush1.msra.mxu0 0.0
        %921 = vmatprep.subr.mxu0 0.0
        %922 = vmatpush1.msra.mxu0 0.0
        %923 = vmatprep.subr.mxu0 0.0
        %924 = vmatpush1.msra.mxu0 0.0
        %925 = vmatprep.subr.mxu0 0.0
        %926 = vmatpush1.msra.mxu0 0.0
        %927 = vmatprep.subr.mxu0 0.0
        %928 = vmatpush1.msra.mxu0 0.0
        %929 = vmatprep.subr.mxu0 0.0
        %930 = vmatpush1.msra.mxu0 0.0
        %931 = vmatprep.subr.mxu0 0.0
        %932 = vmatpush1.msra.mxu0 0.0
        %933 = vmatprep.subr.mxu0 0.0
        %934 = vmatpush1.msra.mxu0 0.0
        %935 = vmatprep.subr.mxu0 0.0
        %936 = vmatpush1.msra.mxu0 0.0
        %937 = vmatprep.subr.mxu0 0.0
        %938 = vmatpush1.msra.mxu0 0.0
        %939 = vmatprep.subr.mxu0 0.0
        %940 = vmatpush1.msra.mxu0 0.0
        %941 = vmatprep.subr.mxu0 0.0
        %942 = vmatpush1.msra.mxu0 0.0
        %943 = vmatprep.subr.mxu0 0.0
        %944 = vmatpush1.msra.mxu0 0.0
        %945 = vmatprep.subr.mxu0 0.0
        %946 = vmatpush1.msra.mxu0 0.0
        %947 = vmatprep.subr.mxu0 0.0
        %948 = vmatpush1.msra.mxu0 0.0
        %949 = vmatprep.subr.mxu0 0.0
        %950 = vmatpush1.msra.mxu0 %v902
        %951 = vmatprep.subr.mxu0 0.0
        %952 = vmatpush2.msra.mxu0 0.0
        %953 = vmatprep.subr.mxu0 0.0
        %954 = vmatpush2.msra.mxu0 0.0
        %955 = vmatprep.subr.mxu0 0.0
        %956 = vmatpush2.msra.mxu0 0.0
        %957 = vmatprep.subr.mxu0 0.0
        %958 = vmatpush2.msra.mxu0 0.0
        %959 = vmatprep.subr.mxu0 0.0
        %960 = vmatpush2.msra.mxu0 0.0
        %961 = vmatprep.subr.mxu0 0.0
        %962 = vmatpush2.msra.mxu0 0.0
        %963 = vmatprep.subr.mxu0 0.0
        %964 = vmatpush2.msra.mxu0 0.0
        %965 = vmatprep.subr.mxu0 0.0
        %966 = vmatpush2.msra.mxu0 0.0
        %967 = vmatprep.subr.mxu0 0.0
        %968 = vmatpush2.msra.mxu0 0.0
        %969 = vmatprep.subr.mxu0 0.0
        %970 = vmatpush2.msra.mxu0 0.0
        %971 = vmatprep.subr.mxu0 0.0
        %972 = vmatpush2.msra.mxu0 0.0
        %973 = vmatprep.subr.mxu0 0.0
        %974 = vmatpush2.msra.mxu0 0.0
        %975 = vmatprep.subr.mxu0 0.0
        %976 = vmatpush2.msra.mxu0 0.0
        %977 = vmatprep.subr.mxu0 0.0
        %978 = vmatpush2.msra.mxu0 0.0
        %979 = vmatprep.subr.mxu0 0.0
        %980 = vmatpush2.msra.mxu0 0.0
        %981 = vmatprep.subr.mxu0 0.0
        %982 = vmatpush2.msra.mxu0 0.0
        %983 = vmatprep.mubr.f32.mxu0 0.0
        %984 = vmatmul.mubr.f32.gmra.mxu0 %v903
        %v985 = vpop.f32.mrf.mxu0
        %v986 = vadd.f32 0.0, %v985
        %v987 = vpop.f32.mrf.mxu0
        %988 = vmatprep.mubr.f32.mxu0 0.0
        %989 = vmatmul.mubr.f32.gmra.mxu0 %v905
        %v990 = vpop.f32.mrf.mxu0
        %v991 = vadd.f32 0.0, %v990
        %v992 = vpop.f32.mrf.mxu0
        %993 = vmatprep.mubr.f32.mxu0 0.0
        %994 = vmatmul.mubr.f32.gmra.mxu0 %v907
        %v995 = vpop.f32.mrf.mxu0
        %v996 = vadd.f32 0.0, %v995
        %v997 = vpop.f32.mrf.mxu0
        %998 = vmatprep.mubr.f32.mxu0 0.0
        %999 = vmatmul.mubr.f32.gmra.mxu0 %v909
        %v1000 = vpop.f32.mrf.mxu0
        %v1001 = vadd.f32 0.0, %v1000
        %v1002 = vpop.f32.mrf.mxu0
        %1003 = vmatprep.mubr.f32.mxu0 0.0
        %1004 = vmatmul.mubr.f32.gmra.mxu0 %v911
        %v1005 = vpop.f32.mrf.mxu0
        %v1006 = vadd.f32 0.0, %v1005
        %v1007 = vpop.f32.mrf.mxu0
        %1008 = vmatprep.mubr.f32.mxu0 0.0
        %1009 = vmatmul.mubr.f32.gmra.mxu0 %v913
        %v1010 = vpop.f32.mrf.mxu0
        %v1011 = vadd.f32 0.0, %v1010
        %v1012 = vpop.f32.mrf.mxu0
        %1013 = vmatprep.mubr.f32.mxu0 0.0
        %1014 = vmatmul.mubr.f32.gmra.mxu0 %v915
        %v1015 = vpop.f32.mrf.mxu0
        %v1016 = vadd.f32 0.0, %v1015
        %v1017 = vpop.f32.mrf.mxu0
        %1018 = vmatprep.mubr.f32.mxu0 0.0
        %1019 = vmatmul.mubr.f32.gmra.mxu0 %v917
        %v1020 = vpop.f32.mrf.mxu0
        %v1021 = vadd.f32 0.0, %v1020
        %v1022 = vpop.f32.mrf.mxu0
        %1023 = vdwg.mxu0
        %v1024 = vadd.f32 %v821, %v986
        %v1025 = vadd.f32 %v822, %v991
        %v1026 = vadd.f32 %v823, %v996
        %v1027 = vadd.f32 %v824, %v1001
        %v1028 = vadd.f32 %v825, %v1006
        %v1029 = vadd.f32 %v826, %v1011
        %v1030 = vadd.f32 %v827, %v1016
        %v1031 = vadd.f32 %v828, %v1021
        %s1032 = scalar_lea.vmem %s326, 16
        %v1033 = vld [vmem:[%s1032] sm:$0xf]
        %v1034 = vld [vmem:[%s1032 + $0x10] sm:$0xf]
        %v1035 = vld [vmem:[%s1032 + $0x20] sm:$0xf]
        %v1036 = vld [vmem:[%s1032 + $0x30] sm:$0xf]
        %v1037 = vld [vmem:[%s1032 + $0x40] sm:$0xf]
        %v1038 = vld [vmem:[%s1032 + $0x50] sm:$0xf]
        %v1039 = vld [vmem:[%s1032 + $0x60] sm:$0xf]
        %v1040 = vld [vmem:[%s1032 + $0x70] sm:$0xf]
        %v1041 = vunpack.c.l.bf16 %v1033
        %v1042 = vunpack.c.l.bf16 %v1034
        %v1043 = vunpack.c.l.bf16 %v1035
        %v1044 = vunpack.c.l.bf16 %v1036
        %v1045 = vunpack.c.l.bf16 %v1037
        %v1046 = vunpack.c.l.bf16 %v1038
        %v1047 = vunpack.c.l.bf16 %v1039
        %v1048 = vunpack.c.l.bf16 %v1040
        %s1049 = scalar_lea.vmem %s3, 32
        %v1050 = vld [vmem:[%s1049] sm:$0xff]
        %v1052 = vsel %vm430, %v1041, 0
        %v1055 = vsel %vm430, %v1042, 0
        %v1058 = vsel %vm430, %v1043, 0
        %v1061 = vsel %vm430, %v1044, 0
        %v1064 = vsel %vm430, %v1045, 0
        %v1067 = vsel %vm430, %v1046, 0
        %v1070 = vsel %vm430, %v1047, 0
        %v1073 = vsel %vm430, %v1048, 0
        %1075 = vmatprep.subr.mxu0 0.0
        %1076 = vmatpush1.msra.mxu0 0.0
        %1077 = vmatprep.subr.mxu0 0.0
        %1078 = vmatpush1.msra.mxu0 0.0
        %1079 = vmatprep.subr.mxu0 0.0
        %1080 = vmatpush1.msra.mxu0 0.0
        %1081 = vmatprep.subr.mxu0 0.0
        %1082 = vmatpush1.msra.mxu0 0.0
        %1083 = vmatprep.subr.mxu0 0.0
        %1084 = vmatpush1.msra.mxu0 0.0
        %1085 = vmatprep.subr.mxu0 0.0
        %1086 = vmatpush1.msra.mxu0 0.0
        %1087 = vmatprep.subr.mxu0 0.0
        %1088 = vmatpush1.msra.mxu0 0.0
        %1089 = vmatprep.subr.mxu0 0.0
        %1090 = vmatpush1.msra.mxu0 0.0
        %1091 = vmatprep.subr.mxu0 0.0
        %1092 = vmatpush1.msra.mxu0 0.0
        %1093 = vmatprep.subr.mxu0 0.0
        %1094 = vmatpush1.msra.mxu0 0.0
        %1095 = vmatprep.subr.mxu0 0.0
        %1096 = vmatpush1.msra.mxu0 0.0
        %1097 = vmatprep.subr.mxu0 0.0
        %1098 = vmatpush1.msra.mxu0 0.0
        %1099 = vmatprep.subr.mxu0 0.0
        %1100 = vmatpush1.msra.mxu0 0.0
        %1101 = vmatprep.subr.mxu0 0.0
        %1102 = vmatpush1.msra.mxu0 0.0
        %1103 = vmatprep.subr.mxu0 0.0
        %1104 = vmatpush1.msra.mxu0 0.0
        %1105 = vmatprep.subr.mxu0 0.0
        %1106 = vmatpush1.msra.mxu0 %v1050
        %1107 = vmatprep.subr.mxu0 0.0
        %1108 = vmatpush2.msra.mxu0 0.0
        %1109 = vmatprep.subr.mxu0 0.0
        %1110 = vmatpush2.msra.mxu0 0.0
        %1111 = vmatprep.subr.mxu0 0.0
        %1112 = vmatpush2.msra.mxu0 0.0
        %1113 = vmatprep.subr.mxu0 0.0
        %1114 = vmatpush2.msra.mxu0 0.0
        %1115 = vmatprep.subr.mxu0 0.0
        %1116 = vmatpush2.msra.mxu0 0.0
        %1117 = vmatprep.subr.mxu0 0.0
        %1118 = vmatpush2.msra.mxu0 0.0
        %1119 = vmatprep.subr.mxu0 0.0
        %1120 = vmatpush2.msra.mxu0 0.0
        %1121 = vmatprep.subr.mxu0 0.0
        %1122 = vmatpush2.msra.mxu0 0.0
        %1123 = vmatprep.subr.mxu0 0.0
        %1124 = vmatpush2.msra.mxu0 0.0
        %1125 = vmatprep.subr.mxu0 0.0
        %1126 = vmatpush2.msra.mxu0 0.0
        %1127 = vmatprep.subr.mxu0 0.0
        %1128 = vmatpush2.msra.mxu0 0.0
        %1129 = vmatprep.subr.mxu0 0.0
        %1130 = vmatpush2.msra.mxu0 0.0
        %1131 = vmatprep.subr.mxu0 0.0
        %1132 = vmatpush2.msra.mxu0 0.0
        %1133 = vmatprep.subr.mxu0 0.0
        %1134 = vmatpush2.msra.mxu0 0.0
        %1135 = vmatprep.subr.mxu0 0.0
        %1136 = vmatpush2.msra.mxu0 0.0
        %1137 = vmatprep.subr.mxu0 0.0
        %1138 = vmatpush2.msra.mxu0 0.0
        %1139 = vmatprep.mubr.f32.mxu0 0.0
        %1140 = vmatmul.mubr.f32.gmra.mxu0 %v1052
        %v1141 = vpop.f32.mrf.mxu0
        %v1142 = vadd.f32 0.0, %v1141
        %v1143 = vpop.f32.mrf.mxu0
        %1144 = vmatprep.mubr.f32.mxu0 0.0
        %1145 = vmatmul.mubr.f32.gmra.mxu0 %v1055
        %v1146 = vpop.f32.mrf.mxu0
        %v1147 = vadd.f32 0.0, %v1146
        %v1148 = vpop.f32.mrf.mxu0
        %1149 = vmatprep.mubr.f32.mxu0 0.0
        %1150 = vmatmul.mubr.f32.gmra.mxu0 %v1058
        %v1151 = vpop.f32.mrf.mxu0
        %v1152 = vadd.f32 0.0, %v1151
        %v1153 = vpop.f32.mrf.mxu0
        %1154 = vmatprep.mubr.f32.mxu0 0.0
        %1155 = vmatmul.mubr.f32.gmra.mxu0 %v1061
        %v1156 = vpop.f32.mrf.mxu0
        %v1157 = vadd.f32 0.0, %v1156
        %v1158 = vpop.f32.mrf.mxu0
        %1159 = vmatprep.mubr.f32.mxu0 0.0
        %1160 = vmatmul.mubr.f32.gmra.mxu0 %v1064
        %v1161 = vpop.f32.mrf.mxu0
        %v1162 = vadd.f32 0.0, %v1161
        %v1163 = vpop.f32.mrf.mxu0
        %1164 = vmatprep.mubr.f32.mxu0 0.0
        %1165 = vmatmul.mubr.f32.gmra.mxu0 %v1067
        %v1166 = vpop.f32.mrf.mxu0
        %v1167 = vadd.f32 0.0, %v1166
        %v1168 = vpop.f32.mrf.mxu0
        %1169 = vmatprep.mubr.f32.mxu0 0.0
        %1170 = vmatmul.mubr.f32.gmra.mxu0 %v1070
        %v1171 = vpop.f32.mrf.mxu0
        %v1172 = vadd.f32 0.0, %v1171
        %v1173 = vpop.f32.mrf.mxu0
        %1174 = vmatprep.mubr.f32.mxu0 0.0
        %1175 = vmatmul.mubr.f32.gmra.mxu0 %v1073
        %v1176 = vpop.f32.mrf.mxu0
        %v1177 = vadd.f32 0.0, %v1176
        %v1178 = vpop.f32.mrf.mxu0
        %1179 = vdwg.mxu0
        %v1180 = vadd.f32 %v1024, %v1142
        %v1181 = vadd.f32 %v1025, %v1147
        %v1182 = vadd.f32 %v1026, %v1152
        %v1183 = vadd.f32 %v1027, %v1157
        %v1184 = vadd.f32 %v1028, %v1162
        %v1185 = vadd.f32 %v1029, %v1167
        %v1186 = vadd.f32 %v1030, %v1172
        %v1187 = vadd.f32 %v1031, %v1177
        %v1188 = vld [vmem:[%s1032] sm:$0xf]
        %v1189 = vld [vmem:[%s1032 + $0x4] sm:$0x1]
        %v1190 = vld [vmem:[%s1032 + $0x10] sm:$0xf]
        %v1191 = vld [vmem:[%s1032 + $0x14] sm:$0x1]
        %v1192 = vld [vmem:[%s1032 + $0x20] sm:$0xf]
        %v1193 = vld [vmem:[%s1032 + $0x24] sm:$0x1]
        %v1194 = vld [vmem:[%s1032 + $0x30] sm:$0xf]
        %v1195 = vld [vmem:[%s1032 + $0x34] sm:$0x1]
        %v1196 = vld [vmem:[%s1032 + $0x40] sm:$0xf]
        %v1197 = vld [vmem:[%s1032 + $0x44] sm:$0x1]
        %v1198 = vld [vmem:[%s1032 + $0x50] sm:$0xf]
        %v1199 = vld [vmem:[%s1032 + $0x54] sm:$0x1]
        %v1200 = vld [vmem:[%s1032 + $0x60] sm:$0xf]
        %v1201 = vld [vmem:[%s1032 + $0x64] sm:$0x1]
        %v1202 = vld [vmem:[%s1032 + $0x70] sm:$0xf]
        %v1203 = vld [vmem:[%s1032 + $0x74] sm:$0x1]
        %v1204 = vunpack.c.l.bf16 %v1188
        %v1205 = vunpack.c.l.bf16 %v1189
        %v1206 = vunpack.c.l.bf16 %v1190
        %v1207 = vunpack.c.l.bf16 %v1191
        %v1208 = vunpack.c.l.bf16 %v1192
        %v1209 = vunpack.c.l.bf16 %v1193
        %v1210 = vunpack.c.l.bf16 %v1194
        %v1211 = vunpack.c.l.bf16 %v1195
        %v1212 = vunpack.c.l.bf16 %v1196
        %v1213 = vunpack.c.l.bf16 %v1197
        %v1214 = vunpack.c.l.bf16 %v1198
        %v1215 = vunpack.c.l.bf16 %v1199
        %v1216 = vunpack.c.l.bf16 %v1200
        %v1217 = vunpack.c.l.bf16 %v1201
        %v1218 = vunpack.c.l.bf16 %v1202
        %v1219 = vunpack.c.l.bf16 %v1203
        %v1236 = vrot.slane %v1204, 1
        %v1237 = vrot.slane %v1205, 1
        %v1238 = vsel %vm403, %v1236, %v1237
        %v1239 = vrot.slane %v1206, 1
        %v1240 = vrot.slane %v1207, 1
        %v1241 = vsel %vm403, %v1239, %v1240
        %v1242 = vrot.slane %v1208, 1
        %v1243 = vrot.slane %v1209, 1
        %v1244 = vsel %vm403, %v1242, %v1243
        %v1245 = vrot.slane %v1210, 1
        %v1246 = vrot.slane %v1211, 1
        %v1247 = vsel %vm403, %v1245, %v1246
        %v1248 = vrot.slane %v1212, 1
        %v1249 = vrot.slane %v1213, 1
        %v1250 = vsel %vm403, %v1248, %v1249
        %v1251 = vrot.slane %v1214, 1
        %v1252 = vrot.slane %v1215, 1
        %v1253 = vsel %vm403, %v1251, %v1252
        %v1254 = vrot.slane %v1216, 1
        %v1255 = vrot.slane %v1217, 1
        %v1256 = vsel %vm403, %v1254, %v1255
        %v1257 = vrot.slane %v1218, 1
        %v1258 = vrot.slane %v1219, 1
        %v1259 = vsel %vm403, %v1257, %v1258
        %s1260 = scalar_lea.vmem %s3, 40
        %v1261 = vld [vmem:[%s1260] sm:$0xff]
        %v1262 = vsel %vm430, %v1238, 0
        %v1264 = vsel %vm430, %v1241, 0
        %v1266 = vsel %vm430, %v1244, 0
        %v1268 = vsel %vm430, %v1247, 0
        %v1270 = vsel %vm430, %v1250, 0
        %v1272 = vsel %vm430, %v1253, 0
        %v1274 = vsel %vm430, %v1256, 0
        %v1276 = vsel %vm430, %v1259, 0
        %1278 = vmatprep.subr.mxu0 0.0
        %1279 = vmatpush1.msra.mxu0 0.0
        %1280 = vmatprep.subr.mxu0 0.0
        %1281 = vmatpush1.msra.mxu0 0.0
        %1282 = vmatprep.subr.mxu0 0.0
        %1283 = vmatpush1.msra.mxu0 0.0
        %1284 = vmatprep.subr.mxu0 0.0
        %1285 = vmatpush1.msra.mxu0 0.0
        %1286 = vmatprep.subr.mxu0 0.0
        %1287 = vmatpush1.msra.mxu0 0.0
        %1288 = vmatprep.subr.mxu0 0.0
        %1289 = vmatpush1.msra.mxu0 0.0
        %1290 = vmatprep.subr.mxu0 0.0
        %1291 = vmatpush1.msra.mxu0 0.0
        %1292 = vmatprep.subr.mxu0 0.0
        %1293 = vmatpush1.msra.mxu0 0.0
        %1294 = vmatprep.subr.mxu0 0.0
        %1295 = vmatpush1.msra.mxu0 0.0
        %1296 = vmatprep.subr.mxu0 0.0
        %1297 = vmatpush1.msra.mxu0 0.0
        %1298 = vmatprep.subr.mxu0 0.0
        %1299 = vmatpush1.msra.mxu0 0.0
        %1300 = vmatprep.subr.mxu0 0.0
        %1301 = vmatpush1.msra.mxu0 0.0
        %1302 = vmatprep.subr.mxu0 0.0
        %1303 = vmatpush1.msra.mxu0 0.0
        %1304 = vmatprep.subr.mxu0 0.0
        %1305 = vmatpush1.msra.mxu0 0.0
        %1306 = vmatprep.subr.mxu0 0.0
        %1307 = vmatpush1.msra.mxu0 0.0
        %1308 = vmatprep.subr.mxu0 0.0
        %1309 = vmatpush1.msra.mxu0 %v1261
        %1310 = vmatprep.subr.mxu0 0.0
        %1311 = vmatpush2.msra.mxu0 0.0
        %1312 = vmatprep.subr.mxu0 0.0
        %1313 = vmatpush2.msra.mxu0 0.0
        %1314 = vmatprep.subr.mxu0 0.0
        %1315 = vmatpush2.msra.mxu0 0.0
        %1316 = vmatprep.subr.mxu0 0.0
        %1317 = vmatpush2.msra.mxu0 0.0
        %1318 = vmatprep.subr.mxu0 0.0
        %1319 = vmatpush2.msra.mxu0 0.0
        %1320 = vmatprep.subr.mxu0 0.0
        %1321 = vmatpush2.msra.mxu0 0.0
        %1322 = vmatprep.subr.mxu0 0.0
        %1323 = vmatpush2.msra.mxu0 0.0
        %1324 = vmatprep.subr.mxu0 0.0
        %1325 = vmatpush2.msra.mxu0 0.0
        %1326 = vmatprep.subr.mxu0 0.0
        %1327 = vmatpush2.msra.mxu0 0.0
        %1328 = vmatprep.subr.mxu0 0.0
        %1329 = vmatpush2.msra.mxu0 0.0
        %1330 = vmatprep.subr.mxu0 0.0
        %1331 = vmatpush2.msra.mxu0 0.0
        %1332 = vmatprep.subr.mxu0 0.0
        %1333 = vmatpush2.msra.mxu0 0.0
        %1334 = vmatprep.subr.mxu0 0.0
        %1335 = vmatpush2.msra.mxu0 0.0
        %1336 = vmatprep.subr.mxu0 0.0
        %1337 = vmatpush2.msra.mxu0 0.0
        %1338 = vmatprep.subr.mxu0 0.0
        %1339 = vmatpush2.msra.mxu0 0.0
        %1340 = vmatprep.subr.mxu0 0.0
        %1341 = vmatpush2.msra.mxu0 0.0
        %1342 = vmatprep.mubr.f32.mxu0 0.0
        %1343 = vmatmul.mubr.f32.gmra.mxu0 %v1262
        %v1344 = vpop.f32.mrf.mxu0
        %v1345 = vadd.f32 0.0, %v1344
        %v1346 = vpop.f32.mrf.mxu0
        %1347 = vmatprep.mubr.f32.mxu0 0.0
        %1348 = vmatmul.mubr.f32.gmra.mxu0 %v1264
        %v1349 = vpop.f32.mrf.mxu0
        %v1350 = vadd.f32 0.0, %v1349
        %v1351 = vpop.f32.mrf.mxu0
        %1352 = vmatprep.mubr.f32.mxu0 0.0
        %1353 = vmatmul.mubr.f32.gmra.mxu0 %v1266
        %v1354 = vpop.f32.mrf.mxu0
        %v1355 = vadd.f32 0.0, %v1354
        %v1356 = vpop.f32.mrf.mxu0
        %1357 = vmatprep.mubr.f32.mxu0 0.0
        %1358 = vmatmul.mubr.f32.gmra.mxu0 %v1268
        %v1359 = vpop.f32.mrf.mxu0
        %v1360 = vadd.f32 0.0, %v1359
        %v1361 = vpop.f32.mrf.mxu0
        %1362 = vmatprep.mubr.f32.mxu0 0.0
        %1363 = vmatmul.mubr.f32.gmra.mxu0 %v1270
        %v1364 = vpop.f32.mrf.mxu0
        %v1365 = vadd.f32 0.0, %v1364
        %v1366 = vpop.f32.mrf.mxu0
        %1367 = vmatprep.mubr.f32.mxu0 0.0
        %1368 = vmatmul.mubr.f32.gmra.mxu0 %v1272
        %v1369 = vpop.f32.mrf.mxu0
        %v1370 = vadd.f32 0.0, %v1369
        %v1371 = vpop.f32.mrf.mxu0
        %1372 = vmatprep.mubr.f32.mxu0 0.0
        %1373 = vmatmul.mubr.f32.gmra.mxu0 %v1274
        %v1374 = vpop.f32.mrf.mxu0
        %v1375 = vadd.f32 0.0, %v1374
        %v1376 = vpop.f32.mrf.mxu0
        %1377 = vmatprep.mubr.f32.mxu0 0.0
        %1378 = vmatmul.mubr.f32.gmra.mxu0 %v1276
        %v1379 = vpop.f32.mrf.mxu0
        %v1380 = vadd.f32 0.0, %v1379
        %v1381 = vpop.f32.mrf.mxu0
        %1382 = vdwg.mxu0
        %v1383 = vadd.f32 %v1180, %v1345
        %v1384 = vadd.f32 %v1181, %v1350
        %v1385 = vadd.f32 %v1182, %v1355
        %v1386 = vadd.f32 %v1183, %v1360
        %v1387 = vadd.f32 %v1184, %v1365
        %v1388 = vadd.f32 %v1185, %v1370
        %v1389 = vadd.f32 %v1186, %v1375
        %v1390 = vadd.f32 %v1187, %v1380
        %v1391 = vld [vmem:[%s338] sm:$0xf]
        %v1392 = vld [vmem:[%s338 + $0x10] sm:$0xf]
        %v1393 = vld [vmem:[%s338 + $0x20] sm:$0xf]
        %v1394 = vld [vmem:[%s338 + $0x30] sm:$0xf]
        %v1395 = vld [vmem:[%s338 + $0x40] sm:$0xf]
        %v1396 = vld [vmem:[%s338 + $0x50] sm:$0xf]
        %v1397 = vld [vmem:[%s338 + $0x60] sm:$0xf]
        %v1398 = vld [vmem:[%s338 + $0x70] sm:$0xf]
        %v1399 = vunpack.c.l.bf16 %v1391
        %v1400 = vunpack.c.l.bf16 %v1392
        %v1401 = vunpack.c.l.bf16 %v1393
        %v1402 = vunpack.c.l.bf16 %v1394
        %v1403 = vunpack.c.l.bf16 %v1395
        %v1404 = vunpack.c.l.bf16 %v1396
        %v1405 = vunpack.c.l.bf16 %v1397
        %v1406 = vunpack.c.l.bf16 %v1398
        %s1407 = scalar_lea.vmem %s3, 48
        %v1408 = vld [vmem:[%s1407] sm:$0xff]
        %v1410 = vsel %vm430, %v1399, 0
        %v1413 = vsel %vm430, %v1400, 0
        %v1416 = vsel %vm430, %v1401, 0
        %v1419 = vsel %vm430, %v1402, 0
        %v1422 = vsel %vm430, %v1403, 0
        %v1425 = vsel %vm430, %v1404, 0
        %v1428 = vsel %vm430, %v1405, 0
        %v1431 = vsel %vm430, %v1406, 0
        %1433 = vmatprep.subr.mxu0 0.0
        %1434 = vmatpush1.msra.mxu0 0.0
        %1435 = vmatprep.subr.mxu0 0.0
        %1436 = vmatpush1.msra.mxu0 0.0
        %1437 = vmatprep.subr.mxu0 0.0
        %1438 = vmatpush1.msra.mxu0 0.0
        %1439 = vmatprep.subr.mxu0 0.0
        %1440 = vmatpush1.msra.mxu0 0.0
        %1441 = vmatprep.subr.mxu0 0.0
        %1442 = vmatpush1.msra.mxu0 0.0
        %1443 = vmatprep.subr.mxu0 0.0
        %1444 = vmatpush1.msra.mxu0 0.0
        %1445 = vmatprep.subr.mxu0 0.0
        %1446 = vmatpush1.msra.mxu0 0.0
        %1447 = vmatprep.subr.mxu0 0.0
        %1448 = vmatpush1.msra.mxu0 0.0
        %1449 = vmatprep.subr.mxu0 0.0
        %1450 = vmatpush1.msra.mxu0 0.0
        %1451 = vmatprep.subr.mxu0 0.0
        %1452 = vmatpush1.msra.mxu0 0.0
        %1453 = vmatprep.subr.mxu0 0.0
        %1454 = vmatpush1.msra.mxu0 0.0
        %1455 = vmatprep.subr.mxu0 0.0
        %1456 = vmatpush1.msra.mxu0 0.0
        %1457 = vmatprep.subr.mxu0 0.0
        %1458 = vmatpush1.msra.mxu0 0.0
        %1459 = vmatprep.subr.mxu0 0.0
        %1460 = vmatpush1.msra.mxu0 0.0
        %1461 = vmatprep.subr.mxu0 0.0
        %1462 = vmatpush1.msra.mxu0 0.0
        %1463 = vmatprep.subr.mxu0 0.0
        %1464 = vmatpush1.msra.mxu0 %v1408
        %1465 = vmatprep.subr.mxu0 0.0
        %1466 = vmatpush2.msra.mxu0 0.0
        %1467 = vmatprep.subr.mxu0 0.0
        %1468 = vmatpush2.msra.mxu0 0.0
        %1469 = vmatprep.subr.mxu0 0.0
        %1470 = vmatpush2.msra.mxu0 0.0
        %1471 = vmatprep.subr.mxu0 0.0
        %1472 = vmatpush2.msra.mxu0 0.0
        %1473 = vmatprep.subr.mxu0 0.0
        %1474 = vmatpush2.msra.mxu0 0.0
        %1475 = vmatprep.subr.mxu0 0.0
        %1476 = vmatpush2.msra.mxu0 0.0
        %1477 = vmatprep.subr.mxu0 0.0
        %1478 = vmatpush2.msra.mxu0 0.0
        %1479 = vmatprep.subr.mxu0 0.0
        %1480 = vmatpush2.msra.mxu0 0.0
        %1481 = vmatprep.subr.mxu0 0.0
        %1482 = vmatpush2.msra.mxu0 0.0
        %1483 = vmatprep.subr.mxu0 0.0
        %1484 = vmatpush2.msra.mxu0 0.0
        %1485 = vmatprep.subr.mxu0 0.0
        %1486 = vmatpush2.msra.mxu0 0.0
        %1487 = vmatprep.subr.mxu0 0.0
        %1488 = vmatpush2.msra.mxu0 0.0
        %1489 = vmatprep.subr.mxu0 0.0
        %1490 = vmatpush2.msra.mxu0 0.0
        %1491 = vmatprep.subr.mxu0 0.0
        %1492 = vmatpush2.msra.mxu0 0.0
        %1493 = vmatprep.subr.mxu0 0.0
        %1494 = vmatpush2.msra.mxu0 0.0
        %1495 = vmatprep.subr.mxu0 0.0
        %1496 = vmatpush2.msra.mxu0 0.0
        %1497 = vmatprep.mubr.f32.mxu0 0.0
        %1498 = vmatmul.mubr.f32.gmra.mxu0 %v1410
        %v1499 = vpop.f32.mrf.mxu0
        %v1500 = vadd.f32 0.0, %v1499
        %v1501 = vpop.f32.mrf.mxu0
        %1502 = vmatprep.mubr.f32.mxu0 0.0
        %1503 = vmatmul.mubr.f32.gmra.mxu0 %v1413
        %v1504 = vpop.f32.mrf.mxu0
        %v1505 = vadd.f32 0.0, %v1504
        %v1506 = vpop.f32.mrf.mxu0
        %1507 = vmatprep.mubr.f32.mxu0 0.0
        %1508 = vmatmul.mubr.f32.gmra.mxu0 %v1416
        %v1509 = vpop.f32.mrf.mxu0
        %v1510 = vadd.f32 0.0, %v1509
        %v1511 = vpop.f32.mrf.mxu0
        %1512 = vmatprep.mubr.f32.mxu0 0.0
        %1513 = vmatmul.mubr.f32.gmra.mxu0 %v1419
        %v1514 = vpop.f32.mrf.mxu0
        %v1515 = vadd.f32 0.0, %v1514
        %v1516 = vpop.f32.mrf.mxu0
        %1517 = vmatprep.mubr.f32.mxu0 0.0
        %1518 = vmatmul.mubr.f32.gmra.mxu0 %v1422
        %v1519 = vpop.f32.mrf.mxu0
        %v1520 = vadd.f32 0.0, %v1519
        %v1521 = vpop.f32.mrf.mxu0
        %1522 = vmatprep.mubr.f32.mxu0 0.0
        %1523 = vmatmul.mubr.f32.gmra.mxu0 %v1425
        %v1524 = vpop.f32.mrf.mxu0
        %v1525 = vadd.f32 0.0, %v1524
        %v1526 = vpop.f32.mrf.mxu0
        %1527 = vmatprep.mubr.f32.mxu0 0.0
        %1528 = vmatmul.mubr.f32.gmra.mxu0 %v1428
        %v1529 = vpop.f32.mrf.mxu0
        %v1530 = vadd.f32 0.0, %v1529
        %v1531 = vpop.f32.mrf.mxu0
        %1532 = vmatprep.mubr.f32.mxu0 0.0
        %1533 = vmatmul.mubr.f32.gmra.mxu0 %v1431
        %v1534 = vpop.f32.mrf.mxu0
        %v1535 = vadd.f32 0.0, %v1534
        %v1536 = vpop.f32.mrf.mxu0
        %1537 = vdwg.mxu0
        %v1538 = vadd.f32 %v1383, %v1500
        %v1539 = vadd.f32 %v1384, %v1505
        %v1540 = vadd.f32 %v1385, %v1510
        %v1541 = vadd.f32 %v1386, %v1515
        %v1542 = vadd.f32 %v1387, %v1520
        %v1543 = vadd.f32 %v1388, %v1525
        %v1544 = vadd.f32 %v1389, %v1530
        %v1545 = vadd.f32 %v1390, %v1535
        %v1546 = vld [vmem:[%s338] sm:$0xf]
        %v1547 = vld [vmem:[%s338 + $0x4] sm:$0x1]
        %v1548 = vld [vmem:[%s338 + $0x10] sm:$0xf]
        %v1549 = vld [vmem:[%s338 + $0x14] sm:$0x1]
        %v1550 = vld [vmem:[%s338 + $0x20] sm:$0xf]
        %v1551 = vld [vmem:[%s338 + $0x24] sm:$0x1]
        %v1552 = vld [vmem:[%s338 + $0x30] sm:$0xf]
        %v1553 = vld [vmem:[%s338 + $0x34] sm:$0x1]
        %v1554 = vld [vmem:[%s338 + $0x40] sm:$0xf]
        %v1555 = vld [vmem:[%s338 + $0x44] sm:$0x1]
        %v1556 = vld [vmem:[%s338 + $0x50] sm:$0xf]
        %v1557 = vld [vmem:[%s338 + $0x54] sm:$0x1]
        %v1558 = vld [vmem:[%s338 + $0x60] sm:$0xf]
        %v1559 = vld [vmem:[%s338 + $0x64] sm:$0x1]
        %v1560 = vld [vmem:[%s338 + $0x70] sm:$0xf]
        %v1561 = vld [vmem:[%s338 + $0x74] sm:$0x1]
        %v1562 = vunpack.c.l.bf16 %v1546
        %v1563 = vunpack.c.l.bf16 %v1547
        %v1564 = vunpack.c.l.bf16 %v1548
        %v1565 = vunpack.c.l.bf16 %v1549
        %v1566 = vunpack.c.l.bf16 %v1550
        %v1567 = vunpack.c.l.bf16 %v1551
        %v1568 = vunpack.c.l.bf16 %v1552
        %v1569 = vunpack.c.l.bf16 %v1553
        %v1570 = vunpack.c.l.bf16 %v1554
        %v1571 = vunpack.c.l.bf16 %v1555
        %v1572 = vunpack.c.l.bf16 %v1556
        %v1573 = vunpack.c.l.bf16 %v1557
        %v1574 = vunpack.c.l.bf16 %v1558
        %v1575 = vunpack.c.l.bf16 %v1559
        %v1576 = vunpack.c.l.bf16 %v1560
        %v1577 = vunpack.c.l.bf16 %v1561
        %v1594 = vrot.slane %v1562, 1
        %v1595 = vrot.slane %v1563, 1
        %v1596 = vsel %vm403, %v1594, %v1595
        %v1597 = vrot.slane %v1564, 1
        %v1598 = vrot.slane %v1565, 1
        %v1599 = vsel %vm403, %v1597, %v1598
        %v1600 = vrot.slane %v1566, 1
        %v1601 = vrot.slane %v1567, 1
        %v1602 = vsel %vm403, %v1600, %v1601
        %v1603 = vrot.slane %v1568, 1
        %v1604 = vrot.slane %v1569, 1
        %v1605 = vsel %vm403, %v1603, %v1604
        %v1606 = vrot.slane %v1570, 1
        %v1607 = vrot.slane %v1571, 1
        %v1608 = vsel %vm403, %v1606, %v1607
        %v1609 = vrot.slane %v1572, 1
        %v1610 = vrot.slane %v1573, 1
        %v1611 = vsel %vm403, %v1609, %v1610
        %v1612 = vrot.slane %v1574, 1
        %v1613 = vrot.slane %v1575, 1
        %v1614 = vsel %vm403, %v1612, %v1613
        %v1615 = vrot.slane %v1576, 1
        %v1616 = vrot.slane %v1577, 1
        %v1617 = vsel %vm403, %v1615, %v1616
        %s1618 = scalar_lea.vmem %s3, 56
        %v1619 = vld [vmem:[%s1618] sm:$0xff]
        %v1620 = vsel %vm430, %v1596, 0
        %v1622 = vsel %vm430, %v1599, 0
        %v1624 = vsel %vm430, %v1602, 0
        %v1626 = vsel %vm430, %v1605, 0
        %v1628 = vsel %vm430, %v1608, 0
        %v1630 = vsel %vm430, %v1611, 0
        %v1632 = vsel %vm430, %v1614, 0
        %v1634 = vsel %vm430, %v1617, 0
        %1636 = vmatprep.subr.mxu0 0.0
        %1637 = vmatpush1.msra.mxu0 0.0
        %1638 = vmatprep.subr.mxu0 0.0
        %1639 = vmatpush1.msra.mxu0 0.0
        %1640 = vmatprep.subr.mxu0 0.0
        %1641 = vmatpush1.msra.mxu0 0.0
        %1642 = vmatprep.subr.mxu0 0.0
        %1643 = vmatpush1.msra.mxu0 0.0
        %1644 = vmatprep.subr.mxu0 0.0
        %1645 = vmatpush1.msra.mxu0 0.0
        %1646 = vmatprep.subr.mxu0 0.0
        %1647 = vmatpush1.msra.mxu0 0.0
        %1648 = vmatprep.subr.mxu0 0.0
        %1649 = vmatpush1.msra.mxu0 0.0
        %1650 = vmatprep.subr.mxu0 0.0
        %1651 = vmatpush1.msra.mxu0 0.0
        %1652 = vmatprep.subr.mxu0 0.0
        %1653 = vmatpush1.msra.mxu0 0.0
        %1654 = vmatprep.subr.mxu0 0.0
        %1655 = vmatpush1.msra.mxu0 0.0
        %1656 = vmatprep.subr.mxu0 0.0
        %1657 = vmatpush1.msra.mxu0 0.0
        %1658 = vmatprep.subr.mxu0 0.0
        %1659 = vmatpush1.msra.mxu0 0.0
        %1660 = vmatprep.subr.mxu0 0.0
        %1661 = vmatpush1.msra.mxu0 0.0
        %1662 = vmatprep.subr.mxu0 0.0
        %1663 = vmatpush1.msra.mxu0 0.0
        %1664 = vmatprep.subr.mxu0 0.0
        %1665 = vmatpush1.msra.mxu0 0.0
        %1666 = vmatprep.subr.mxu0 0.0
        %1667 = vmatpush1.msra.mxu0 %v1619
        %1668 = vmatprep.subr.mxu0 0.0
        %1669 = vmatpush2.msra.mxu0 0.0
        %1670 = vmatprep.subr.mxu0 0.0
        %1671 = vmatpush2.msra.mxu0 0.0
        %1672 = vmatprep.subr.mxu0 0.0
        %1673 = vmatpush2.msra.mxu0 0.0
        %1674 = vmatprep.subr.mxu0 0.0
        %1675 = vmatpush2.msra.mxu0 0.0
        %1676 = vmatprep.subr.mxu0 0.0
        %1677 = vmatpush2.msra.mxu0 0.0
        %1678 = vmatprep.subr.mxu0 0.0
        %1679 = vmatpush2.msra.mxu0 0.0
        %1680 = vmatprep.subr.mxu0 0.0
        %1681 = vmatpush2.msra.mxu0 0.0
        %1682 = vmatprep.subr.mxu0 0.0
        %1683 = vmatpush2.msra.mxu0 0.0
        %1684 = vmatprep.subr.mxu0 0.0
        %1685 = vmatpush2.msra.mxu0 0.0
        %1686 = vmatprep.subr.mxu0 0.0
        %1687 = vmatpush2.msra.mxu0 0.0
        %1688 = vmatprep.subr.mxu0 0.0
        %1689 = vmatpush2.msra.mxu0 0.0
        %1690 = vmatprep.subr.mxu0 0.0
        %1691 = vmatpush2.msra.mxu0 0.0
        %1692 = vmatprep.subr.mxu0 0.0
        %1693 = vmatpush2.msra.mxu0 0.0
        %1694 = vmatprep.subr.mxu0 0.0
        %1695 = vmatpush2.msra.mxu0 0.0
        %1696 = vmatprep.subr.mxu0 0.0
        %1697 = vmatpush2.msra.mxu0 0.0
        %1698 = vmatprep.subr.mxu0 0.0
        %1699 = vmatpush2.msra.mxu0 0.0
        %1700 = vmatprep.mubr.f32.mxu0 0.0
        %1701 = vmatmul.mubr.f32.gmra.mxu0 %v1620
        %v1702 = vpop.f32.mrf.mxu0
        %v1703 = vadd.f32 0.0, %v1702
        %v1704 = vpop.f32.mrf.mxu0
        %1705 = vmatprep.mubr.f32.mxu0 0.0
        %1706 = vmatmul.mubr.f32.gmra.mxu0 %v1622
        %v1707 = vpop.f32.mrf.mxu0
        %v1708 = vadd.f32 0.0, %v1707
        %v1709 = vpop.f32.mrf.mxu0
        %1710 = vmatprep.mubr.f32.mxu0 0.0
        %1711 = vmatmul.mubr.f32.gmra.mxu0 %v1624
        %v1712 = vpop.f32.mrf.mxu0
        %v1713 = vadd.f32 0.0, %v1712
        %v1714 = vpop.f32.mrf.mxu0
        %1715 = vmatprep.mubr.f32.mxu0 0.0
        %1716 = vmatmul.mubr.f32.gmra.mxu0 %v1626
        %v1717 = vpop.f32.mrf.mxu0
        %v1718 = vadd.f32 0.0, %v1717
        %v1719 = vpop.f32.mrf.mxu0
        %1720 = vmatprep.mubr.f32.mxu0 0.0
        %1721 = vmatmul.mubr.f32.gmra.mxu0 %v1628
        %v1722 = vpop.f32.mrf.mxu0
        %v1723 = vadd.f32 0.0, %v1722
        %v1724 = vpop.f32.mrf.mxu0
        %1725 = vmatprep.mubr.f32.mxu0 0.0
        %1726 = vmatmul.mubr.f32.gmra.mxu0 %v1630
        %v1727 = vpop.f32.mrf.mxu0
        %v1728 = vadd.f32 0.0, %v1727
        %v1729 = vpop.f32.mrf.mxu0
        %1730 = vmatprep.mubr.f32.mxu0 0.0
        %1731 = vmatmul.mubr.f32.gmra.mxu0 %v1632
        %v1732 = vpop.f32.mrf.mxu0
        %v1733 = vadd.f32 0.0, %v1732
        %v1734 = vpop.f32.mrf.mxu0
        %1735 = vmatprep.mubr.f32.mxu0 0.0
        %1736 = vmatmul.mubr.f32.gmra.mxu0 %v1634
        %v1737 = vpop.f32.mrf.mxu0
        %v1738 = vadd.f32 0.0, %v1737
        %v1739 = vpop.f32.mrf.mxu0
        %1740 = vdwg.mxu0
        %v1741 = vadd.f32 %v1538, %v1703
        %v1742 = vadd.f32 %v1539, %v1708
        %v1743 = vadd.f32 %v1540, %v1713
        %v1744 = vadd.f32 %v1541, %v1718
        %v1745 = vadd.f32 %v1542, %v1723
        %v1746 = vadd.f32 %v1543, %v1728
        %v1747 = vadd.f32 %v1544, %v1733
        %v1748 = vadd.f32 %v1545, %v1738
        %s1749 = scalar_lea.vmem %s338, 8
        %v1750 = vld [vmem:[%s1749] sm:$0xf]
        %v1751 = vld [vmem:[%s1749 + $0x10] sm:$0xf]
        %v1752 = vld [vmem:[%s1749 + $0x20] sm:$0xf]
        %v1753 = vld [vmem:[%s1749 + $0x30] sm:$0xf]
        %v1754 = vld [vmem:[%s1749 + $0x40] sm:$0xf]
        %v1755 = vld [vmem:[%s1749 + $0x50] sm:$0xf]
        %v1756 = vld [vmem:[%s1749 + $0x60] sm:$0xf]
        %v1757 = vld [vmem:[%s1749 + $0x70] sm:$0xf]
        %v1758 = vunpack.c.l.bf16 %v1750
        %v1759 = vunpack.c.l.bf16 %v1751
        %v1760 = vunpack.c.l.bf16 %v1752
        %v1761 = vunpack.c.l.bf16 %v1753
        %v1762 = vunpack.c.l.bf16 %v1754
        %v1763 = vunpack.c.l.bf16 %v1755
        %v1764 = vunpack.c.l.bf16 %v1756
        %v1765 = vunpack.c.l.bf16 %v1757
        %s1766 = scalar_lea.vmem %s3, 64
        %v1767 = vld [vmem:[%s1766] sm:$0xff]
        %v1769 = vsel %vm430, %v1758, 0
        %v1772 = vsel %vm430, %v1759, 0
        %v1775 = vsel %vm430, %v1760, 0
        %v1778 = vsel %vm430, %v1761, 0
        %v1781 = vsel %vm430, %v1762, 0
        %v1784 = vsel %vm430, %v1763, 0
        %v1787 = vsel %vm430, %v1764, 0
        %v1790 = vsel %vm430, %v1765, 0
        %1792 = vmatprep.subr.mxu0 0.0
        %1793 = vmatpush1.msra.mxu0 0.0
        %1794 = vmatprep.subr.mxu0 0.0
        %1795 = vmatpush1.msra.mxu0 0.0
        %1796 = vmatprep.subr.mxu0 0.0
        %1797 = vmatpush1.msra.mxu0 0.0
        %1798 = vmatprep.subr.mxu0 0.0
        %1799 = vmatpush1.msra.mxu0 0.0
        %1800 = vmatprep.subr.mxu0 0.0
        %1801 = vmatpush1.msra.mxu0 0.0
        %1802 = vmatprep.subr.mxu0 0.0
        %1803 = vmatpush1.msra.mxu0 0.0
        %1804 = vmatprep.subr.mxu0 0.0
        %1805 = vmatpush1.msra.mxu0 0.0
        %1806 = vmatprep.subr.mxu0 0.0
        %1807 = vmatpush1.msra.mxu0 0.0
        %1808 = vmatprep.subr.mxu0 0.0
        %1809 = vmatpush1.msra.mxu0 0.0
        %1810 = vmatprep.subr.mxu0 0.0
        %1811 = vmatpush1.msra.mxu0 0.0
        %1812 = vmatprep.subr.mxu0 0.0
        %1813 = vmatpush1.msra.mxu0 0.0
        %1814 = vmatprep.subr.mxu0 0.0
        %1815 = vmatpush1.msra.mxu0 0.0
        %1816 = vmatprep.subr.mxu0 0.0
        %1817 = vmatpush1.msra.mxu0 0.0
        %1818 = vmatprep.subr.mxu0 0.0
        %1819 = vmatpush1.msra.mxu0 0.0
        %1820 = vmatprep.subr.mxu0 0.0
        %1821 = vmatpush1.msra.mxu0 0.0
        %1822 = vmatprep.subr.mxu0 0.0
        %1823 = vmatpush1.msra.mxu0 %v1767
        %1824 = vmatprep.subr.mxu0 0.0
        %1825 = vmatpush2.msra.mxu0 0.0
        %1826 = vmatprep.subr.mxu0 0.0
        %1827 = vmatpush2.msra.mxu0 0.0
        %1828 = vmatprep.subr.mxu0 0.0
        %1829 = vmatpush2.msra.mxu0 0.0
        %1830 = vmatprep.subr.mxu0 0.0
        %1831 = vmatpush2.msra.mxu0 0.0
        %1832 = vmatprep.subr.mxu0 0.0
        %1833 = vmatpush2.msra.mxu0 0.0
        %1834 = vmatprep.subr.mxu0 0.0
        %1835 = vmatpush2.msra.mxu0 0.0
        %1836 = vmatprep.subr.mxu0 0.0
        %1837 = vmatpush2.msra.mxu0 0.0
        %1838 = vmatprep.subr.mxu0 0.0
        %1839 = vmatpush2.msra.mxu0 0.0
        %1840 = vmatprep.subr.mxu0 0.0
        %1841 = vmatpush2.msra.mxu0 0.0
        %1842 = vmatprep.subr.mxu0 0.0
        %1843 = vmatpush2.msra.mxu0 0.0
        %1844 = vmatprep.subr.mxu0 0.0
        %1845 = vmatpush2.msra.mxu0 0.0
        %1846 = vmatprep.subr.mxu0 0.0
        %1847 = vmatpush2.msra.mxu0 0.0
        %1848 = vmatprep.subr.mxu0 0.0
        %1849 = vmatpush2.msra.mxu0 0.0
        %1850 = vmatprep.subr.mxu0 0.0
        %1851 = vmatpush2.msra.mxu0 0.0
        %1852 = vmatprep.subr.mxu0 0.0
        %1853 = vmatpush2.msra.mxu0 0.0
        %1854 = vmatprep.subr.mxu0 0.0
        %1855 = vmatpush2.msra.mxu0 0.0
        %1856 = vmatprep.mubr.f32.mxu0 0.0
        %1857 = vmatmul.mubr.f32.gmra.mxu0 %v1769
        %v1858 = vpop.f32.mrf.mxu0
        %v1859 = vadd.f32 0.0, %v1858
        %v1860 = vpop.f32.mrf.mxu0
        %1861 = vmatprep.mubr.f32.mxu0 0.0
        %1862 = vmatmul.mubr.f32.gmra.mxu0 %v1772
        %v1863 = vpop.f32.mrf.mxu0
        %v1864 = vadd.f32 0.0, %v1863
        %v1865 = vpop.f32.mrf.mxu0
        %1866 = vmatprep.mubr.f32.mxu0 0.0
        %1867 = vmatmul.mubr.f32.gmra.mxu0 %v1775
        %v1868 = vpop.f32.mrf.mxu0
        %v1869 = vadd.f32 0.0, %v1868
        %v1870 = vpop.f32.mrf.mxu0
        %1871 = vmatprep.mubr.f32.mxu0 0.0
        %1872 = vmatmul.mubr.f32.gmra.mxu0 %v1778
        %v1873 = vpop.f32.mrf.mxu0
        %v1874 = vadd.f32 0.0, %v1873
        %v1875 = vpop.f32.mrf.mxu0
        %1876 = vmatprep.mubr.f32.mxu0 0.0
        %1877 = vmatmul.mubr.f32.gmra.mxu0 %v1781
        %v1878 = vpop.f32.mrf.mxu0
        %v1879 = vadd.f32 0.0, %v1878
        %v1880 = vpop.f32.mrf.mxu0
        %1881 = vmatprep.mubr.f32.mxu0 0.0
        %1882 = vmatmul.mubr.f32.gmra.mxu0 %v1784
        %v1883 = vpop.f32.mrf.mxu0
        %v1884 = vadd.f32 0.0, %v1883
        %v1885 = vpop.f32.mrf.mxu0
        %1886 = vmatprep.mubr.f32.mxu0 0.0
        %1887 = vmatmul.mubr.f32.gmra.mxu0 %v1787
        %v1888 = vpop.f32.mrf.mxu0
        %v1889 = vadd.f32 0.0, %v1888
        %v1890 = vpop.f32.mrf.mxu0
        %1891 = vmatprep.mubr.f32.mxu0 0.0
        %1892 = vmatmul.mubr.f32.gmra.mxu0 %v1790
        %v1893 = vpop.f32.mrf.mxu0
        %v1894 = vadd.f32 0.0, %v1893
        %v1895 = vpop.f32.mrf.mxu0
        %1896 = vdwg.mxu0
        %v1897 = vadd.f32 %v1741, %v1859
        %v1898 = vadd.f32 %v1742, %v1864
        %v1899 = vadd.f32 %v1743, %v1869
        %v1900 = vadd.f32 %v1744, %v1874
        %v1901 = vadd.f32 %v1745, %v1879
        %v1902 = vadd.f32 %v1746, %v1884
        %v1903 = vadd.f32 %v1747, %v1889
        %v1904 = vadd.f32 %v1748, %v1894
        %v1905 = vld [vmem:[%s1749] sm:$0xf]
        %v1906 = vld [vmem:[%s1749 + $0x4] sm:$0x1]
        %v1907 = vld [vmem:[%s1749 + $0x10] sm:$0xf]
        %v1908 = vld [vmem:[%s1749 + $0x14] sm:$0x1]
        %v1909 = vld [vmem:[%s1749 + $0x20] sm:$0xf]
        %v1910 = vld [vmem:[%s1749 + $0x24] sm:$0x1]
        %v1911 = vld [vmem:[%s1749 + $0x30] sm:$0xf]
        %v1912 = vld [vmem:[%s1749 + $0x34] sm:$0x1]
        %v1913 = vld [vmem:[%s1749 + $0x40] sm:$0xf]
        %v1914 = vld [vmem:[%s1749 + $0x44] sm:$0x1]
        %v1915 = vld [vmem:[%s1749 + $0x50] sm:$0xf]
        %v1916 = vld [vmem:[%s1749 + $0x54] sm:$0x1]
        %v1917 = vld [vmem:[%s1749 + $0x60] sm:$0xf]
        %v1918 = vld [vmem:[%s1749 + $0x64] sm:$0x1]
        %v1919 = vld [vmem:[%s1749 + $0x70] sm:$0xf]
        %v1920 = vld [vmem:[%s1749 + $0x74] sm:$0x1]
        %v1921 = vunpack.c.l.bf16 %v1905
        %v1922 = vunpack.c.l.bf16 %v1906
        %v1923 = vunpack.c.l.bf16 %v1907
        %v1924 = vunpack.c.l.bf16 %v1908
        %v1925 = vunpack.c.l.bf16 %v1909
        %v1926 = vunpack.c.l.bf16 %v1910
        %v1927 = vunpack.c.l.bf16 %v1911
        %v1928 = vunpack.c.l.bf16 %v1912
        %v1929 = vunpack.c.l.bf16 %v1913
        %v1930 = vunpack.c.l.bf16 %v1914
        %v1931 = vunpack.c.l.bf16 %v1915
        %v1932 = vunpack.c.l.bf16 %v1916
        %v1933 = vunpack.c.l.bf16 %v1917
        %v1934 = vunpack.c.l.bf16 %v1918
        %v1935 = vunpack.c.l.bf16 %v1919
        %v1936 = vunpack.c.l.bf16 %v1920
        %v1953 = vrot.slane %v1921, 1
        %v1954 = vrot.slane %v1922, 1
        %v1955 = vsel %vm403, %v1953, %v1954
        %v1956 = vrot.slane %v1923, 1
        %v1957 = vrot.slane %v1924, 1
        %v1958 = vsel %vm403, %v1956, %v1957
        %v1959 = vrot.slane %v1925, 1
        %v1960 = vrot.slane %v1926, 1
        %v1961 = vsel %vm403, %v1959, %v1960
        %v1962 = vrot.slane %v1927, 1
        %v1963 = vrot.slane %v1928, 1
        %v1964 = vsel %vm403, %v1962, %v1963
        %v1965 = vrot.slane %v1929, 1
        %v1966 = vrot.slane %v1930, 1
        %v1967 = vsel %vm403, %v1965, %v1966
        %v1968 = vrot.slane %v1931, 1
        %v1969 = vrot.slane %v1932, 1
        %v1970 = vsel %vm403, %v1968, %v1969
        %v1971 = vrot.slane %v1933, 1
        %v1972 = vrot.slane %v1934, 1
        %v1973 = vsel %vm403, %v1971, %v1972
        %v1974 = vrot.slane %v1935, 1
        %v1975 = vrot.slane %v1936, 1
        %v1976 = vsel %vm403, %v1974, %v1975
        %s1977 = scalar_lea.vmem %s3, 72
        %v1978 = vld [vmem:[%s1977] sm:$0xff]
        %v1979 = vsel %vm430, %v1955, 0
        %v1981 = vsel %vm430, %v1958, 0
        %v1983 = vsel %vm430, %v1961, 0
        %v1985 = vsel %vm430, %v1964, 0
        %v1987 = vsel %vm430, %v1967, 0
        %v1989 = vsel %vm430, %v1970, 0
        %v1991 = vsel %vm430, %v1973, 0
        %v1993 = vsel %vm430, %v1976, 0
        %1995 = vmatprep.subr.mxu0 0.0
        %1996 = vmatpush1.msra.mxu0 0.0
        %1997 = vmatprep.subr.mxu0 0.0
        %1998 = vmatpush1.msra.mxu0 0.0
        %1999 = vmatprep.subr.mxu0 0.0
        %2000 = vmatpush1.msra.mxu0 0.0
        %2001 = vmatprep.subr.mxu0 0.0
        %2002 = vmatpush1.msra.mxu0 0.0
        %2003 = vmatprep.subr.mxu0 0.0
        %2004 = vmatpush1.msra.mxu0 0.0
        %2005 = vmatprep.subr.mxu0 0.0
        %2006 = vmatpush1.msra.mxu0 0.0
        %2007 = vmatprep.subr.mxu0 0.0
        %2008 = vmatpush1.msra.mxu0 0.0
        %2009 = vmatprep.subr.mxu0 0.0
        %2010 = vmatpush1.msra.mxu0 0.0
        %2011 = vmatprep.subr.mxu0 0.0
        %2012 = vmatpush1.msra.mxu0 0.0
        %2013 = vmatprep.subr.mxu0 0.0
        %2014 = vmatpush1.msra.mxu0 0.0
        %2015 = vmatprep.subr.mxu0 0.0
        %2016 = vmatpush1.msra.mxu0 0.0
        %2017 = vmatprep.subr.mxu0 0.0
        %2018 = vmatpush1.msra.mxu0 0.0
        %2019 = vmatprep.subr.mxu0 0.0
        %2020 = vmatpush1.msra.mxu0 0.0
        %2021 = vmatprep.subr.mxu0 0.0
        %2022 = vmatpush1.msra.mxu0 0.0
        %2023 = vmatprep.subr.mxu0 0.0
        %2024 = vmatpush1.msra.mxu0 0.0
        %2025 = vmatprep.subr.mxu0 0.0
        %2026 = vmatpush1.msra.mxu0 %v1978
        %2027 = vmatprep.subr.mxu0 0.0
        %2028 = vmatpush2.msra.mxu0 0.0
        %2029 = vmatprep.subr.mxu0 0.0
        %2030 = vmatpush2.msra.mxu0 0.0
        %2031 = vmatprep.subr.mxu0 0.0
        %2032 = vmatpush2.msra.mxu0 0.0
        %2033 = vmatprep.subr.mxu0 0.0
        %2034 = vmatpush2.msra.mxu0 0.0
        %2035 = vmatprep.subr.mxu0 0.0
        %2036 = vmatpush2.msra.mxu0 0.0
        %2037 = vmatprep.subr.mxu0 0.0
        %2038 = vmatpush2.msra.mxu0 0.0
        %2039 = vmatprep.subr.mxu0 0.0
        %2040 = vmatpush2.msra.mxu0 0.0
        %2041 = vmatprep.subr.mxu0 0.0
        %2042 = vmatpush2.msra.mxu0 0.0
        %2043 = vmatprep.subr.mxu0 0.0
        %2044 = vmatpush2.msra.mxu0 0.0
        %2045 = vmatprep.subr.mxu0 0.0
        %2046 = vmatpush2.msra.mxu0 0.0
        %2047 = vmatprep.subr.mxu0 0.0
        %2048 = vmatpush2.msra.mxu0 0.0
        %2049 = vmatprep.subr.mxu0 0.0
        %2050 = vmatpush2.msra.mxu0 0.0
        %2051 = vmatprep.subr.mxu0 0.0
        %2052 = vmatpush2.msra.mxu0 0.0
        %2053 = vmatprep.subr.mxu0 0.0
        %2054 = vmatpush2.msra.mxu0 0.0
        %2055 = vmatprep.subr.mxu0 0.0
        %2056 = vmatpush2.msra.mxu0 0.0
        %2057 = vmatprep.subr.mxu0 0.0
        %2058 = vmatpush2.msra.mxu0 0.0
        %2059 = vmatprep.mubr.f32.mxu0 0.0
        %2060 = vmatmul.mubr.f32.gmra.mxu0 %v1979
        %v2061 = vpop.f32.mrf.mxu0
        %v2062 = vadd.f32 0.0, %v2061
        %v2063 = vpop.f32.mrf.mxu0
        %2064 = vmatprep.mubr.f32.mxu0 0.0
        %2065 = vmatmul.mubr.f32.gmra.mxu0 %v1981
        %v2066 = vpop.f32.mrf.mxu0
        %v2067 = vadd.f32 0.0, %v2066
        %v2068 = vpop.f32.mrf.mxu0
        %2069 = vmatprep.mubr.f32.mxu0 0.0
        %2070 = vmatmul.mubr.f32.gmra.mxu0 %v1983
        %v2071 = vpop.f32.mrf.mxu0
        %v2072 = vadd.f32 0.0, %v2071
        %v2073 = vpop.f32.mrf.mxu0
        %2074 = vmatprep.mubr.f32.mxu0 0.0
        %2075 = vmatmul.mubr.f32.gmra.mxu0 %v1985
        %v2076 = vpop.f32.mrf.mxu0
        %v2077 = vadd.f32 0.0, %v2076
        %v2078 = vpop.f32.mrf.mxu0
        %2079 = vmatprep.mubr.f32.mxu0 0.0
        %2080 = vmatmul.mubr.f32.gmra.mxu0 %v1987
        %v2081 = vpop.f32.mrf.mxu0
        %v2082 = vadd.f32 0.0, %v2081
        %v2083 = vpop.f32.mrf.mxu0
        %2084 = vmatprep.mubr.f32.mxu0 0.0
        %2085 = vmatmul.mubr.f32.gmra.mxu0 %v1989
        %v2086 = vpop.f32.mrf.mxu0
        %v2087 = vadd.f32 0.0, %v2086
        %v2088 = vpop.f32.mrf.mxu0
        %2089 = vmatprep.mubr.f32.mxu0 0.0
        %2090 = vmatmul.mubr.f32.gmra.mxu0 %v1991
        %v2091 = vpop.f32.mrf.mxu0
        %v2092 = vadd.f32 0.0, %v2091
        %v2093 = vpop.f32.mrf.mxu0
        %2094 = vmatprep.mubr.f32.mxu0 0.0
        %2095 = vmatmul.mubr.f32.gmra.mxu0 %v1993
        %v2096 = vpop.f32.mrf.mxu0
        %v2097 = vadd.f32 0.0, %v2096
        %v2098 = vpop.f32.mrf.mxu0
        %2099 = vdwg.mxu0
        %v2100 = vadd.f32 %v1897, %v2062
        %v2101 = vadd.f32 %v1898, %v2067
        %v2102 = vadd.f32 %v1899, %v2072
        %v2103 = vadd.f32 %v1900, %v2077
        %v2104 = vadd.f32 %v1901, %v2082
        %v2105 = vadd.f32 %v1902, %v2087
        %v2106 = vadd.f32 %v1903, %v2092
        %v2107 = vadd.f32 %v1904, %v2097
        %s2108 = scalar_lea.vmem %s338, 16
        %v2109 = vld [vmem:[%s2108] sm:$0xf]
        %v2110 = vld [vmem:[%s2108 + $0x10] sm:$0xf]
        %v2111 = vld [vmem:[%s2108 + $0x20] sm:$0xf]
        %v2112 = vld [vmem:[%s2108 + $0x30] sm:$0xf]
        %v2113 = vld [vmem:[%s2108 + $0x40] sm:$0xf]
        %v2114 = vld [vmem:[%s2108 + $0x50] sm:$0xf]
        %v2115 = vld [vmem:[%s2108 + $0x60] sm:$0xf]
        %v2116 = vld [vmem:[%s2108 + $0x70] sm:$0xf]
        %v2117 = vunpack.c.l.bf16 %v2109
        %v2118 = vunpack.c.l.bf16 %v2110
        %v2119 = vunpack.c.l.bf16 %v2111
        %v2120 = vunpack.c.l.bf16 %v2112
        %v2121 = vunpack.c.l.bf16 %v2113
        %v2122 = vunpack.c.l.bf16 %v2114
        %v2123 = vunpack.c.l.bf16 %v2115
        %v2124 = vunpack.c.l.bf16 %v2116
        %s2125 = scalar_lea.vmem %s3, 80
        %v2126 = vld [vmem:[%s2125] sm:$0xff]
        %v2128 = vsel %vm430, %v2117, 0
        %v2131 = vsel %vm430, %v2118, 0
        %v2134 = vsel %vm430, %v2119, 0
        %v2137 = vsel %vm430, %v2120, 0
        %v2140 = vsel %vm430, %v2121, 0
        %v2143 = vsel %vm430, %v2122, 0
        %v2146 = vsel %vm430, %v2123, 0
        %v2149 = vsel %vm430, %v2124, 0
        %2151 = vmatprep.subr.mxu0 0.0
        %2152 = vmatpush1.msra.mxu0 0.0
        %2153 = vmatprep.subr.mxu0 0.0
        %2154 = vmatpush1.msra.mxu0 0.0
        %2155 = vmatprep.subr.mxu0 0.0
        %2156 = vmatpush1.msra.mxu0 0.0
        %2157 = vmatprep.subr.mxu0 0.0
        %2158 = vmatpush1.msra.mxu0 0.0
        %2159 = vmatprep.subr.mxu0 0.0
        %2160 = vmatpush1.msra.mxu0 0.0
        %2161 = vmatprep.subr.mxu0 0.0
        %2162 = vmatpush1.msra.mxu0 0.0
        %2163 = vmatprep.subr.mxu0 0.0
        %2164 = vmatpush1.msra.mxu0 0.0
        %2165 = vmatprep.subr.mxu0 0.0
        %2166 = vmatpush1.msra.mxu0 0.0
        %2167 = vmatprep.subr.mxu0 0.0
        %2168 = vmatpush1.msra.mxu0 0.0
        %2169 = vmatprep.subr.mxu0 0.0
        %2170 = vmatpush1.msra.mxu0 0.0
        %2171 = vmatprep.subr.mxu0 0.0
        %2172 = vmatpush1.msra.mxu0 0.0
        %2173 = vmatprep.subr.mxu0 0.0
        %2174 = vmatpush1.msra.mxu0 0.0
        %2175 = vmatprep.subr.mxu0 0.0
        %2176 = vmatpush1.msra.mxu0 0.0
        %2177 = vmatprep.subr.mxu0 0.0
        %2178 = vmatpush1.msra.mxu0 0.0
        %2179 = vmatprep.subr.mxu0 0.0
        %2180 = vmatpush1.msra.mxu0 0.0
        %2181 = vmatprep.subr.mxu0 0.0
        %2182 = vmatpush1.msra.mxu0 %v2126
        %2183 = vmatprep.subr.mxu0 0.0
        %2184 = vmatpush2.msra.mxu0 0.0
        %2185 = vmatprep.subr.mxu0 0.0
        %2186 = vmatpush2.msra.mxu0 0.0
        %2187 = vmatprep.subr.mxu0 0.0
        %2188 = vmatpush2.msra.mxu0 0.0
        %2189 = vmatprep.subr.mxu0 0.0
        %2190 = vmatpush2.msra.mxu0 0.0
        %2191 = vmatprep.subr.mxu0 0.0
        %2192 = vmatpush2.msra.mxu0 0.0
        %2193 = vmatprep.subr.mxu0 0.0
        %2194 = vmatpush2.msra.mxu0 0.0
        %2195 = vmatprep.subr.mxu0 0.0
        %2196 = vmatpush2.msra.mxu0 0.0
        %2197 = vmatprep.subr.mxu0 0.0
        %2198 = vmatpush2.msra.mxu0 0.0
        %2199 = vmatprep.subr.mxu0 0.0
        %2200 = vmatpush2.msra.mxu0 0.0
        %2201 = vmatprep.subr.mxu0 0.0
        %2202 = vmatpush2.msra.mxu0 0.0
        %2203 = vmatprep.subr.mxu0 0.0
        %2204 = vmatpush2.msra.mxu0 0.0
        %2205 = vmatprep.subr.mxu0 0.0
        %2206 = vmatpush2.msra.mxu0 0.0
        %2207 = vmatprep.subr.mxu0 0.0
        %2208 = vmatpush2.msra.mxu0 0.0
        %2209 = vmatprep.subr.mxu0 0.0
        %2210 = vmatpush2.msra.mxu0 0.0
        %2211 = vmatprep.subr.mxu0 0.0
        %2212 = vmatpush2.msra.mxu0 0.0
        %2213 = vmatprep.subr.mxu0 0.0
        %2214 = vmatpush2.msra.mxu0 0.0
        %2215 = vmatprep.mubr.f32.mxu0 0.0
        %2216 = vmatmul.mubr.f32.gmra.mxu0 %v2128
        %v2217 = vpop.f32.mrf.mxu0
        %v2218 = vadd.f32 0.0, %v2217
        %v2219 = vpop.f32.mrf.mxu0
        %2220 = vmatprep.mubr.f32.mxu0 0.0
        %2221 = vmatmul.mubr.f32.gmra.mxu0 %v2131
        %v2222 = vpop.f32.mrf.mxu0
        %v2223 = vadd.f32 0.0, %v2222
        %v2224 = vpop.f32.mrf.mxu0
        %2225 = vmatprep.mubr.f32.mxu0 0.0
        %2226 = vmatmul.mubr.f32.gmra.mxu0 %v2134
        %v2227 = vpop.f32.mrf.mxu0
        %v2228 = vadd.f32 0.0, %v2227
        %v2229 = vpop.f32.mrf.mxu0
        %2230 = vmatprep.mubr.f32.mxu0 0.0
        %2231 = vmatmul.mubr.f32.gmra.mxu0 %v2137
        %v2232 = vpop.f32.mrf.mxu0
        %v2233 = vadd.f32 0.0, %v2232
        %v2234 = vpop.f32.mrf.mxu0
        %2235 = vmatprep.mubr.f32.mxu0 0.0
        %2236 = vmatmul.mubr.f32.gmra.mxu0 %v2140
        %v2237 = vpop.f32.mrf.mxu0
        %v2238 = vadd.f32 0.0, %v2237
        %v2239 = vpop.f32.mrf.mxu0
        %2240 = vmatprep.mubr.f32.mxu0 0.0
        %2241 = vmatmul.mubr.f32.gmra.mxu0 %v2143
        %v2242 = vpop.f32.mrf.mxu0
        %v2243 = vadd.f32 0.0, %v2242
        %v2244 = vpop.f32.mrf.mxu0
        %2245 = vmatprep.mubr.f32.mxu0 0.0
        %2246 = vmatmul.mubr.f32.gmra.mxu0 %v2146
        %v2247 = vpop.f32.mrf.mxu0
        %v2248 = vadd.f32 0.0, %v2247
        %v2249 = vpop.f32.mrf.mxu0
        %2250 = vmatprep.mubr.f32.mxu0 0.0
        %2251 = vmatmul.mubr.f32.gmra.mxu0 %v2149
        %v2252 = vpop.f32.mrf.mxu0
        %v2253 = vadd.f32 0.0, %v2252
        %v2254 = vpop.f32.mrf.mxu0
        %2255 = vdwg.mxu0
        %v2256 = vadd.f32 %v2100, %v2218
        %v2257 = vadd.f32 %v2101, %v2223
        %v2258 = vadd.f32 %v2102, %v2228
        %v2259 = vadd.f32 %v2103, %v2233
        %v2260 = vadd.f32 %v2104, %v2238
        %v2261 = vadd.f32 %v2105, %v2243
        %v2262 = vadd.f32 %v2106, %v2248
        %v2263 = vadd.f32 %v2107, %v2253
        %v2264 = vld [vmem:[%s2108] sm:$0xf]
        %v2265 = vld [vmem:[%s2108 + $0x4] sm:$0x1]
        %v2266 = vld [vmem:[%s2108 + $0x10] sm:$0xf]
        %v2267 = vld [vmem:[%s2108 + $0x14] sm:$0x1]
        %v2268 = vld [vmem:[%s2108 + $0x20] sm:$0xf]
        %v2269 = vld [vmem:[%s2108 + $0x24] sm:$0x1]
        %v2270 = vld [vmem:[%s2108 + $0x30] sm:$0xf]
        %v2271 = vld [vmem:[%s2108 + $0x34] sm:$0x1]
        %v2272 = vld [vmem:[%s2108 + $0x40] sm:$0xf]
        %v2273 = vld [vmem:[%s2108 + $0x44] sm:$0x1]
        %v2274 = vld [vmem:[%s2108 + $0x50] sm:$0xf]
        %v2275 = vld [vmem:[%s2108 + $0x54] sm:$0x1]
        %v2276 = vld [vmem:[%s2108 + $0x60] sm:$0xf]
        %v2277 = vld [vmem:[%s2108 + $0x64] sm:$0x1]
        %v2278 = vld [vmem:[%s2108 + $0x70] sm:$0xf]
        %v2279 = vld [vmem:[%s2108 + $0x74] sm:$0x1]
        %v2280 = vunpack.c.l.bf16 %v2264
        %v2281 = vunpack.c.l.bf16 %v2265
        %v2282 = vunpack.c.l.bf16 %v2266
        %v2283 = vunpack.c.l.bf16 %v2267
        %v2284 = vunpack.c.l.bf16 %v2268
        %v2285 = vunpack.c.l.bf16 %v2269
        %v2286 = vunpack.c.l.bf16 %v2270
        %v2287 = vunpack.c.l.bf16 %v2271
        %v2288 = vunpack.c.l.bf16 %v2272
        %v2289 = vunpack.c.l.bf16 %v2273
        %v2290 = vunpack.c.l.bf16 %v2274
        %v2291 = vunpack.c.l.bf16 %v2275
        %v2292 = vunpack.c.l.bf16 %v2276
        %v2293 = vunpack.c.l.bf16 %v2277
        %v2294 = vunpack.c.l.bf16 %v2278
        %v2295 = vunpack.c.l.bf16 %v2279
        %v2312 = vrot.slane %v2280, 1
        %v2313 = vrot.slane %v2281, 1
        %v2314 = vsel %vm403, %v2312, %v2313
        %v2315 = vrot.slane %v2282, 1
        %v2316 = vrot.slane %v2283, 1
        %v2317 = vsel %vm403, %v2315, %v2316
        %v2318 = vrot.slane %v2284, 1
        %v2319 = vrot.slane %v2285, 1
        %v2320 = vsel %vm403, %v2318, %v2319
        %v2321 = vrot.slane %v2286, 1
        %v2322 = vrot.slane %v2287, 1
        %v2323 = vsel %vm403, %v2321, %v2322
        %v2324 = vrot.slane %v2288, 1
        %v2325 = vrot.slane %v2289, 1
        %v2326 = vsel %vm403, %v2324, %v2325
        %v2327 = vrot.slane %v2290, 1
        %v2328 = vrot.slane %v2291, 1
        %v2329 = vsel %vm403, %v2327, %v2328
        %v2330 = vrot.slane %v2292, 1
        %v2331 = vrot.slane %v2293, 1
        %v2332 = vsel %vm403, %v2330, %v2331
        %v2333 = vrot.slane %v2294, 1
        %v2334 = vrot.slane %v2295, 1
        %v2335 = vsel %vm403, %v2333, %v2334
        %s2336 = scalar_lea.vmem %s3, 88
        %v2337 = vld [vmem:[%s2336] sm:$0xff]
        %v2338 = vsel %vm430, %v2314, 0
        %v2340 = vsel %vm430, %v2317, 0
        %v2342 = vsel %vm430, %v2320, 0
        %v2344 = vsel %vm430, %v2323, 0
        %v2346 = vsel %vm430, %v2326, 0
        %v2348 = vsel %vm430, %v2329, 0
        %v2350 = vsel %vm430, %v2332, 0
        %v2352 = vsel %vm430, %v2335, 0
        %2354 = vmatprep.subr.mxu0 0.0
        %2355 = vmatpush1.msra.mxu0 0.0
        %2356 = vmatprep.subr.mxu0 0.0
        %2357 = vmatpush1.msra.mxu0 0.0
        %2358 = vmatprep.subr.mxu0 0.0
        %2359 = vmatpush1.msra.mxu0 0.0
        %2360 = vmatprep.subr.mxu0 0.0
        %2361 = vmatpush1.msra.mxu0 0.0
        %2362 = vmatprep.subr.mxu0 0.0
        %2363 = vmatpush1.msra.mxu0 0.0
        %2364 = vmatprep.subr.mxu0 0.0
        %2365 = vmatpush1.msra.mxu0 0.0
        %2366 = vmatprep.subr.mxu0 0.0
        %2367 = vmatpush1.msra.mxu0 0.0
        %2368 = vmatprep.subr.mxu0 0.0
        %2369 = vmatpush1.msra.mxu0 0.0
        %2370 = vmatprep.subr.mxu0 0.0
        %2371 = vmatpush1.msra.mxu0 0.0
        %2372 = vmatprep.subr.mxu0 0.0
        %2373 = vmatpush1.msra.mxu0 0.0
        %2374 = vmatprep.subr.mxu0 0.0
        %2375 = vmatpush1.msra.mxu0 0.0
        %2376 = vmatprep.subr.mxu0 0.0
        %2377 = vmatpush1.msra.mxu0 0.0
        %2378 = vmatprep.subr.mxu0 0.0
        %2379 = vmatpush1.msra.mxu0 0.0
        %2380 = vmatprep.subr.mxu0 0.0
        %2381 = vmatpush1.msra.mxu0 0.0
        %2382 = vmatprep.subr.mxu0 0.0
        %2383 = vmatpush1.msra.mxu0 0.0
        %2384 = vmatprep.subr.mxu0 0.0
        %2385 = vmatpush1.msra.mxu0 %v2337
        %2386 = vmatprep.subr.mxu0 0.0
        %2387 = vmatpush2.msra.mxu0 0.0
        %2388 = vmatprep.subr.mxu0 0.0
        %2389 = vmatpush2.msra.mxu0 0.0
        %2390 = vmatprep.subr.mxu0 0.0
        %2391 = vmatpush2.msra.mxu0 0.0
        %2392 = vmatprep.subr.mxu0 0.0
        %2393 = vmatpush2.msra.mxu0 0.0
        %2394 = vmatprep.subr.mxu0 0.0
        %2395 = vmatpush2.msra.mxu0 0.0
        %2396 = vmatprep.subr.mxu0 0.0
        %2397 = vmatpush2.msra.mxu0 0.0
        %2398 = vmatprep.subr.mxu0 0.0
        %2399 = vmatpush2.msra.mxu0 0.0
        %2400 = vmatprep.subr.mxu0 0.0
        %2401 = vmatpush2.msra.mxu0 0.0
        %2402 = vmatprep.subr.mxu0 0.0
        %2403 = vmatpush2.msra.mxu0 0.0
        %2404 = vmatprep.subr.mxu0 0.0
        %2405 = vmatpush2.msra.mxu0 0.0
        %2406 = vmatprep.subr.mxu0 0.0
        %2407 = vmatpush2.msra.mxu0 0.0
        %2408 = vmatprep.subr.mxu0 0.0
        %2409 = vmatpush2.msra.mxu0 0.0
        %2410 = vmatprep.subr.mxu0 0.0
        %2411 = vmatpush2.msra.mxu0 0.0
        %2412 = vmatprep.subr.mxu0 0.0
        %2413 = vmatpush2.msra.mxu0 0.0
        %2414 = vmatprep.subr.mxu0 0.0
        %2415 = vmatpush2.msra.mxu0 0.0
        %2416 = vmatprep.subr.mxu0 0.0
        %2417 = vmatpush2.msra.mxu0 0.0
        %2418 = vmatprep.mubr.f32.mxu0 0.0
        %2419 = vmatmul.mubr.f32.gmra.mxu0 %v2338
        %v2420 = vpop.f32.mrf.mxu0
        %v2421 = vadd.f32 0.0, %v2420
        %v2422 = vpop.f32.mrf.mxu0
        %2423 = vmatprep.mubr.f32.mxu0 0.0
        %2424 = vmatmul.mubr.f32.gmra.mxu0 %v2340
        %v2425 = vpop.f32.mrf.mxu0
        %v2426 = vadd.f32 0.0, %v2425
        %v2427 = vpop.f32.mrf.mxu0
        %2428 = vmatprep.mubr.f32.mxu0 0.0
        %2429 = vmatmul.mubr.f32.gmra.mxu0 %v2342
        %v2430 = vpop.f32.mrf.mxu0
        %v2431 = vadd.f32 0.0, %v2430
        %v2432 = vpop.f32.mrf.mxu0
        %2433 = vmatprep.mubr.f32.mxu0 0.0
        %2434 = vmatmul.mubr.f32.gmra.mxu0 %v2344
        %v2435 = vpop.f32.mrf.mxu0
        %v2436 = vadd.f32 0.0, %v2435
        %v2437 = vpop.f32.mrf.mxu0
        %2438 = vmatprep.mubr.f32.mxu0 0.0
        %2439 = vmatmul.mubr.f32.gmra.mxu0 %v2346
        %v2440 = vpop.f32.mrf.mxu0
        %v2441 = vadd.f32 0.0, %v2440
        %v2442 = vpop.f32.mrf.mxu0
        %2443 = vmatprep.mubr.f32.mxu0 0.0
        %2444 = vmatmul.mubr.f32.gmra.mxu0 %v2348
        %v2445 = vpop.f32.mrf.mxu0
        %v2446 = vadd.f32 0.0, %v2445
        %v2447 = vpop.f32.mrf.mxu0
        %2448 = vmatprep.mubr.f32.mxu0 0.0
        %2449 = vmatmul.mubr.f32.gmra.mxu0 %v2350
        %v2450 = vpop.f32.mrf.mxu0
        %v2451 = vadd.f32 0.0, %v2450
        %v2452 = vpop.f32.mrf.mxu0
        %2453 = vmatprep.mubr.f32.mxu0 0.0
        %2454 = vmatmul.mubr.f32.gmra.mxu0 %v2352
        %v2455 = vpop.f32.mrf.mxu0
        %v2456 = vadd.f32 0.0, %v2455
        %v2457 = vpop.f32.mrf.mxu0
        %2458 = vdwg.mxu0
        %v2459 = vadd.f32 %v2256, %v2421
        %v2460 = vadd.f32 %v2257, %v2426
        %v2461 = vadd.f32 %v2258, %v2431
        %v2462 = vadd.f32 %v2259, %v2436
        %v2463 = vadd.f32 %v2260, %v2441
        %v2464 = vadd.f32 %v2261, %v2446
        %v2465 = vadd.f32 %v2262, %v2451
        %v2466 = vadd.f32 %v2263, %v2456
        %v2467 = vld [vmem:[%s351] sm:$0xf]
        %v2468 = vld [vmem:[%s351 + $0x10] sm:$0xf]
        %v2469 = vld [vmem:[%s351 + $0x20] sm:$0xf]
        %v2470 = vld [vmem:[%s351 + $0x30] sm:$0xf]
        %v2471 = vld [vmem:[%s351 + $0x40] sm:$0xf]
        %v2472 = vld [vmem:[%s351 + $0x50] sm:$0xf]
        %v2473 = vld [vmem:[%s351 + $0x60] sm:$0xf]
        %v2474 = vld [vmem:[%s351 + $0x70] sm:$0xf]
        %v2475 = vunpack.c.l.bf16 %v2467
        %v2476 = vunpack.c.l.bf16 %v2468
        %v2477 = vunpack.c.l.bf16 %v2469
        %v2478 = vunpack.c.l.bf16 %v2470
        %v2479 = vunpack.c.l.bf16 %v2471
        %v2480 = vunpack.c.l.bf16 %v2472
        %v2481 = vunpack.c.l.bf16 %v2473
        %v2482 = vunpack.c.l.bf16 %v2474
        %s2483 = scalar_lea.vmem %s3, 96
        %v2484 = vld [vmem:[%s2483] sm:$0xff]
        %v2486 = vsel %vm430, %v2475, 0
        %v2489 = vsel %vm430, %v2476, 0
        %v2492 = vsel %vm430, %v2477, 0
        %v2495 = vsel %vm430, %v2478, 0
        %v2498 = vsel %vm430, %v2479, 0
        %v2501 = vsel %vm430, %v2480, 0
        %v2504 = vsel %vm430, %v2481, 0
        %v2507 = vsel %vm430, %v2482, 0
        %2509 = vmatprep.subr.mxu0 0.0
        %2510 = vmatpush1.msra.mxu0 0.0
        %2511 = vmatprep.subr.mxu0 0.0
        %2512 = vmatpush1.msra.mxu0 0.0
        %2513 = vmatprep.subr.mxu0 0.0
        %2514 = vmatpush1.msra.mxu0 0.0
        %2515 = vmatprep.subr.mxu0 0.0
        %2516 = vmatpush1.msra.mxu0 0.0
        %2517 = vmatprep.subr.mxu0 0.0
        %2518 = vmatpush1.msra.mxu0 0.0
        %2519 = vmatprep.subr.mxu0 0.0
        %2520 = vmatpush1.msra.mxu0 0.0
        %2521 = vmatprep.subr.mxu0 0.0
        %2522 = vmatpush1.msra.mxu0 0.0
        %2523 = vmatprep.subr.mxu0 0.0
        %2524 = vmatpush1.msra.mxu0 0.0
        %2525 = vmatprep.subr.mxu0 0.0
        %2526 = vmatpush1.msra.mxu0 0.0
        %2527 = vmatprep.subr.mxu0 0.0
        %2528 = vmatpush1.msra.mxu0 0.0
        %2529 = vmatprep.subr.mxu0 0.0
        %2530 = vmatpush1.msra.mxu0 0.0
        %2531 = vmatprep.subr.mxu0 0.0
        %2532 = vmatpush1.msra.mxu0 0.0
        %2533 = vmatprep.subr.mxu0 0.0
        %2534 = vmatpush1.msra.mxu0 0.0
        %2535 = vmatprep.subr.mxu0 0.0
        %2536 = vmatpush1.msra.mxu0 0.0
        %2537 = vmatprep.subr.mxu0 0.0
        %2538 = vmatpush1.msra.mxu0 0.0
        %2539 = vmatprep.subr.mxu0 0.0
        %2540 = vmatpush1.msra.mxu0 %v2484
        %2541 = vmatprep.subr.mxu0 0.0
        %2542 = vmatpush2.msra.mxu0 0.0
        %2543 = vmatprep.subr.mxu0 0.0
        %2544 = vmatpush2.msra.mxu0 0.0
        %2545 = vmatprep.subr.mxu0 0.0
        %2546 = vmatpush2.msra.mxu0 0.0
        %2547 = vmatprep.subr.mxu0 0.0
        %2548 = vmatpush2.msra.mxu0 0.0
        %2549 = vmatprep.subr.mxu0 0.0
        %2550 = vmatpush2.msra.mxu0 0.0
        %2551 = vmatprep.subr.mxu0 0.0
        %2552 = vmatpush2.msra.mxu0 0.0
        %2553 = vmatprep.subr.mxu0 0.0
        %2554 = vmatpush2.msra.mxu0 0.0
        %2555 = vmatprep.subr.mxu0 0.0
        %2556 = vmatpush2.msra.mxu0 0.0
        %2557 = vmatprep.subr.mxu0 0.0
        %2558 = vmatpush2.msra.mxu0 0.0
        %2559 = vmatprep.subr.mxu0 0.0
        %2560 = vmatpush2.msra.mxu0 0.0
        %2561 = vmatprep.subr.mxu0 0.0
        %2562 = vmatpush2.msra.mxu0 0.0
        %2563 = vmatprep.subr.mxu0 0.0
        %2564 = vmatpush2.msra.mxu0 0.0
        %2565 = vmatprep.subr.mxu0 0.0
        %2566 = vmatpush2.msra.mxu0 0.0
        %2567 = vmatprep.subr.mxu0 0.0
        %2568 = vmatpush2.msra.mxu0 0.0
        %2569 = vmatprep.subr.mxu0 0.0
        %2570 = vmatpush2.msra.mxu0 0.0
        %2571 = vmatprep.subr.mxu0 0.0
        %2572 = vmatpush2.msra.mxu0 0.0
        %2573 = vmatprep.mubr.f32.mxu0 0.0
        %2574 = vmatmul.mubr.f32.gmra.mxu0 %v2486
        %v2575 = vpop.f32.mrf.mxu0
        %v2576 = vadd.f32 0.0, %v2575
        %v2577 = vpop.f32.mrf.mxu0
        %2578 = vmatprep.mubr.f32.mxu0 0.0
        %2579 = vmatmul.mubr.f32.gmra.mxu0 %v2489
        %v2580 = vpop.f32.mrf.mxu0
        %v2581 = vadd.f32 0.0, %v2580
        %v2582 = vpop.f32.mrf.mxu0
        %2583 = vmatprep.mubr.f32.mxu0 0.0
        %2584 = vmatmul.mubr.f32.gmra.mxu0 %v2492
        %v2585 = vpop.f32.mrf.mxu0
        %v2586 = vadd.f32 0.0, %v2585
        %v2587 = vpop.f32.mrf.mxu0
        %2588 = vmatprep.mubr.f32.mxu0 0.0
        %2589 = vmatmul.mubr.f32.gmra.mxu0 %v2495
        %v2590 = vpop.f32.mrf.mxu0
        %v2591 = vadd.f32 0.0, %v2590
        %v2592 = vpop.f32.mrf.mxu0
        %2593 = vmatprep.mubr.f32.mxu0 0.0
        %2594 = vmatmul.mubr.f32.gmra.mxu0 %v2498
        %v2595 = vpop.f32.mrf.mxu0
        %v2596 = vadd.f32 0.0, %v2595
        %v2597 = vpop.f32.mrf.mxu0
        %2598 = vmatprep.mubr.f32.mxu0 0.0
        %2599 = vmatmul.mubr.f32.gmra.mxu0 %v2501
        %v2600 = vpop.f32.mrf.mxu0
        %v2601 = vadd.f32 0.0, %v2600
        %v2602 = vpop.f32.mrf.mxu0
        %2603 = vmatprep.mubr.f32.mxu0 0.0
        %2604 = vmatmul.mubr.f32.gmra.mxu0 %v2504
        %v2605 = vpop.f32.mrf.mxu0
        %v2606 = vadd.f32 0.0, %v2605
        %v2607 = vpop.f32.mrf.mxu0
        %2608 = vmatprep.mubr.f32.mxu0 0.0
        %2609 = vmatmul.mubr.f32.gmra.mxu0 %v2507
        %v2610 = vpop.f32.mrf.mxu0
        %v2611 = vadd.f32 0.0, %v2610
        %v2612 = vpop.f32.mrf.mxu0
        %2613 = vdwg.mxu0
        %v2614 = vadd.f32 %v2459, %v2576
        %v2615 = vadd.f32 %v2460, %v2581
        %v2616 = vadd.f32 %v2461, %v2586
        %v2617 = vadd.f32 %v2462, %v2591
        %v2618 = vadd.f32 %v2463, %v2596
        %v2619 = vadd.f32 %v2464, %v2601
        %v2620 = vadd.f32 %v2465, %v2606
        %v2621 = vadd.f32 %v2466, %v2611
        %v2622 = vld [vmem:[%s351] sm:$0xf]
        %v2623 = vld [vmem:[%s351 + $0x4] sm:$0x1]
        %v2624 = vld [vmem:[%s351 + $0x10] sm:$0xf]
        %v2625 = vld [vmem:[%s351 + $0x14] sm:$0x1]
        %v2626 = vld [vmem:[%s351 + $0x20] sm:$0xf]
        %v2627 = vld [vmem:[%s351 + $0x24] sm:$0x1]
        %v2628 = vld [vmem:[%s351 + $0x30] sm:$0xf]
        %v2629 = vld [vmem:[%s351 + $0x34] sm:$0x1]
        %v2630 = vld [vmem:[%s351 + $0x40] sm:$0xf]
        %v2631 = vld [vmem:[%s351 + $0x44] sm:$0x1]
        %v2632 = vld [vmem:[%s351 + $0x50] sm:$0xf]
        %v2633 = vld [vmem:[%s351 + $0x54] sm:$0x1]
        %v2634 = vld [vmem:[%s351 + $0x60] sm:$0xf]
        %v2635 = vld [vmem:[%s351 + $0x64] sm:$0x1]
        %v2636 = vld [vmem:[%s351 + $0x70] sm:$0xf]
        %v2637 = vld [vmem:[%s351 + $0x74] sm:$0x1]
        %v2638 = vunpack.c.l.bf16 %v2622
        %v2639 = vunpack.c.l.bf16 %v2623
        %v2640 = vunpack.c.l.bf16 %v2624
        %v2641 = vunpack.c.l.bf16 %v2625
        %v2642 = vunpack.c.l.bf16 %v2626
        %v2643 = vunpack.c.l.bf16 %v2627
        %v2644 = vunpack.c.l.bf16 %v2628
        %v2645 = vunpack.c.l.bf16 %v2629
        %v2646 = vunpack.c.l.bf16 %v2630
        %v2647 = vunpack.c.l.bf16 %v2631
        %v2648 = vunpack.c.l.bf16 %v2632
        %v2649 = vunpack.c.l.bf16 %v2633
        %v2650 = vunpack.c.l.bf16 %v2634
        %v2651 = vunpack.c.l.bf16 %v2635
        %v2652 = vunpack.c.l.bf16 %v2636
        %v2653 = vunpack.c.l.bf16 %v2637
        %v2670 = vrot.slane %v2638, 1
        %v2671 = vrot.slane %v2639, 1
        %v2672 = vsel %vm403, %v2670, %v2671
        %v2673 = vrot.slane %v2640, 1
        %v2674 = vrot.slane %v2641, 1
        %v2675 = vsel %vm403, %v2673, %v2674
        %v2676 = vrot.slane %v2642, 1
        %v2677 = vrot.slane %v2643, 1
        %v2678 = vsel %vm403, %v2676, %v2677
        %v2679 = vrot.slane %v2644, 1
        %v2680 = vrot.slane %v2645, 1
        %v2681 = vsel %vm403, %v2679, %v2680
        %v2682 = vrot.slane %v2646, 1
        %v2683 = vrot.slane %v2647, 1
        %v2684 = vsel %vm403, %v2682, %v2683
        %v2685 = vrot.slane %v2648, 1
        %v2686 = vrot.slane %v2649, 1
        %v2687 = vsel %vm403, %v2685, %v2686
        %v2688 = vrot.slane %v2650, 1
        %v2689 = vrot.slane %v2651, 1
        %v2690 = vsel %vm403, %v2688, %v2689
        %v2691 = vrot.slane %v2652, 1
        %v2692 = vrot.slane %v2653, 1
        %v2693 = vsel %vm403, %v2691, %v2692
        %s2694 = scalar_lea.vmem %s3, 104
        %v2695 = vld [vmem:[%s2694] sm:$0xff]
        %v2696 = vsel %vm430, %v2672, 0
        %v2698 = vsel %vm430, %v2675, 0
        %v2700 = vsel %vm430, %v2678, 0
        %v2702 = vsel %vm430, %v2681, 0
        %v2704 = vsel %vm430, %v2684, 0
        %v2706 = vsel %vm430, %v2687, 0
        %v2708 = vsel %vm430, %v2690, 0
        %v2710 = vsel %vm430, %v2693, 0
        %2712 = vmatprep.subr.mxu0 0.0
        %2713 = vmatpush1.msra.mxu0 0.0
        %2714 = vmatprep.subr.mxu0 0.0
        %2715 = vmatpush1.msra.mxu0 0.0
        %2716 = vmatprep.subr.mxu0 0.0
        %2717 = vmatpush1.msra.mxu0 0.0
        %2718 = vmatprep.subr.mxu0 0.0
        %2719 = vmatpush1.msra.mxu0 0.0
        %2720 = vmatprep.subr.mxu0 0.0
        %2721 = vmatpush1.msra.mxu0 0.0
        %2722 = vmatprep.subr.mxu0 0.0
        %2723 = vmatpush1.msra.mxu0 0.0
        %2724 = vmatprep.subr.mxu0 0.0
        %2725 = vmatpush1.msra.mxu0 0.0
        %2726 = vmatprep.subr.mxu0 0.0
        %2727 = vmatpush1.msra.mxu0 0.0
        %2728 = vmatprep.subr.mxu0 0.0
        %2729 = vmatpush1.msra.mxu0 0.0
        %2730 = vmatprep.subr.mxu0 0.0
        %2731 = vmatpush1.msra.mxu0 0.0
        %2732 = vmatprep.subr.mxu0 0.0
        %2733 = vmatpush1.msra.mxu0 0.0
        %2734 = vmatprep.subr.mxu0 0.0
        %2735 = vmatpush1.msra.mxu0 0.0
        %2736 = vmatprep.subr.mxu0 0.0
        %2737 = vmatpush1.msra.mxu0 0.0
        %2738 = vmatprep.subr.mxu0 0.0
        %2739 = vmatpush1.msra.mxu0 0.0
        %2740 = vmatprep.subr.mxu0 0.0
        %2741 = vmatpush1.msra.mxu0 0.0
        %2742 = vmatprep.subr.mxu0 0.0
        %2743 = vmatpush1.msra.mxu0 %v2695
        %2744 = vmatprep.subr.mxu0 0.0
        %2745 = vmatpush2.msra.mxu0 0.0
        %2746 = vmatprep.subr.mxu0 0.0
        %2747 = vmatpush2.msra.mxu0 0.0
        %2748 = vmatprep.subr.mxu0 0.0
        %2749 = vmatpush2.msra.mxu0 0.0
        %2750 = vmatprep.subr.mxu0 0.0
        %2751 = vmatpush2.msra.mxu0 0.0
        %2752 = vmatprep.subr.mxu0 0.0
        %2753 = vmatpush2.msra.mxu0 0.0
        %2754 = vmatprep.subr.mxu0 0.0
        %2755 = vmatpush2.msra.mxu0 0.0
        %2756 = vmatprep.subr.mxu0 0.0
        %2757 = vmatpush2.msra.mxu0 0.0
        %2758 = vmatprep.subr.mxu0 0.0
        %2759 = vmatpush2.msra.mxu0 0.0
        %2760 = vmatprep.subr.mxu0 0.0
        %2761 = vmatpush2.msra.mxu0 0.0
        %2762 = vmatprep.subr.mxu0 0.0
        %2763 = vmatpush2.msra.mxu0 0.0
        %2764 = vmatprep.subr.mxu0 0.0
        %2765 = vmatpush2.msra.mxu0 0.0
        %2766 = vmatprep.subr.mxu0 0.0
        %2767 = vmatpush2.msra.mxu0 0.0
        %2768 = vmatprep.subr.mxu0 0.0
        %2769 = vmatpush2.msra.mxu0 0.0
        %2770 = vmatprep.subr.mxu0 0.0
        %2771 = vmatpush2.msra.mxu0 0.0
        %2772 = vmatprep.subr.mxu0 0.0
        %2773 = vmatpush2.msra.mxu0 0.0
        %2774 = vmatprep.subr.mxu0 0.0
        %2775 = vmatpush2.msra.mxu0 0.0
        %2776 = vmatprep.mubr.f32.mxu0 0.0
        %2777 = vmatmul.mubr.f32.gmra.mxu0 %v2696
        %v2778 = vpop.f32.mrf.mxu0
        %v2779 = vadd.f32 0.0, %v2778
        %v2780 = vpop.f32.mrf.mxu0
        %2781 = vmatprep.mubr.f32.mxu0 0.0
        %2782 = vmatmul.mubr.f32.gmra.mxu0 %v2698
        %v2783 = vpop.f32.mrf.mxu0
        %v2784 = vadd.f32 0.0, %v2783
        %v2785 = vpop.f32.mrf.mxu0
        %2786 = vmatprep.mubr.f32.mxu0 0.0
        %2787 = vmatmul.mubr.f32.gmra.mxu0 %v2700
        %v2788 = vpop.f32.mrf.mxu0
        %v2789 = vadd.f32 0.0, %v2788
        %v2790 = vpop.f32.mrf.mxu0
        %2791 = vmatprep.mubr.f32.mxu0 0.0
        %2792 = vmatmul.mubr.f32.gmra.mxu0 %v2702
        %v2793 = vpop.f32.mrf.mxu0
        %v2794 = vadd.f32 0.0, %v2793
        %v2795 = vpop.f32.mrf.mxu0
        %2796 = vmatprep.mubr.f32.mxu0 0.0
        %2797 = vmatmul.mubr.f32.gmra.mxu0 %v2704
        %v2798 = vpop.f32.mrf.mxu0
        %v2799 = vadd.f32 0.0, %v2798
        %v2800 = vpop.f32.mrf.mxu0
        %2801 = vmatprep.mubr.f32.mxu0 0.0
        %2802 = vmatmul.mubr.f32.gmra.mxu0 %v2706
        %v2803 = vpop.f32.mrf.mxu0
        %v2804 = vadd.f32 0.0, %v2803
        %v2805 = vpop.f32.mrf.mxu0
        %2806 = vmatprep.mubr.f32.mxu0 0.0
        %2807 = vmatmul.mubr.f32.gmra.mxu0 %v2708
        %v2808 = vpop.f32.mrf.mxu0
        %v2809 = vadd.f32 0.0, %v2808
        %v2810 = vpop.f32.mrf.mxu0
        %2811 = vmatprep.mubr.f32.mxu0 0.0
        %2812 = vmatmul.mubr.f32.gmra.mxu0 %v2710
        %v2813 = vpop.f32.mrf.mxu0
        %v2814 = vadd.f32 0.0, %v2813
        %v2815 = vpop.f32.mrf.mxu0
        %2816 = vdwg.mxu0
        %v2817 = vadd.f32 %v2614, %v2779
        %v2818 = vadd.f32 %v2615, %v2784
        %v2819 = vadd.f32 %v2616, %v2789
        %v2820 = vadd.f32 %v2617, %v2794
        %v2821 = vadd.f32 %v2618, %v2799
        %v2822 = vadd.f32 %v2619, %v2804
        %v2823 = vadd.f32 %v2620, %v2809
        %v2824 = vadd.f32 %v2621, %v2814
        %s2825 = scalar_lea.vmem %s351, 8
        %v2826 = vld [vmem:[%s2825] sm:$0xf]
        %v2827 = vld [vmem:[%s2825 + $0x10] sm:$0xf]
        %v2828 = vld [vmem:[%s2825 + $0x20] sm:$0xf]
        %v2829 = vld [vmem:[%s2825 + $0x30] sm:$0xf]
        %v2830 = vld [vmem:[%s2825 + $0x40] sm:$0xf]
        %v2831 = vld [vmem:[%s2825 + $0x50] sm:$0xf]
        %v2832 = vld [vmem:[%s2825 + $0x60] sm:$0xf]
        %v2833 = vld [vmem:[%s2825 + $0x70] sm:$0xf]
        %v2834 = vunpack.c.l.bf16 %v2826
        %v2835 = vunpack.c.l.bf16 %v2827
        %v2836 = vunpack.c.l.bf16 %v2828
        %v2837 = vunpack.c.l.bf16 %v2829
        %v2838 = vunpack.c.l.bf16 %v2830
        %v2839 = vunpack.c.l.bf16 %v2831
        %v2840 = vunpack.c.l.bf16 %v2832
        %v2841 = vunpack.c.l.bf16 %v2833
        %s2842 = scalar_lea.vmem %s3, 112
        %v2843 = vld [vmem:[%s2842] sm:$0xff]
        %v2845 = vsel %vm430, %v2834, 0
        %v2848 = vsel %vm430, %v2835, 0
        %v2851 = vsel %vm430, %v2836, 0
        %v2854 = vsel %vm430, %v2837, 0
        %v2857 = vsel %vm430, %v2838, 0
        %v2860 = vsel %vm430, %v2839, 0
        %v2863 = vsel %vm430, %v2840, 0
        %v2866 = vsel %vm430, %v2841, 0
        %2868 = vmatprep.subr.mxu0 0.0
        %2869 = vmatpush1.msra.mxu0 0.0
        %2870 = vmatprep.subr.mxu0 0.0
        %2871 = vmatpush1.msra.mxu0 0.0
        %2872 = vmatprep.subr.mxu0 0.0
        %2873 = vmatpush1.msra.mxu0 0.0
        %2874 = vmatprep.subr.mxu0 0.0
        %2875 = vmatpush1.msra.mxu0 0.0
        %2876 = vmatprep.subr.mxu0 0.0
        %2877 = vmatpush1.msra.mxu0 0.0
        %2878 = vmatprep.subr.mxu0 0.0
        %2879 = vmatpush1.msra.mxu0 0.0
        %2880 = vmatprep.subr.mxu0 0.0
        %2881 = vmatpush1.msra.mxu0 0.0
        %2882 = vmatprep.subr.mxu0 0.0
        %2883 = vmatpush1.msra.mxu0 0.0
        %2884 = vmatprep.subr.mxu0 0.0
        %2885 = vmatpush1.msra.mxu0 0.0
        %2886 = vmatprep.subr.mxu0 0.0
        %2887 = vmatpush1.msra.mxu0 0.0
        %2888 = vmatprep.subr.mxu0 0.0
        %2889 = vmatpush1.msra.mxu0 0.0
        %2890 = vmatprep.subr.mxu0 0.0
        %2891 = vmatpush1.msra.mxu0 0.0
        %2892 = vmatprep.subr.mxu0 0.0
        %2893 = vmatpush1.msra.mxu0 0.0
        %2894 = vmatprep.subr.mxu0 0.0
        %2895 = vmatpush1.msra.mxu0 0.0
        %2896 = vmatprep.subr.mxu0 0.0
        %2897 = vmatpush1.msra.mxu0 0.0
        %2898 = vmatprep.subr.mxu0 0.0
        %2899 = vmatpush1.msra.mxu0 %v2843
        %2900 = vmatprep.subr.mxu0 0.0
        %2901 = vmatpush2.msra.mxu0 0.0
        %2902 = vmatprep.subr.mxu0 0.0
        %2903 = vmatpush2.msra.mxu0 0.0
        %2904 = vmatprep.subr.mxu0 0.0
        %2905 = vmatpush2.msra.mxu0 0.0
        %2906 = vmatprep.subr.mxu0 0.0
        %2907 = vmatpush2.msra.mxu0 0.0
        %2908 = vmatprep.subr.mxu0 0.0
        %2909 = vmatpush2.msra.mxu0 0.0
        %2910 = vmatprep.subr.mxu0 0.0
        %2911 = vmatpush2.msra.mxu0 0.0
        %2912 = vmatprep.subr.mxu0 0.0
        %2913 = vmatpush2.msra.mxu0 0.0
        %2914 = vmatprep.subr.mxu0 0.0
        %2915 = vmatpush2.msra.mxu0 0.0
        %2916 = vmatprep.subr.mxu0 0.0
        %2917 = vmatpush2.msra.mxu0 0.0
        %2918 = vmatprep.subr.mxu0 0.0
        %2919 = vmatpush2.msra.mxu0 0.0
        %2920 = vmatprep.subr.mxu0 0.0
        %2921 = vmatpush2.msra.mxu0 0.0
        %2922 = vmatprep.subr.mxu0 0.0
        %2923 = vmatpush2.msra.mxu0 0.0
        %2924 = vmatprep.subr.mxu0 0.0
        %2925 = vmatpush2.msra.mxu0 0.0
        %2926 = vmatprep.subr.mxu0 0.0
        %2927 = vmatpush2.msra.mxu0 0.0
        %2928 = vmatprep.subr.mxu0 0.0
        %2929 = vmatpush2.msra.mxu0 0.0
        %2930 = vmatprep.subr.mxu0 0.0
        %2931 = vmatpush2.msra.mxu0 0.0
        %2932 = vmatprep.mubr.f32.mxu0 0.0
        %2933 = vmatmul.mubr.f32.gmra.mxu0 %v2845
        %v2934 = vpop.f32.mrf.mxu0
        %v2935 = vadd.f32 0.0, %v2934
        %v2936 = vpop.f32.mrf.mxu0
        %2937 = vmatprep.mubr.f32.mxu0 0.0
        %2938 = vmatmul.mubr.f32.gmra.mxu0 %v2848
        %v2939 = vpop.f32.mrf.mxu0
        %v2940 = vadd.f32 0.0, %v2939
        %v2941 = vpop.f32.mrf.mxu0
        %2942 = vmatprep.mubr.f32.mxu0 0.0
        %2943 = vmatmul.mubr.f32.gmra.mxu0 %v2851
        %v2944 = vpop.f32.mrf.mxu0
        %v2945 = vadd.f32 0.0, %v2944
        %v2946 = vpop.f32.mrf.mxu0
        %2947 = vmatprep.mubr.f32.mxu0 0.0
        %2948 = vmatmul.mubr.f32.gmra.mxu0 %v2854
        %v2949 = vpop.f32.mrf.mxu0
        %v2950 = vadd.f32 0.0, %v2949
        %v2951 = vpop.f32.mrf.mxu0
        %2952 = vmatprep.mubr.f32.mxu0 0.0
        %2953 = vmatmul.mubr.f32.gmra.mxu0 %v2857
        %v2954 = vpop.f32.mrf.mxu0
        %v2955 = vadd.f32 0.0, %v2954
        %v2956 = vpop.f32.mrf.mxu0
        %2957 = vmatprep.mubr.f32.mxu0 0.0
        %2958 = vmatmul.mubr.f32.gmra.mxu0 %v2860
        %v2959 = vpop.f32.mrf.mxu0
        %v2960 = vadd.f32 0.0, %v2959
        %v2961 = vpop.f32.mrf.mxu0
        %2962 = vmatprep.mubr.f32.mxu0 0.0
        %2963 = vmatmul.mubr.f32.gmra.mxu0 %v2863
        %v2964 = vpop.f32.mrf.mxu0
        %v2965 = vadd.f32 0.0, %v2964
        %v2966 = vpop.f32.mrf.mxu0
        %2967 = vmatprep.mubr.f32.mxu0 0.0
        %2968 = vmatmul.mubr.f32.gmra.mxu0 %v2866
        %v2969 = vpop.f32.mrf.mxu0
        %v2970 = vadd.f32 0.0, %v2969
        %v2971 = vpop.f32.mrf.mxu0
        %2972 = vdwg.mxu0
        %v2973 = vadd.f32 %v2817, %v2935
        %v2974 = vadd.f32 %v2818, %v2940
        %v2975 = vadd.f32 %v2819, %v2945
        %v2976 = vadd.f32 %v2820, %v2950
        %v2977 = vadd.f32 %v2821, %v2955
        %v2978 = vadd.f32 %v2822, %v2960
        %v2979 = vadd.f32 %v2823, %v2965
        %v2980 = vadd.f32 %v2824, %v2970
        %v2981 = vld [vmem:[%s2825] sm:$0xf]
        %v2982 = vld [vmem:[%s2825 + $0x4] sm:$0x1]
        %v2983 = vld [vmem:[%s2825 + $0x10] sm:$0xf]
        %v2984 = vld [vmem:[%s2825 + $0x14] sm:$0x1]
        %v2985 = vld [vmem:[%s2825 + $0x20] sm:$0xf]
        %v2986 = vld [vmem:[%s2825 + $0x24] sm:$0x1]
        %v2987 = vld [vmem:[%s2825 + $0x30] sm:$0xf]
        %v2988 = vld [vmem:[%s2825 + $0x34] sm:$0x1]
        %v2989 = vld [vmem:[%s2825 + $0x40] sm:$0xf]
        %v2990 = vld [vmem:[%s2825 + $0x44] sm:$0x1]
        %v2991 = vld [vmem:[%s2825 + $0x50] sm:$0xf]
        %v2992 = vld [vmem:[%s2825 + $0x54] sm:$0x1]
        %v2993 = vld [vmem:[%s2825 + $0x60] sm:$0xf]
        %v2994 = vld [vmem:[%s2825 + $0x64] sm:$0x1]
        %v2995 = vld [vmem:[%s2825 + $0x70] sm:$0xf]
        %v2996 = vld [vmem:[%s2825 + $0x74] sm:$0x1]
        %v2997 = vunpack.c.l.bf16 %v2981
        %v2998 = vunpack.c.l.bf16 %v2982
        %v2999 = vunpack.c.l.bf16 %v2983
        %v3000 = vunpack.c.l.bf16 %v2984
        %v3001 = vunpack.c.l.bf16 %v2985
        %v3002 = vunpack.c.l.bf16 %v2986
        %v3003 = vunpack.c.l.bf16 %v2987
        %v3004 = vunpack.c.l.bf16 %v2988
        %v3005 = vunpack.c.l.bf16 %v2989
        %v3006 = vunpack.c.l.bf16 %v2990
        %v3007 = vunpack.c.l.bf16 %v2991
        %v3008 = vunpack.c.l.bf16 %v2992
        %v3009 = vunpack.c.l.bf16 %v2993
        %v3010 = vunpack.c.l.bf16 %v2994
        %v3011 = vunpack.c.l.bf16 %v2995
        %v3012 = vunpack.c.l.bf16 %v2996
        %v3029 = vrot.slane %v2997, 1
        %v3030 = vrot.slane %v2998, 1
        %v3031 = vsel %vm403, %v3029, %v3030
        %v3032 = vrot.slane %v2999, 1
        %v3033 = vrot.slane %v3000, 1
        %v3034 = vsel %vm403, %v3032, %v3033
        %v3035 = vrot.slane %v3001, 1
        %v3036 = vrot.slane %v3002, 1
        %v3037 = vsel %vm403, %v3035, %v3036
        %v3038 = vrot.slane %v3003, 1
        %v3039 = vrot.slane %v3004, 1
        %v3040 = vsel %vm403, %v3038, %v3039
        %v3041 = vrot.slane %v3005, 1
        %v3042 = vrot.slane %v3006, 1
        %v3043 = vsel %vm403, %v3041, %v3042
        %v3044 = vrot.slane %v3007, 1
        %v3045 = vrot.slane %v3008, 1
        %v3046 = vsel %vm403, %v3044, %v3045
        %v3047 = vrot.slane %v3009, 1
        %v3048 = vrot.slane %v3010, 1
        %v3049 = vsel %vm403, %v3047, %v3048
        %v3050 = vrot.slane %v3011, 1
        %v3051 = vrot.slane %v3012, 1
        %v3052 = vsel %vm403, %v3050, %v3051
        %s3053 = scalar_lea.vmem %s3, 120
        %v3054 = vld [vmem:[%s3053] sm:$0xff]
        %v3055 = vsel %vm430, %v3031, 0
        %v3057 = vsel %vm430, %v3034, 0
        %v3059 = vsel %vm430, %v3037, 0
        %v3061 = vsel %vm430, %v3040, 0
        %v3063 = vsel %vm430, %v3043, 0
        %v3065 = vsel %vm430, %v3046, 0
        %v3067 = vsel %vm430, %v3049, 0
        %v3069 = vsel %vm430, %v3052, 0
        %3071 = vmatprep.subr.mxu0 0.0
        %3072 = vmatpush1.msra.mxu0 0.0
        %3073 = vmatprep.subr.mxu0 0.0
        %3074 = vmatpush1.msra.mxu0 0.0
        %3075 = vmatprep.subr.mxu0 0.0
        %3076 = vmatpush1.msra.mxu0 0.0
        %3077 = vmatprep.subr.mxu0 0.0
        %3078 = vmatpush1.msra.mxu0 0.0
        %3079 = vmatprep.subr.mxu0 0.0
        %3080 = vmatpush1.msra.mxu0 0.0
        %3081 = vmatprep.subr.mxu0 0.0
        %3082 = vmatpush1.msra.mxu0 0.0
        %3083 = vmatprep.subr.mxu0 0.0
        %3084 = vmatpush1.msra.mxu0 0.0
        %3085 = vmatprep.subr.mxu0 0.0
        %3086 = vmatpush1.msra.mxu0 0.0
        %3087 = vmatprep.subr.mxu0 0.0
        %3088 = vmatpush1.msra.mxu0 0.0
        %3089 = vmatprep.subr.mxu0 0.0
        %3090 = vmatpush1.msra.mxu0 0.0
        %3091 = vmatprep.subr.mxu0 0.0
        %3092 = vmatpush1.msra.mxu0 0.0
        %3093 = vmatprep.subr.mxu0 0.0
        %3094 = vmatpush1.msra.mxu0 0.0
        %3095 = vmatprep.subr.mxu0 0.0
        %3096 = vmatpush1.msra.mxu0 0.0
        %3097 = vmatprep.subr.mxu0 0.0
        %3098 = vmatpush1.msra.mxu0 0.0
        %3099 = vmatprep.subr.mxu0 0.0
        %3100 = vmatpush1.msra.mxu0 0.0
        %3101 = vmatprep.subr.mxu0 0.0
        %3102 = vmatpush1.msra.mxu0 %v3054
        %3103 = vmatprep.subr.mxu0 0.0
        %3104 = vmatpush2.msra.mxu0 0.0
        %3105 = vmatprep.subr.mxu0 0.0
        %3106 = vmatpush2.msra.mxu0 0.0
        %3107 = vmatprep.subr.mxu0 0.0
        %3108 = vmatpush2.msra.mxu0 0.0
        %3109 = vmatprep.subr.mxu0 0.0
        %3110 = vmatpush2.msra.mxu0 0.0
        %3111 = vmatprep.subr.mxu0 0.0
        %3112 = vmatpush2.msra.mxu0 0.0
        %3113 = vmatprep.subr.mxu0 0.0
        %3114 = vmatpush2.msra.mxu0 0.0
        %3115 = vmatprep.subr.mxu0 0.0
        %3116 = vmatpush2.msra.mxu0 0.0
        %3117 = vmatprep.subr.mxu0 0.0
        %3118 = vmatpush2.msra.mxu0 0.0
        %3119 = vmatprep.subr.mxu0 0.0
        %3120 = vmatpush2.msra.mxu0 0.0
        %3121 = vmatprep.subr.mxu0 0.0
        %3122 = vmatpush2.msra.mxu0 0.0
        %3123 = vmatprep.subr.mxu0 0.0
        %3124 = vmatpush2.msra.mxu0 0.0
        %3125 = vmatprep.subr.mxu0 0.0
        %3126 = vmatpush2.msra.mxu0 0.0
        %3127 = vmatprep.subr.mxu0 0.0
        %3128 = vmatpush2.msra.mxu0 0.0
        %3129 = vmatprep.subr.mxu0 0.0
        %3130 = vmatpush2.msra.mxu0 0.0
        %3131 = vmatprep.subr.mxu0 0.0
        %3132 = vmatpush2.msra.mxu0 0.0
        %3133 = vmatprep.subr.mxu0 0.0
        %3134 = vmatpush2.msra.mxu0 0.0
        %3135 = vmatprep.mubr.f32.mxu0 0.0
        %3136 = vmatmul.mubr.f32.gmra.mxu0 %v3055
        %v3137 = vpop.f32.mrf.mxu0
        %v3138 = vadd.f32 0.0, %v3137
        %v3139 = vpop.f32.mrf.mxu0
        %3140 = vmatprep.mubr.f32.mxu0 0.0
        %3141 = vmatmul.mubr.f32.gmra.mxu0 %v3057
        %v3142 = vpop.f32.mrf.mxu0
        %v3143 = vadd.f32 0.0, %v3142
        %v3144 = vpop.f32.mrf.mxu0
        %3145 = vmatprep.mubr.f32.mxu0 0.0
        %3146 = vmatmul.mubr.f32.gmra.mxu0 %v3059
        %v3147 = vpop.f32.mrf.mxu0
        %v3148 = vadd.f32 0.0, %v3147
        %v3149 = vpop.f32.mrf.mxu0
        %3150 = vmatprep.mubr.f32.mxu0 0.0
        %3151 = vmatmul.mubr.f32.gmra.mxu0 %v3061
        %v3152 = vpop.f32.mrf.mxu0
        %v3153 = vadd.f32 0.0, %v3152
        %v3154 = vpop.f32.mrf.mxu0
        %3155 = vmatprep.mubr.f32.mxu0 0.0
        %3156 = vmatmul.mubr.f32.gmra.mxu0 %v3063
        %v3157 = vpop.f32.mrf.mxu0
        %v3158 = vadd.f32 0.0, %v3157
        %v3159 = vpop.f32.mrf.mxu0
        %3160 = vmatprep.mubr.f32.mxu0 0.0
        %3161 = vmatmul.mubr.f32.gmra.mxu0 %v3065
        %v3162 = vpop.f32.mrf.mxu0
        %v3163 = vadd.f32 0.0, %v3162
        %v3164 = vpop.f32.mrf.mxu0
        %3165 = vmatprep.mubr.f32.mxu0 0.0
        %3166 = vmatmul.mubr.f32.gmra.mxu0 %v3067
        %v3167 = vpop.f32.mrf.mxu0
        %v3168 = vadd.f32 0.0, %v3167
        %v3169 = vpop.f32.mrf.mxu0
        %3170 = vmatprep.mubr.f32.mxu0 0.0
        %3171 = vmatmul.mubr.f32.gmra.mxu0 %v3069
        %v3172 = vpop.f32.mrf.mxu0
        %v3173 = vadd.f32 0.0, %v3172
        %v3174 = vpop.f32.mrf.mxu0
        %3175 = vdwg.mxu0
        %v3176 = vadd.f32 %v2973, %v3138
        %v3177 = vadd.f32 %v2974, %v3143
        %v3178 = vadd.f32 %v2975, %v3148
        %v3179 = vadd.f32 %v2976, %v3153
        %v3180 = vadd.f32 %v2977, %v3158
        %v3181 = vadd.f32 %v2978, %v3163
        %v3182 = vadd.f32 %v2979, %v3168
        %v3183 = vadd.f32 %v2980, %v3173
        %s3184 = scalar_lea.vmem %s351, 16
        %v3185 = vld [vmem:[%s3184] sm:$0xf]
        %v3186 = vld [vmem:[%s3184 + $0x10] sm:$0xf]
        %v3187 = vld [vmem:[%s3184 + $0x20] sm:$0xf]
        %v3188 = vld [vmem:[%s3184 + $0x30] sm:$0xf]
        %v3189 = vld [vmem:[%s3184 + $0x40] sm:$0xf]
        %v3190 = vld [vmem:[%s3184 + $0x50] sm:$0xf]
        %v3191 = vld [vmem:[%s3184 + $0x60] sm:$0xf]
        %v3192 = vld [vmem:[%s3184 + $0x70] sm:$0xf]
        %v3193 = vunpack.c.l.bf16 %v3185
        %v3194 = vunpack.c.l.bf16 %v3186
        %v3195 = vunpack.c.l.bf16 %v3187
        %v3196 = vunpack.c.l.bf16 %v3188
        %v3197 = vunpack.c.l.bf16 %v3189
        %v3198 = vunpack.c.l.bf16 %v3190
        %v3199 = vunpack.c.l.bf16 %v3191
        %v3200 = vunpack.c.l.bf16 %v3192
        %s3201 = scalar_lea.vmem %s3, 128
        %v3202 = vld [vmem:[%s3201] sm:$0xff]
        %v3204 = vsel %vm430, %v3193, 0
        %v3207 = vsel %vm430, %v3194, 0
        %v3210 = vsel %vm430, %v3195, 0
        %v3213 = vsel %vm430, %v3196, 0
        %v3216 = vsel %vm430, %v3197, 0
        %v3219 = vsel %vm430, %v3198, 0
        %v3222 = vsel %vm430, %v3199, 0
        %v3225 = vsel %vm430, %v3200, 0
        %3227 = vmatprep.subr.mxu0 0.0
        %3228 = vmatpush1.msra.mxu0 0.0
        %3229 = vmatprep.subr.mxu0 0.0
        %3230 = vmatpush1.msra.mxu0 0.0
        %3231 = vmatprep.subr.mxu0 0.0
        %3232 = vmatpush1.msra.mxu0 0.0
        %3233 = vmatprep.subr.mxu0 0.0
        %3234 = vmatpush1.msra.mxu0 0.0
        %3235 = vmatprep.subr.mxu0 0.0
        %3236 = vmatpush1.msra.mxu0 0.0
        %3237 = vmatprep.subr.mxu0 0.0
        %3238 = vmatpush1.msra.mxu0 0.0
        %3239 = vmatprep.subr.mxu0 0.0
        %3240 = vmatpush1.msra.mxu0 0.0
        %3241 = vmatprep.subr.mxu0 0.0
        %3242 = vmatpush1.msra.mxu0 0.0
        %3243 = vmatprep.subr.mxu0 0.0
        %3244 = vmatpush1.msra.mxu0 0.0
        %3245 = vmatprep.subr.mxu0 0.0
        %3246 = vmatpush1.msra.mxu0 0.0
        %3247 = vmatprep.subr.mxu0 0.0
        %3248 = vmatpush1.msra.mxu0 0.0
        %3249 = vmatprep.subr.mxu0 0.0
        %3250 = vmatpush1.msra.mxu0 0.0
        %3251 = vmatprep.subr.mxu0 0.0
        %3252 = vmatpush1.msra.mxu0 0.0
        %3253 = vmatprep.subr.mxu0 0.0
        %3254 = vmatpush1.msra.mxu0 0.0
        %3255 = vmatprep.subr.mxu0 0.0
        %3256 = vmatpush1.msra.mxu0 0.0
        %3257 = vmatprep.subr.mxu0 0.0
        %3258 = vmatpush1.msra.mxu0 %v3202
        %3259 = vmatprep.subr.mxu0 0.0
        %3260 = vmatpush2.msra.mxu0 0.0
        %3261 = vmatprep.subr.mxu0 0.0
        %3262 = vmatpush2.msra.mxu0 0.0
        %3263 = vmatprep.subr.mxu0 0.0
        %3264 = vmatpush2.msra.mxu0 0.0
        %3265 = vmatprep.subr.mxu0 0.0
        %3266 = vmatpush2.msra.mxu0 0.0
        %3267 = vmatprep.subr.mxu0 0.0
        %3268 = vmatpush2.msra.mxu0 0.0
        %3269 = vmatprep.subr.mxu0 0.0
        %3270 = vmatpush2.msra.mxu0 0.0
        %3271 = vmatprep.subr.mxu0 0.0
        %3272 = vmatpush2.msra.mxu0 0.0
        %3273 = vmatprep.subr.mxu0 0.0
        %3274 = vmatpush2.msra.mxu0 0.0
        %3275 = vmatprep.subr.mxu0 0.0
        %3276 = vmatpush2.msra.mxu0 0.0
        %3277 = vmatprep.subr.mxu0 0.0
        %3278 = vmatpush2.msra.mxu0 0.0
        %3279 = vmatprep.subr.mxu0 0.0
        %3280 = vmatpush2.msra.mxu0 0.0
        %3281 = vmatprep.subr.mxu0 0.0
        %3282 = vmatpush2.msra.mxu0 0.0
        %3283 = vmatprep.subr.mxu0 0.0
        %3284 = vmatpush2.msra.mxu0 0.0
        %3285 = vmatprep.subr.mxu0 0.0
        %3286 = vmatpush2.msra.mxu0 0.0
        %3287 = vmatprep.subr.mxu0 0.0
        %3288 = vmatpush2.msra.mxu0 0.0
        %3289 = vmatprep.subr.mxu0 0.0
        %3290 = vmatpush2.msra.mxu0 0.0
        %3291 = vmatprep.mubr.f32.mxu0 0.0
        %3292 = vmatmul.mubr.f32.gmra.mxu0 %v3204
        %v3293 = vpop.f32.mrf.mxu0
        %v3294 = vadd.f32 0.0, %v3293
        %v3295 = vpop.f32.mrf.mxu0
        %3296 = vmatprep.mubr.f32.mxu0 0.0
        %3297 = vmatmul.mubr.f32.gmra.mxu0 %v3207
        %v3298 = vpop.f32.mrf.mxu0
        %v3299 = vadd.f32 0.0, %v3298
        %v3300 = vpop.f32.mrf.mxu0
        %3301 = vmatprep.mubr.f32.mxu0 0.0
        %3302 = vmatmul.mubr.f32.gmra.mxu0 %v3210
        %v3303 = vpop.f32.mrf.mxu0
        %v3304 = vadd.f32 0.0, %v3303
        %v3305 = vpop.f32.mrf.mxu0
        %3306 = vmatprep.mubr.f32.mxu0 0.0
        %3307 = vmatmul.mubr.f32.gmra.mxu0 %v3213
        %v3308 = vpop.f32.mrf.mxu0
        %v3309 = vadd.f32 0.0, %v3308
        %v3310 = vpop.f32.mrf.mxu0
        %3311 = vmatprep.mubr.f32.mxu0 0.0
        %3312 = vmatmul.mubr.f32.gmra.mxu0 %v3216
        %v3313 = vpop.f32.mrf.mxu0
        %v3314 = vadd.f32 0.0, %v3313
        %v3315 = vpop.f32.mrf.mxu0
        %3316 = vmatprep.mubr.f32.mxu0 0.0
        %3317 = vmatmul.mubr.f32.gmra.mxu0 %v3219
        %v3318 = vpop.f32.mrf.mxu0
        %v3319 = vadd.f32 0.0, %v3318
        %v3320 = vpop.f32.mrf.mxu0
        %3321 = vmatprep.mubr.f32.mxu0 0.0
        %3322 = vmatmul.mubr.f32.gmra.mxu0 %v3222
        %v3323 = vpop.f32.mrf.mxu0
        %v3324 = vadd.f32 0.0, %v3323
        %v3325 = vpop.f32.mrf.mxu0
        %3326 = vmatprep.mubr.f32.mxu0 0.0
        %3327 = vmatmul.mubr.f32.gmra.mxu0 %v3225
        %v3328 = vpop.f32.mrf.mxu0
        %v3329 = vadd.f32 0.0, %v3328
        %v3330 = vpop.f32.mrf.mxu0
        %3331 = vdwg.mxu0
        %v3332 = vadd.f32 %v3176, %v3294
        %v3333 = vadd.f32 %v3177, %v3299
        %v3334 = vadd.f32 %v3178, %v3304
        %v3335 = vadd.f32 %v3179, %v3309
        %v3336 = vadd.f32 %v3180, %v3314
        %v3337 = vadd.f32 %v3181, %v3319
        %v3338 = vadd.f32 %v3182, %v3324
        %v3339 = vadd.f32 %v3183, %v3329
        %v3340 = vld [vmem:[%s3184] sm:$0xf]
        %v3341 = vld [vmem:[%s3184 + $0x4] sm:$0x1]
        %v3342 = vld [vmem:[%s3184 + $0x10] sm:$0xf]
        %v3343 = vld [vmem:[%s3184 + $0x14] sm:$0x1]
        %v3344 = vld [vmem:[%s3184 + $0x20] sm:$0xf]
        %v3345 = vld [vmem:[%s3184 + $0x24] sm:$0x1]
        %v3346 = vld [vmem:[%s3184 + $0x30] sm:$0xf]
        %v3347 = vld [vmem:[%s3184 + $0x34] sm:$0x1]
        %v3348 = vld [vmem:[%s3184 + $0x40] sm:$0xf]
        %v3349 = vld [vmem:[%s3184 + $0x44] sm:$0x1]
        %v3350 = vld [vmem:[%s3184 + $0x50] sm:$0xf]
        %v3351 = vld [vmem:[%s3184 + $0x54] sm:$0x1]
        %v3352 = vld [vmem:[%s3184 + $0x60] sm:$0xf]
        %v3353 = vld [vmem:[%s3184 + $0x64] sm:$0x1]
        %v3354 = vld [vmem:[%s3184 + $0x70] sm:$0xf]
        %v3355 = vld [vmem:[%s3184 + $0x74] sm:$0x1]
        %v3356 = vunpack.c.l.bf16 %v3340
        %v3357 = vunpack.c.l.bf16 %v3341
        %v3358 = vunpack.c.l.bf16 %v3342
        %v3359 = vunpack.c.l.bf16 %v3343
        %v3360 = vunpack.c.l.bf16 %v3344
        %v3361 = vunpack.c.l.bf16 %v3345
        %v3362 = vunpack.c.l.bf16 %v3346
        %v3363 = vunpack.c.l.bf16 %v3347
        %v3364 = vunpack.c.l.bf16 %v3348
        %v3365 = vunpack.c.l.bf16 %v3349
        %v3366 = vunpack.c.l.bf16 %v3350
        %v3367 = vunpack.c.l.bf16 %v3351
        %v3368 = vunpack.c.l.bf16 %v3352
        %v3369 = vunpack.c.l.bf16 %v3353
        %v3370 = vunpack.c.l.bf16 %v3354
        %v3371 = vunpack.c.l.bf16 %v3355
        %v3388 = vrot.slane %v3356, 1
        %v3389 = vrot.slane %v3357, 1
        %v3390 = vsel %vm403, %v3388, %v3389
        %v3391 = vrot.slane %v3358, 1
        %v3392 = vrot.slane %v3359, 1
        %v3393 = vsel %vm403, %v3391, %v3392
        %v3394 = vrot.slane %v3360, 1
        %v3395 = vrot.slane %v3361, 1
        %v3396 = vsel %vm403, %v3394, %v3395
        %v3397 = vrot.slane %v3362, 1
        %v3398 = vrot.slane %v3363, 1
        %v3399 = vsel %vm403, %v3397, %v3398
        %v3400 = vrot.slane %v3364, 1
        %v3401 = vrot.slane %v3365, 1
        %v3402 = vsel %vm403, %v3400, %v3401
        %v3403 = vrot.slane %v3366, 1
        %v3404 = vrot.slane %v3367, 1
        %v3405 = vsel %vm403, %v3403, %v3404
        %v3406 = vrot.slane %v3368, 1
        %v3407 = vrot.slane %v3369, 1
        %v3408 = vsel %vm403, %v3406, %v3407
        %v3409 = vrot.slane %v3370, 1
        %v3410 = vrot.slane %v3371, 1
        %v3411 = vsel %vm403, %v3409, %v3410
        %s3412 = scalar_lea.vmem %s3, 136
        %v3413 = vld [vmem:[%s3412] sm:$0xff]
        %v3414 = vsel %vm430, %v3390, 0
        %v3416 = vsel %vm430, %v3393, 0
        %v3418 = vsel %vm430, %v3396, 0
        %v3420 = vsel %vm430, %v3399, 0
        %v3422 = vsel %vm430, %v3402, 0
        %v3424 = vsel %vm430, %v3405, 0
        %v3426 = vsel %vm430, %v3408, 0
        %v3428 = vsel %vm430, %v3411, 0
        %3430 = vmatprep.subr.mxu0 0.0
        %3431 = vmatpush1.msra.mxu0 0.0
        %3432 = vmatprep.subr.mxu0 0.0
        %3433 = vmatpush1.msra.mxu0 0.0
        %3434 = vmatprep.subr.mxu0 0.0
        %3435 = vmatpush1.msra.mxu0 0.0
        %3436 = vmatprep.subr.mxu0 0.0
        %3437 = vmatpush1.msra.mxu0 0.0
        %3438 = vmatprep.subr.mxu0 0.0
        %3439 = vmatpush1.msra.mxu0 0.0
        %3440 = vmatprep.subr.mxu0 0.0
        %3441 = vmatpush1.msra.mxu0 0.0
        %3442 = vmatprep.subr.mxu0 0.0
        %3443 = vmatpush1.msra.mxu0 0.0
        %3444 = vmatprep.subr.mxu0 0.0
        %3445 = vmatpush1.msra.mxu0 0.0
        %3446 = vmatprep.subr.mxu0 0.0
        %3447 = vmatpush1.msra.mxu0 0.0
        %3448 = vmatprep.subr.mxu0 0.0
        %3449 = vmatpush1.msra.mxu0 0.0
        %3450 = vmatprep.subr.mxu0 0.0
        %3451 = vmatpush1.msra.mxu0 0.0
        %3452 = vmatprep.subr.mxu0 0.0
        %3453 = vmatpush1.msra.mxu0 0.0
        %3454 = vmatprep.subr.mxu0 0.0
        %3455 = vmatpush1.msra.mxu0 0.0
        %3456 = vmatprep.subr.mxu0 0.0
        %3457 = vmatpush1.msra.mxu0 0.0
        %3458 = vmatprep.subr.mxu0 0.0
        %3459 = vmatpush1.msra.mxu0 0.0
        %3460 = vmatprep.subr.mxu0 0.0
        %3461 = vmatpush1.msra.mxu0 %v3413
        %3462 = vmatprep.subr.mxu0 0.0
        %3463 = vmatpush2.msra.mxu0 0.0
        %3464 = vmatprep.subr.mxu0 0.0
        %3465 = vmatpush2.msra.mxu0 0.0
        %3466 = vmatprep.subr.mxu0 0.0
        %3467 = vmatpush2.msra.mxu0 0.0
        %3468 = vmatprep.subr.mxu0 0.0
        %3469 = vmatpush2.msra.mxu0 0.0
        %3470 = vmatprep.subr.mxu0 0.0
        %3471 = vmatpush2.msra.mxu0 0.0
        %3472 = vmatprep.subr.mxu0 0.0
        %3473 = vmatpush2.msra.mxu0 0.0
        %3474 = vmatprep.subr.mxu0 0.0
        %3475 = vmatpush2.msra.mxu0 0.0
        %3476 = vmatprep.subr.mxu0 0.0
        %3477 = vmatpush2.msra.mxu0 0.0
        %3478 = vmatprep.subr.mxu0 0.0
        %3479 = vmatpush2.msra.mxu0 0.0
        %3480 = vmatprep.subr.mxu0 0.0
        %3481 = vmatpush2.msra.mxu0 0.0
        %3482 = vmatprep.subr.mxu0 0.0
        %3483 = vmatpush2.msra.mxu0 0.0
        %3484 = vmatprep.subr.mxu0 0.0
        %3485 = vmatpush2.msra.mxu0 0.0
        %3486 = vmatprep.subr.mxu0 0.0
        %3487 = vmatpush2.msra.mxu0 0.0
        %3488 = vmatprep.subr.mxu0 0.0
        %3489 = vmatpush2.msra.mxu0 0.0
        %3490 = vmatprep.subr.mxu0 0.0
        %3491 = vmatpush2.msra.mxu0 0.0
        %3492 = vmatprep.subr.mxu0 0.0
        %3493 = vmatpush2.msra.mxu0 0.0
        %3494 = vmatprep.mubr.f32.mxu0 0.0
        %3495 = vmatmul.mubr.f32.gmra.mxu0 %v3414
        %v3496 = vpop.f32.mrf.mxu0
        %v3497 = vadd.f32 0.0, %v3496
        %v3498 = vpop.f32.mrf.mxu0
        %3499 = vmatprep.mubr.f32.mxu0 0.0
        %3500 = vmatmul.mubr.f32.gmra.mxu0 %v3416
        %v3501 = vpop.f32.mrf.mxu0
        %v3502 = vadd.f32 0.0, %v3501
        %v3503 = vpop.f32.mrf.mxu0
        %3504 = vmatprep.mubr.f32.mxu0 0.0
        %3505 = vmatmul.mubr.f32.gmra.mxu0 %v3418
        %v3506 = vpop.f32.mrf.mxu0
        %v3507 = vadd.f32 0.0, %v3506
        %v3508 = vpop.f32.mrf.mxu0
        %3509 = vmatprep.mubr.f32.mxu0 0.0
        %3510 = vmatmul.mubr.f32.gmra.mxu0 %v3420
        %v3511 = vpop.f32.mrf.mxu0
        %v3512 = vadd.f32 0.0, %v3511
        %v3513 = vpop.f32.mrf.mxu0
        %3514 = vmatprep.mubr.f32.mxu0 0.0
        %3515 = vmatmul.mubr.f32.gmra.mxu0 %v3422
        %v3516 = vpop.f32.mrf.mxu0
        %v3517 = vadd.f32 0.0, %v3516
        %v3518 = vpop.f32.mrf.mxu0
        %3519 = vmatprep.mubr.f32.mxu0 0.0
        %3520 = vmatmul.mubr.f32.gmra.mxu0 %v3424
        %v3521 = vpop.f32.mrf.mxu0
        %v3522 = vadd.f32 0.0, %v3521
        %v3523 = vpop.f32.mrf.mxu0
        %3524 = vmatprep.mubr.f32.mxu0 0.0
        %3525 = vmatmul.mubr.f32.gmra.mxu0 %v3426
        %v3526 = vpop.f32.mrf.mxu0
        %v3527 = vadd.f32 0.0, %v3526
        %v3528 = vpop.f32.mrf.mxu0
        %3529 = vmatprep.mubr.f32.mxu0 0.0
        %3530 = vmatmul.mubr.f32.gmra.mxu0 %v3428
        %v3531 = vpop.f32.mrf.mxu0
        %v3532 = vadd.f32 0.0, %v3531
        %v3533 = vpop.f32.mrf.mxu0
        %3534 = vdwg.mxu0
        %v3535 = vadd.f32 %v3332, %v3497
        %v3536 = vadd.f32 %v3333, %v3502
        %v3537 = vadd.f32 %v3334, %v3507
        %v3538 = vadd.f32 %v3335, %v3512
        %v3539 = vadd.f32 %v3336, %v3517
        %v3540 = vadd.f32 %v3337, %v3522
        %v3541 = vadd.f32 %v3338, %v3527
        %v3542 = vadd.f32 %v3339, %v3532
        %v3543 = vld [vmem:[%s4] sm:$0x1]
        %v3545 = vlaneseq
        %v3546 = vshrl.u32 %v3545, 7
        %v3547 = vsub.s32 0, %v3546
        %v3548 = vrot.slane %v3543, %v3547
        %v3550 = vadd.f32 %v3535, %v3548
        %v3551 = vadd.f32 %v3536, %v3548
        %v3552 = vadd.f32 %v3537, %v3548
        %v3553 = vadd.f32 %v3538, %v3548
        %v3554 = vadd.f32 %v3539, %v3548
        %v3555 = vadd.f32 %v3540, %v3548
        %v3556 = vadd.f32 %v3541, %v3548
        %v3557 = vadd.f32 %v3542, %v3548
        %3558 = vst [vmem:[%s316] sm:$0xff] %v3550
        %3559 = vst [vmem:[%s316 + $0x8] sm:$0xff] %v3551
        %3560 = vst [vmem:[%s316 + $0x10] sm:$0xff] %v3552
        %3561 = vst [vmem:[%s316 + $0x18] sm:$0xff] %v3553
        %3562 = vst [vmem:[%s316 + $0x20] sm:$0xff] %v3554
        %3563 = vst [vmem:[%s316 + $0x28] sm:$0xff] %v3555
        %3564 = vst [vmem:[%s316 + $0x30] sm:$0xff] %v3556
        %3565 = vst [vmem:[%s316 + $0x38] sm:$0xff] %v3557
        %s3566 = sand.u32 %s177, 1
        %s3567 = scalar_lea.sflag [#allocation3], %s3566
        %s3568 = sand.u32 %s177, 1
        %s3569 = smul.addr %s3568, 64
        %s3570 = scalar_lea.vmem [#allocation2], %s3569
        // Predicated region
        $region41: #{tpu_custom_call.1} parent=39 // pred_check
          %p3571 = pneg %p187
        $region42: #{tpu_custom_call.1} parent=39 // pred_check_branch
          %3573 = sbr.rel (%p3571) target = $region44
        $region43: #{tpu_custom_call.1} parent=39 // pred_region
          %s3575 = ssub.s32 1024, 1024
          %3576 = vsyncadd %s3567, %s3575
          %s3577 = smul.addr %s24, 8
          %s3578 = smul.addr %s23, 64
          %s3579 = sadd.s32 %s3577, %s3578
          %s3580 = smul.addr %s3579, 128
          %s3581 = scalar_lea.hbm %s5, %s3580
          %s3582 = sshll.u32 %s3570, 4
          %s3583 = int_to_ptr.vmem [resolvable:$true] %s3582
          %3588 = dma.vmem_to_hbm [thread:$0]  %s3583, 1024, %s3581, %s3567, 128, 128, 8
        $region44: #{tpu_custom_call.1} parent=39 // pred_fallthru
          _
      $region40: #{tpu_custom_call.1} parent=5 // pred_fallthru
        _
      %p3589 = scmp.le.s32.totalorder 2, %s14
      // Predicated region
      $region45: #{tpu_custom_call.1} parent=5 // pred_check
        %p3590 = pneg %p3589
      $region46: #{tpu_custom_call.1} parent=5 // pred_check_branch
        %3592 = sbr.rel (%p3590) target = $region48
      $region47: #{tpu_custom_call.1} parent=5 // pred_region
        %s3593 = ssub.s32 %s14, 2
        // Predicated region
        $region49: #{tpu_custom_call.1} parent=47 // pred_check
          %p3594 = pneg %p193
        $region50: #{tpu_custom_call.1} parent=47 // pred_check_branch
          %3596 = sbr.rel (%p3594) target = $region52
        $region51: #{tpu_custom_call.1} parent=47 // pred_region
          %s3597 = sand.u32 %s178, 1
          %s3598 = scalar_lea.sflag [#allocation3], %s3597
          %s3599 = sand.u32 %s178, 1
          %s3600 = smul.addr %s3599, 64
          %s3601 = scalar_lea.vmem [#allocation2], %s3600
          %3602 = dma.done %s3598, 1024
        $region52: #{tpu_custom_call.1} parent=47 // pred_fallthru
          _
      $region48: #{tpu_custom_call.1} parent=5 // pred_fallthru
        _
    $region6: #{tpu_custom_call.1} parent=1 // loop_footer
      %s18 = sadd.s32 1, %s14
    $region7: #{tpu_custom_call.1} parent=1 // loop_footer_branch
      %13 = sbr.rel target = $region3
    $region8: #{tpu_custom_call.1} parent=1 // loop_exit
      _
    %3603 = vsyncpa [#allocation3], 1
    %s3604 = scalar_lea.sflag [#allocation3], 1
    %3605 = vsyncpa %s3604, 1

</llo_original>
